<compile_context>
chip_gen: v5e
topology: v5e:2x2
jax: 0.10.0
libtpu: 0.0.40
codegen_flags: <defaults>
</compile_context>

<pallas_src>
import math

import jax
import jax.numpy as jnp
from jax import lax
from jax.experimental import pallas as pl
from jax.experimental.pallas import tpu as pltpu

# ----------------------------- small demo config ----------------------------
B = 2             # batch
T = 8             # cfg.transformer.block_size (history length)
CTX_LEN = 2       # cfg.pred_len (# ctx tokens prepended)
PATCH = 16        # cfg.patch_size  -> flattened patch dim = 256
D_MODEL = 128     # cfg.transformer_layer.d_model (lane-dense)
NHEAD = 4
HEAD_DIM = D_MODEL // NHEAD
D_FF = 256        # cfg.transformer_layer.dim_feedforward
NUM_LAYERS = 2    # cfg.transformer.num_layers
SEQ = CTX_LEN + T

RMS_EPS = float(jnp.finfo(jnp.float32).eps)   # torch nn.RMSNorm(eps=None)
LN_EPS = 1e-5                                 # torch nn.LayerNorm default
ATT_SCALE = 1.0 / math.sqrt(HEAD_DIM)
_MXU_DTYPE = jnp.bfloat16                     # matmul operand dtype (f32 accumulate)

_PARAM_ORDER = (
    "w_img", "w_act", "w_pose", "b_emb", "pre_norm_g",
    "w_penc", "b_penc", "ctx_token", "pos_pe_perm", "mid_norm_g",
    "w_q", "b_q", "w_k", "b_k", "w_v", "b_v",
    "w_o", "b_o", "ln1_g", "ln1_b",
    "w_ff1", "b_ff1", "w_ff2", "b_ff2", "ln2_g", "ln2_b",
    "post_norm_g", "w_pdec", "b_pdec",
)


# ------------------------------ the fused kernel ------------------------------
def _verti_encoder_kernel(
        # per-batch inputs
        img_ref, act_ref, pose_ref,
        # input encoders (block-diagonal padded) + pre_norm + patch_encoder
        w_img_ref, w_act_ref, w_pose_ref, b_emb_ref, pre_g_ref,
        w_penc_ref, b_penc_ref,
        # ctx token, permuted positional encoding, mid_norm
        ctx_ref, pos_ref, mid_g_ref,
        # transformer layers (leading dim = layer; attention weights also split by head)
        w_q_ref, b_q_ref, w_k_ref, b_k_ref, w_v_ref, b_v_ref,
        w_o_ref, b_o_ref, ln1_g_ref, ln1_b_ref,
        w_ff1_ref, b_ff1_ref, w_ff2_ref, b_ff2_ref, ln2_g_ref, ln2_b_ref,
        # post_norm + patch_decoder
        post_g_ref, w_pdec_ref, b_pdec_ref,
        # output + scratch
        o_ref, x_scr):

    def mm(a, w):  # bf16 operands on the MXU, f32 accumulate
        return jnp.dot(a.astype(_MXU_DTYPE), w, preferred_element_type=jnp.float32)

    def rms(v, g):
        return v * lax.rsqrt(jnp.mean(v * v, axis=-1, keepdims=True) + RMS_EPS) * g

    def layer_norm(v, g, b):
        mu = jnp.mean(v, axis=-1, keepdims=True)
        vc = v - mu
        var = jnp.mean(vc * vc, axis=-1, keepdims=True)
        return vc * lax.rsqrt(var + LN_EPS) * g + b

    # ---- fused input encoders: block-diagonal padded weights -> one lane-dense (T, D)
    tok = (mm(img_ref[0], w_img_ref[...]) + mm(act_ref[0], w_act_ref[...])
           + mm(pose_ref[0], w_pose_ref[...]) + b_emb_ref[...])
    tok = rms(tok, pre_g_ref[...])                        # pre_norm epilogue
    tok = mm(tok, w_penc_ref[...]) + b_penc_ref[...]      # patch_encoder

    # ---- assemble sequence in VMEM (token rows first, ctx rows last; both stores
    #      land at sublane-aligned offsets), then positional add + mid_norm
    x_scr[0:T, :] = tok
    x_scr[T:SEQ, :] = ctx_ref[...]
    x = rms(x_scr[...] + pos_ref[...], mid_g_ref[...])    # (SEQ, D) f32

    # ---- transformer encoder layers (post-norm, ReLU FFN), fully VMEM-resident
    for l in range(NUM_LAYERS):
        attn = None
        for h in range(NHEAD):
            q = mm(x, w_q_ref[l, h]) + b_q_ref[l, h]      # (S, HD)
            k = mm(x, w_k_ref[l, h]) + b_k_ref[l, h]
            v = mm(x, w_v_ref[l, h]) + b_v_ref[l, h]
            s = lax.dot_general(q.astype(_MXU_DTYPE), k.astype(_MXU_DTYPE),
                                (((1,), (1,)), ((), ())),
                                preferred_element_type=jnp.float32) * ATT_SCALE
            p = jnp.exp(s - jnp.max(s, axis=-1, keepdims=True))
            p = p * pl.reciprocal(jnp.sum(p, axis=-1, keepdims=True), approx=True)
            o_h = jnp.dot(p.astype(_MXU_DTYPE), v.astype(_MXU_DTYPE),
                          preferred_element_type=jnp.float32)
            contrib = mm(o_h, w_o_ref[l, h])              # per-head out-proj slice
            attn = contrib if attn is None else attn + contrib
        attn = attn + b_o_ref[l]
        x = layer_norm(x + attn, ln1_g_ref[l], ln1_b_ref[l])
        ff = jnp.maximum(mm(x, w_ff1_ref[l]) + b_ff1_ref[l], 0.0)
        ff = mm(ff, w_ff2_ref[l]) + b_ff2_ref[l]
        x = layer_norm(x + ff, ln2_g_ref[l], ln2_b_ref[l])

    # ---- post_norm + patch_decoder on the ctx rows only (eval-mode return)
    xo = rms(x[T:SEQ, :], post_g_ref[...])                # aligned sublane slice
    o_ref[0] = (mm(xo, w_pdec_ref[...]) + b_pdec_ref[...]).astype(o_ref.dtype)


# ------------------------------- wrapper --------------------------------------
def verti_encoder_forward(params, patches, actions, poses):
    b, t = patches.shape[:2]
    img = patches.reshape(b, t, PATCH * PATCH)
    weight_args = [params[k] for k in _PARAM_ORDER]

    def _param_spec(a):
        zeros = (0,) * a.ndim
        return pl.BlockSpec(a.shape, lambda i, _z=zeros: _z)

    in_specs = [
        pl.BlockSpec((1, t, PATCH * PATCH), lambda i: (i, 0, 0)),
        pl.BlockSpec((1, t, 2), lambda i: (i, 0, 0)),
        pl.BlockSpec((1, t, 6), lambda i: (i, 0, 0)),
    ] + [_param_spec(a) for a in weight_args]

    return pl.pallas_call(
        _verti_encoder_kernel,
        out_shape=jax.ShapeDtypeStruct((b, CTX_LEN, D_MODEL), jnp.float32),
        grid=(b,),                                  # >=2 parallel tiles -> both v7x TCs
        in_specs=in_specs,
        out_specs=pl.BlockSpec((1, CTX_LEN, D_MODEL), lambda i: (i, 0, 0)),
        scratch_shapes=[pltpu.VMEM((SEQ, D_MODEL), jnp.float32)],
        compiler_params=pltpu.CompilerParams(
            dimension_semantics=("parallel",),
            vmem_limit_bytes=32 * 1024 * 1024,
        ),
    )(img, actions, poses, *weight_args)


# --------------------------- params / reference ------------------------------
def sinusoidal_pe(max_len, d_model):
    pos = jnp.arange(max_len, dtype=jnp.float32)[:, None]
    i = jnp.arange(0, d_model, 2, dtype=jnp.float32)[None, :]
    div = jnp.exp(-jnp.log(10000.0) * i / d_model)
    pe = jnp.zeros((max_len, d_model), jnp.float32)
    pe = pe.at[:, 0::2].set(jnp.sin(pos * div))
    pe = pe.at[:, 1::2].set(jnp.cos(pos * div))
    return pe


def init_params(key):
    keys = iter(jax.random.split(key, 64))
    d, hd, L, H = D_MODEL, HEAD_DIM, NUM_LAYERS, NHEAD

    def nrm(shape, std=0.02):
        return jax.random.normal(next(keys), shape, jnp.float32) * std

    def as_w(x):                      # matmul weights stored bf16
        return x.astype(_MXU_DTYPE)

    # block-diagonal padded input-encoder weights:
    #   img -> cols [0, d/2), act -> [d/2, 3d/4), pose -> [3d/4, d); act/pose have no bias
    w_img = jnp.zeros((PATCH * PATCH, d), jnp.float32).at[:, :d // 2].set(
        nrm((PATCH * PATCH, d // 2)))
    w_act = jnp.zeros((2, d), jnp.float32).at[:, d // 2:3 * d // 4].set(nrm((2, d // 4)))
    w_pose = jnp.zeros((6, d), jnp.float32).at[:, 3 * d // 4:].set(nrm((6, d // 4)))
    b_emb = jnp.zeros((1, d), jnp.float32).at[:, :d // 2].set(nrm((1, d // 2)))

    pe = sinusoidal_pe(SEQ, d)

    return dict(
        w_img=as_w(w_img), w_act=as_w(w_act), w_pose=as_w(w_pose), b_emb=b_emb,
        pre_norm_g=1.0 + nrm((1, d)),
        w_penc=as_w(nrm((d, d))), b_penc=nrm((1, d)),
        ctx_token=nrm((CTX_LEN, d)),
        pos_pe=pe,                                               # natural order (reference)
        pos_pe_perm=jnp.concatenate([pe[CTX_LEN:], pe[:CTX_LEN]], axis=0),  # kernel order
        mid_norm_g=1.0 + nrm((1, d)),
        w_q=as_w(nrm((L, H, d, hd))), b_q=nrm((L, H, 1, hd)),
        w_k=as_w(nrm((L, H, d, hd))), b_k=nrm((L, H, 1, hd)),
        w_v=as_w(nrm((L, H, d, hd))), b_v=nrm((L, H, 1, hd)),
        w_o=as_w(nrm((L, H, hd, d), std=0.02 / math.sqrt(2 * L))), b_o=nrm((L, 1, d)),
        ln1_g=1.0 + nrm((L, 1, d)), ln1_b=nrm((L, 1, d)),
        w_ff1=as_w(nrm((L, d, D_FF))), b_ff1=nrm((L, 1, D_FF)),
        w_ff2=as_w(nrm((L, D_FF, d))), b_ff2=nrm((L, 1, d)),
        ln2_g=1.0 + nrm((L, 1, d)), ln2_b=nrm((L, 1, d)),
        post_norm_g=1.0 + nrm((1, d)),
        w_pdec=as_w(nrm((d, d))), b_pdec=nrm((1, d)),
    )


def _ref_rmsnorm(x, g, eps=RMS_EPS):
    return x * lax.rsqrt(jnp.mean(x * x, axis=-1, keepdims=True) + eps) * g


def _ref_layernorm(x, g, b, eps=LN_EPS):
    mu = jnp.mean(x, axis=-1, keepdims=True)
    xc = x - mu
    var = jnp.mean(xc * xc, axis=-1, keepdims=True)
    return xc * lax.rsqrt(var + eps) * g + b


def _merge_heads(w):      # (H, X, HD) -> (X, H*HD), head-major column order
    return jnp.transpose(w, (1, 0, 2)).reshape(w.shape[1], -1)


def ref_forward(params, patches, actions, poses):
    b, t = patches.shape[:2]
    d = D_MODEL

    def mm(a, w):
        return jnp.dot(a.astype(_MXU_DTYPE), w.astype(_MXU_DTYPE),
                       preferred_element_type=jnp.float32)

    dh, dq = d // 2, d // 4
    img = patches.reshape(b * t, PATCH * PATCH)
    act = actions.reshape(b * t, 2)
    pose = poses.reshape(b * t, 6)
    # faithful torch path: per-encoder Linear + channel concat
    tok = jnp.concatenate(
        [mm(img, params["w_img"][:, :dh]) + params["b_emb"][:, :dh],
         mm(act, params["w_act"][:, dh:dh + dq]),
         mm(pose, params["w_pose"][:, dh + dq:])], axis=-1)
    tok = _ref_rmsnorm(tok, params["pre_norm_g"])
    tok = mm(tok, params["w_penc"]) + params["b_penc"]
    tok = tok.reshape(b, t, d)

    ctx = jnp.broadcast_to(params["ctx_token"][None], (b, CTX_LEN, d))
    x = jnp.concatenate([ctx, tok], axis=1) + params["pos_pe"][None]
    x = _ref_rmsnorm(x, params["mid_norm_g"])
    s = CTX_LEN + t
    x = x.reshape(b * s, d)

    for l in range(NUM_LAYERS):
        w_q, b_q = _merge_heads(params["w_q"][l]), _merge_heads(params["b_q"][l])
        w_k, b_k = _merge_heads(params["w_k"][l]), _merge_heads(params["b_k"][l])
        w_v, b_v = _merge_heads(params["w_v"][l]), _merge_heads(params["b_v"][l])
        q = (mm(x, w_q) + b_q).reshape(b, s, NHEAD, HEAD_DIM).transpose(0, 2, 1, 3)
        k = (mm(x, w_k) + b_k).reshape(b, s, NHEAD, HEAD_DIM).transpose(0, 2, 1, 3)
        v = (mm(x, w_v) + b_v).reshape(b, s, NHEAD, HEAD_DIM).transpose(0, 2, 1, 3)
        sc = jnp.einsum("bhqd,bhkd->bhqk", q.astype(_MXU_DTYPE), k.astype(_MXU_DTYPE),
                        preferred_element_type=jnp.float32) * ATT_SCALE
        m = jnp.max(sc, axis=-1, keepdims=True)
        p = jnp.exp(sc - m)
        p = p / jnp.sum(p, axis=-1, keepdims=True)
        a = jnp.einsum("bhqk,bhkd->bhqd", p.astype(_MXU_DTYPE), v.astype(_MXU_DTYPE),
                       preferred_element_type=jnp.float32)
        a = a.transpose(0, 2, 1, 3).reshape(b * s, d)
        a = mm(a, params["w_o"][l].reshape(NHEAD * HEAD_DIM, d)) + params["b_o"][l]
        x = _ref_layernorm(x + a, params["ln1_g"][l], params["ln1_b"][l])
        h = jnp.maximum(mm(x, params["w_ff1"][l]) + params["b_ff1"][l], 0.0)
        h = mm(h, params["w_ff2"][l]) + params["b_ff2"][l]
        x = _ref_layernorm(x + h, params["ln2_g"][l], params["ln2_b"][l])

    x = _ref_rmsnorm(x, params["post_norm_g"])
    x = mm(x, params["w_pdec"]) + params["b_pdec"]
    return x.reshape(b, s, d)[:, :CTX_LEN]


# ----------------------------------- main ------------------------------------
if __name__ == "__main__":
    key = jax.random.PRNGKey(0)
    kp, kx, ka, kq = jax.random.split(key, 4)
    params = init_params(kp)
    patches = jax.random.normal(kx, (B, T, PATCH, PATCH), jnp.float32)
    actions = jax.random.normal(ka, (B, T, 2), jnp.float32)
    poses = jax.random.normal(kq, (B, T, 6), jnp.float32)

    out = jax.block_until_ready(
        jax.jit(verti_encoder_forward)(params, patches, actions, poses))
    ref = jax.block_until_ready(
        jax.jit(ref_forward)(params, patches, actions, poses))

    assert out.shape == (B, CTX_LEN, D_MODEL), out.shape
    assert bool(jnp.all(jnp.isfinite(out)))
    err = float(jnp.max(jnp.abs(out - ref)))
    assert jnp.allclose(out, ref, atol=3e-3, rtol=3e-3), err

    print("KERNEL_OK")
</pallas_src>

<mosaic_0001>
module attributes {stable_mosaic.version = 11 : i64} {
  func.func @_verti_encoder_kernel(%arg0: i32, %arg1: memref<1x8x256xf32, #tpu.memory_space<vmem>>, %arg2: memref<1x8x2xf32, #tpu.memory_space<vmem>>, %arg3: memref<1x8x6xf32, #tpu.memory_space<vmem>>, %arg4: memref<256x128xbf16, #tpu.memory_space<vmem>>, %arg5: memref<2x128xbf16, #tpu.memory_space<vmem>>, %arg6: memref<6x128xbf16, #tpu.memory_space<vmem>>, %arg7: memref<1x128xf32, #tpu.memory_space<vmem>>, %arg8: memref<1x128xf32, #tpu.memory_space<vmem>>, %arg9: memref<128x128xbf16, #tpu.memory_space<vmem>>, %arg10: memref<1x128xf32, #tpu.memory_space<vmem>>, %arg11: memref<2x128xf32, #tpu.memory_space<vmem>>, %arg12: memref<10x128xf32, #tpu.memory_space<vmem>>, %arg13: memref<1x128xf32, #tpu.memory_space<vmem>>, %arg14: memref<2x4x128x32xbf16, #tpu.memory_space<vmem>>, %arg15: memref<2x4x1x32xf32, #tpu.memory_space<vmem>>, %arg16: memref<2x4x128x32xbf16, #tpu.memory_space<vmem>>, %arg17: memref<2x4x1x32xf32, #tpu.memory_space<vmem>>, %arg18: memref<2x4x128x32xbf16, #tpu.memory_space<vmem>>, %arg19: memref<2x4x1x32xf32, #tpu.memory_space<vmem>>, %arg20: memref<2x4x32x128xbf16, #tpu.memory_space<vmem>>, %arg21: memref<2x1x128xf32, #tpu.memory_space<vmem>>, %arg22: memref<2x1x128xf32, #tpu.memory_space<vmem>>, %arg23: memref<2x1x128xf32, #tpu.memory_space<vmem>>, %arg24: memref<2x128x256xbf16, #tpu.memory_space<vmem>>, %arg25: memref<2x1x256xf32, #tpu.memory_space<vmem>>, %arg26: memref<2x256x128xbf16, #tpu.memory_space<vmem>>, %arg27: memref<2x1x128xf32, #tpu.memory_space<vmem>>, %arg28: memref<2x1x128xf32, #tpu.memory_space<vmem>>, %arg29: memref<2x1x128xf32, #tpu.memory_space<vmem>>, %arg30: memref<1x128xf32, #tpu.memory_space<vmem>>, %arg31: memref<128x128xbf16, #tpu.memory_space<vmem>>, %arg32: memref<1x128xf32, #tpu.memory_space<vmem>>, %arg33: memref<1x2x128xf32, #tpu.memory_space<vmem>>, %arg34: memref<10x128xf32, #tpu.memory_space<vmem>>) attributes {dimension_semantics = [#tpu.dimension_semantics<parallel>], iteration_bounds = array<i64: 2>, scalar_prefetch = 0 : i64, scratch_operands = 1 : i64, tpu.core_type = #tpu.core_type<tc>, window_params = [{transform_indices = @transform_0, window_bounds = array<i64: 1, 8, 256>}, {transform_indices = @transform_1, window_bounds = array<i64: 1, 8, 2>}, {transform_indices = @transform_2, window_bounds = array<i64: 1, 8, 6>}, {pipeline_mode = #tpu.pipeline_mode<synchronous>, transform_indices = @transform_3, window_bounds = array<i64: 256, 128>}, {pipeline_mode = #tpu.pipeline_mode<synchronous>, transform_indices = @transform_4, window_bounds = array<i64: 2, 128>}, {pipeline_mode = #tpu.pipeline_mode<synchronous>, transform_indices = @transform_5, window_bounds = array<i64: 6, 128>}, {pipeline_mode = #tpu.pipeline_mode<synchronous>, transform_indices = @transform_6, window_bounds = array<i64: 1, 128>}, {pipeline_mode = #tpu.pipeline_mode<synchronous>, transform_indices = @transform_7, window_bounds = array<i64: 1, 128>}, {pipeline_mode = #tpu.pipeline_mode<synchronous>, transform_indices = @transform_8, window_bounds = array<i64: 128, 128>}, {pipeline_mode = #tpu.pipeline_mode<synchronous>, transform_indices = @transform_9, window_bounds = array<i64: 1, 128>}, {pipeline_mode = #tpu.pipeline_mode<synchronous>, transform_indices = @transform_10, window_bounds = array<i64: 2, 128>}, {pipeline_mode = #tpu.pipeline_mode<synchronous>, transform_indices = @transform_11, window_bounds = array<i64: 10, 128>}, {pipeline_mode = #tpu.pipeline_mode<synchronous>, transform_indices = @transform_12, window_bounds = array<i64: 1, 128>}, {pipeline_mode = #tpu.pipeline_mode<synchronous>, transform_indices = @transform_13, window_bounds = array<i64: 2, 4, 128, 32>}, {pipeline_mode = #tpu.pipeline_mode<synchronous>, transform_indices = @transform_14, window_bounds = array<i64: 2, 4, 1, 32>}, {pipeline_mode = #tpu.pipeline_mode<synchronous>, transform_indices = @transform_15, window_bounds = array<i64: 2, 4, 128, 32>}, {pipeline_mode = #tpu.pipeline_mode<synchronous>, transform_indices = @transform_16, window_bounds = array<i64: 2, 4, 1, 32>}, {pipeline_mode = #tpu.pipeline_mode<synchronous>, transform_indices = @transform_17, window_bounds = array<i64: 2, 4, 128, 32>}, {pipeline_mode = #tpu.pipeline_mode<synchronous>, transform_indices = @transform_18, window_bounds = array<i64: 2, 4, 1, 32>}, {pipeline_mode = #tpu.pipeline_mode<synchronous>, transform_indices = @transform_19, window_bounds = array<i64: 2, 4, 32, 128>}, {pipeline_mode = #tpu.pipeline_mode<synchronous>, transform_indices = @transform_20, window_bounds = array<i64: 2, 1, 128>}, {pipeline_mode = #tpu.pipeline_mode<synchronous>, transform_indices = @transform_21, window_bounds = array<i64: 2, 1, 128>}, {pipeline_mode = #tpu.pipeline_mode<synchronous>, transform_indices = @transform_22, window_bounds = array<i64: 2, 1, 128>}, {pipeline_mode = #tpu.pipeline_mode<synchronous>, transform_indices = @transform_23, window_bounds = array<i64: 2, 128, 256>}, {pipeline_mode = #tpu.pipeline_mode<synchronous>, transform_indices = @transform_24, window_bounds = array<i64: 2, 1, 256>}, {pipeline_mode = #tpu.pipeline_mode<synchronous>, transform_indices = @transform_25, window_bounds = array<i64: 2, 256, 128>}, {pipeline_mode = #tpu.pipeline_mode<synchronous>, transform_indices = @transform_26, window_bounds = array<i64: 2, 1, 128>}, {pipeline_mode = #tpu.pipeline_mode<synchronous>, transform_indices = @transform_27, window_bounds = array<i64: 2, 1, 128>}, {pipeline_mode = #tpu.pipeline_mode<synchronous>, transform_indices = @transform_28, window_bounds = array<i64: 2, 1, 128>}, {pipeline_mode = #tpu.pipeline_mode<synchronous>, transform_indices = @transform_29, window_bounds = array<i64: 1, 128>}, {pipeline_mode = #tpu.pipeline_mode<synchronous>, transform_indices = @transform_30, window_bounds = array<i64: 128, 128>}, {pipeline_mode = #tpu.pipeline_mode<synchronous>, transform_indices = @transform_31, window_bounds = array<i64: 1, 128>}, {transform_indices = @transform_32, window_bounds = array<i64: 1, 2, 128>}]} {
    %c0 = arith.constant 0 : index
    %c0_0 = arith.constant 0 : index
    %c0_1 = arith.constant 0 : index
    %0 = vector.load %arg1[%c0, %c0_0, %c0_1] : memref<1x8x256xf32, #tpu.memory_space<vmem>>, vector<1x8x256xf32>
    %1 = vector.shape_cast %0 : vector<1x8x256xf32> to vector<8x256xf32>
    %c0_2 = arith.constant 0 : index
    %c0_3 = arith.constant 0 : index
    %2 = vector.load %arg4[%c0_2, %c0_3] : memref<256x128xbf16, #tpu.memory_space<vmem>>, vector<256x128xbf16>
    %3 = arith.truncf %1 : vector<8x256xf32> to vector<8x256xbf16>
    %cst = arith.constant dense<0.000000e+00> : vector<8x128xf32>
    %4 = tpu.matmul %3, %2, %cst {dimension_numbers = #tpu.dot_dimension_numbers<[1], [0], [0], [1], [0, 0, 1, 1], [], []>} : vector<8x256xbf16>, vector<256x128xbf16>, vector<8x128xf32> -> vector<8x128xf32>
    %c0_4 = arith.constant 0 : index
    %c0_5 = arith.constant 0 : index
    %c0_6 = arith.constant 0 : index
    %5 = vector.load %arg2[%c0_4, %c0_5, %c0_6] : memref<1x8x2xf32, #tpu.memory_space<vmem>>, vector<1x8x2xf32>
    %6 = vector.shape_cast %5 : vector<1x8x2xf32> to vector<8x2xf32>
    %c0_7 = arith.constant 0 : index
    %c0_8 = arith.constant 0 : index
    %7 = vector.load %arg5[%c0_7, %c0_8] : memref<2x128xbf16, #tpu.memory_space<vmem>>, vector<2x128xbf16>
    %8 = arith.truncf %6 : vector<8x2xf32> to vector<8x2xbf16>
    %cst_9 = arith.constant dense<0.000000e+00> : vector<8x128xf32>
    %9 = tpu.matmul %8, %7, %cst_9 {dimension_numbers = #tpu.dot_dimension_numbers<[1], [0], [0], [1], [0, 0, 1, 1], [], []>} : vector<8x2xbf16>, vector<2x128xbf16>, vector<8x128xf32> -> vector<8x128xf32>
    %10 = arith.addf %4, %9 : vector<8x128xf32>
    %c0_10 = arith.constant 0 : index
    %c0_11 = arith.constant 0 : index
    %c0_12 = arith.constant 0 : index
    %11 = vector.load %arg3[%c0_10, %c0_11, %c0_12] : memref<1x8x6xf32, #tpu.memory_space<vmem>>, vector<1x8x6xf32>
    %12 = vector.shape_cast %11 : vector<1x8x6xf32> to vector<8x6xf32>
    %c0_13 = arith.constant 0 : index
    %c0_14 = arith.constant 0 : index
    %13 = vector.load %arg6[%c0_13, %c0_14] : memref<6x128xbf16, #tpu.memory_space<vmem>>, vector<6x128xbf16>
    %14 = arith.truncf %12 : vector<8x6xf32> to vector<8x6xbf16>
    %cst_15 = arith.constant dense<0.000000e+00> : vector<8x128xf32>
    %15 = tpu.matmul %14, %13, %cst_15 {dimension_numbers = #tpu.dot_dimension_numbers<[1], [0], [0], [1], [0, 0, 1, 1], [], []>} : vector<8x6xbf16>, vector<6x128xbf16>, vector<8x128xf32> -> vector<8x128xf32>
    %16 = arith.addf %10, %15 : vector<8x128xf32>
    %c0_16 = arith.constant 0 : index
    %c0_17 = arith.constant 0 : index
    %17 = vector.load %arg7[%c0_16, %c0_17] : memref<1x128xf32, #tpu.memory_space<vmem>>, vector<1x128xf32>
    %18 = vector.broadcast %17 : vector<1x128xf32> to vector<8x128xf32>
    %19 = arith.addf %16, %18 : vector<8x128xf32>
    %c0_18 = arith.constant 0 : index
    %c0_19 = arith.constant 0 : index
    %20 = vector.load %arg8[%c0_18, %c0_19] : memref<1x128xf32, #tpu.memory_space<vmem>>, vector<1x128xf32>
    %21 = arith.mulf %19, %19 : vector<8x128xf32>
    %cst_20 = arith.constant dense<0.000000e+00> : vector<8xf32>
    %22 = vector.multi_reduction <add>, %21, %cst_20 [1] : vector<8x128xf32> to vector<8xf32>
    %23 = vector.shape_cast %22 : vector<8xf32> to vector<8x1xf32>
    %cst_21 = arith.constant 1.280000e+02 : f32
    %24 = vector.broadcast %cst_21 : f32 to vector<8x1xf32>
    %25 = arith.divf %23, %24 : vector<8x1xf32>
    %cst_22 = arith.constant 1.1920929E-7 : f32
    %26 = vector.broadcast %cst_22 : f32 to vector<8x1xf32>
    %27 = arith.addf %25, %26 : vector<8x1xf32>
    %28 = math.rsqrt %27 : vector<8x1xf32>
    %29 = vector.broadcast %28 : vector<8x1xf32> to vector<8x128xf32>
    %30 = arith.mulf %19, %29 : vector<8x128xf32>
    %31 = vector.broadcast %20 : vector<1x128xf32> to vector<8x128xf32>
    %32 = arith.mulf %30, %31 : vector<8x128xf32>
    %c0_23 = arith.constant 0 : index
    %c0_24 = arith.constant 0 : index
    %33 = vector.load %arg9[%c0_23, %c0_24] : memref<128x128xbf16, #tpu.memory_space<vmem>>, vector<128x128xbf16>
    %34 = arith.truncf %32 : vector<8x128xf32> to vector<8x128xbf16>
    %cst_25 = arith.constant dense<0.000000e+00> : vector<8x128xf32>
    %35 = tpu.matmul %34, %33, %cst_25 {dimension_numbers = #tpu.dot_dimension_numbers<[1], [0], [0], [1], [0, 0, 1, 1], [], []>} : vector<8x128xbf16>, vector<128x128xbf16>, vector<8x128xf32> -> vector<8x128xf32>
    %c0_26 = arith.constant 0 : index
    %c0_27 = arith.constant 0 : index
    %36 = vector.load %arg10[%c0_26, %c0_27] : memref<1x128xf32, #tpu.memory_space<vmem>>, vector<1x128xf32>
    %37 = vector.broadcast %36 : vector<1x128xf32> to vector<8x128xf32>
    %38 = arith.addf %35, %37 : vector<8x128xf32>
    %c0_28 = arith.constant 0 : index
    %c0_29 = arith.constant 0 : index
    %39 = vector.load %arg34[%c0_28, %c0_29] : memref<10x128xf32, #tpu.memory_space<vmem>>, vector<8x128xf32>
    tpu.vector_store %arg34[%c0_28, %c0_29], %38 {strides = array<i32>} : memref<10x128xf32, #tpu.memory_space<vmem>>, vector<8x128xf32>,
    %c0_30 = arith.constant 0 : index
    %c0_31 = arith.constant 0 : index
    %40 = vector.load %arg11[%c0_30, %c0_31] : memref<2x128xf32, #tpu.memory_space<vmem>>, vector<2x128xf32>
    %c8 = arith.constant 8 : index
    %c0_32 = arith.constant 0 : index
    %41 = vector.load %arg34[%c8, %c0_32] : memref<10x128xf32, #tpu.memory_space<vmem>>, vector<2x128xf32>
    tpu.vector_store %arg34[%c8, %c0_32], %40 {strides = array<i32>} : memref<10x128xf32, #tpu.memory_space<vmem>>, vector<2x128xf32>,
    %c0_33 = arith.constant 0 : index
    %c0_34 = arith.constant 0 : index
    %42 = vector.load %arg34[%c0_33, %c0_34] : memref<10x128xf32, #tpu.memory_space<vmem>>, vector<10x128xf32>
    %c0_35 = arith.constant 0 : index
    %c0_36 = arith.constant 0 : index
    %43 = vector.load %arg12[%c0_35, %c0_36] : memref<10x128xf32, #tpu.memory_space<vmem>>, vector<10x128xf32>
    %44 = arith.addf %42, %43 : vector<10x128xf32>
    %c0_37 = arith.constant 0 : index
    %c0_38 = arith.constant 0 : index
    %45 = vector.load %arg13[%c0_37, %c0_38] : memref<1x128xf32, #tpu.memory_space<vmem>>, vector<1x128xf32>
    %46 = arith.mulf %44, %44 : vector<10x128xf32>
    %cst_39 = arith.constant dense<0.000000e+00> : vector<10xf32>
    %47 = vector.multi_reduction <add>, %46, %cst_39 [1] : vector<10x128xf32> to vector<10xf32>
    %48 = vector.shape_cast %47 : vector<10xf32> to vector<10x1xf32>
    %cst_40 = arith.constant 1.280000e+02 : f32
    %49 = vector.broadcast %cst_40 : f32 to vector<10x1xf32>
    %50 = arith.divf %48, %49 : vector<10x1xf32>
    %cst_41 = arith.constant 1.1920929E-7 : f32
    %51 = vector.broadcast %cst_41 : f32 to vector<10x1xf32>
    %52 = arith.addf %50, %51 : vector<10x1xf32>
    %53 = math.rsqrt %52 : vector<10x1xf32>
    %54 = vector.broadcast %53 : vector<10x1xf32> to vector<10x128xf32>
    %55 = arith.mulf %44, %54 : vector<10x128xf32>
    %56 = vector.broadcast %45 : vector<1x128xf32> to vector<10x128xf32>
    %57 = arith.mulf %55, %56 : vector<10x128xf32>
    %c0_42 = arith.constant 0 : index
    %c0_43 = arith.constant 0 : index
    %c0_44 = arith.constant 0 : index
    %c0_45 = arith.constant 0 : index
    %58 = vector.load %arg14[%c0_42, %c0_43, %c0_44, %c0_45] : memref<2x4x128x32xbf16, #tpu.memory_space<vmem>>, vector<1x1x128x32xbf16>
    %59 = vector.shape_cast %58 : vector<1x1x128x32xbf16> to vector<128x32xbf16>
    %60 = arith.truncf %57 : vector<10x128xf32> to vector<10x128xbf16>
    %cst_46 = arith.constant dense<0.000000e+00> : vector<10x32xf32>
    %61 = tpu.matmul %60, %59, %cst_46 {dimension_numbers = #tpu.dot_dimension_numbers<[1], [0], [0], [1], [0, 0, 1, 1], [], []>} : vector<10x128xbf16>, vector<128x32xbf16>, vector<10x32xf32> -> vector<10x32xf32>
    %c0_47 = arith.constant 0 : index
    %c0_48 = arith.constant 0 : index
    %c0_49 = arith.constant 0 : index
    %c0_50 = arith.constant 0 : index
    %62 = vector.load %arg15[%c0_47, %c0_48, %c0_49, %c0_50] : memref<2x4x1x32xf32, #tpu.memory_space<vmem>>, vector<1x1x1x32xf32>
    %63 = vector.shape_cast %62 : vector<1x1x1x32xf32> to vector<1x32xf32>
    %64 = vector.broadcast %63 : vector<1x32xf32> to vector<10x32xf32>
    %65 = arith.addf %61, %64 : vector<10x32xf32>
    %c0_51 = arith.constant 0 : index
    %c0_52 = arith.constant 0 : index
    %c0_53 = arith.constant 0 : index
    %c0_54 = arith.constant 0 : index
    %66 = vector.load %arg16[%c0_51, %c0_52, %c0_53, %c0_54] : memref<2x4x128x32xbf16, #tpu.memory_space<vmem>>, vector<1x1x128x32xbf16>
    %67 = vector.shape_cast %66 : vector<1x1x128x32xbf16> to vector<128x32xbf16>
    %68 = arith.truncf %57 : vector<10x128xf32> to vector<10x128xbf16>
    %cst_55 = arith.constant dense<0.000000e+00> : vector<10x32xf32>
    %69 = tpu.matmul %68, %67, %cst_55 {dimension_numbers = #tpu.dot_dimension_numbers<[1], [0], [0], [1], [0, 0, 1, 1], [], []>} : vector<10x128xbf16>, vector<128x32xbf16>, vector<10x32xf32> -> vector<10x32xf32>
    %c0_56 = arith.constant 0 : index
    %c0_57 = arith.constant 0 : index
    %c0_58 = arith.constant 0 : index
    %c0_59 = arith.constant 0 : index
    %70 = vector.load %arg17[%c0_56, %c0_57, %c0_58, %c0_59] : memref<2x4x1x32xf32, #tpu.memory_space<vmem>>, vector<1x1x1x32xf32>
    %71 = vector.shape_cast %70 : vector<1x1x1x32xf32> to vector<1x32xf32>
    %72 = vector.broadcast %71 : vector<1x32xf32> to vector<10x32xf32>
    %73 = arith.addf %69, %72 : vector<10x32xf32>
    %c0_60 = arith.constant 0 : index
    %c0_61 = arith.constant 0 : index
    %c0_62 = arith.constant 0 : index
    %c0_63 = arith.constant 0 : index
    %74 = vector.load %arg18[%c0_60, %c0_61, %c0_62, %c0_63] : memref<2x4x128x32xbf16, #tpu.memory_space<vmem>>, vector<1x1x128x32xbf16>
    %75 = vector.shape_cast %74 : vector<1x1x128x32xbf16> to vector<128x32xbf16>
    %76 = arith.truncf %57 : vector<10x128xf32> to vector<10x128xbf16>
    %cst_64 = arith.constant dense<0.000000e+00> : vector<10x32xf32>
    %77 = tpu.matmul %76, %75, %cst_64 {dimension_numbers = #tpu.dot_dimension_numbers<[1], [0], [0], [1], [0, 0, 1, 1], [], []>} : vector<10x128xbf16>, vector<128x32xbf16>, vector<10x32xf32> -> vector<10x32xf32>
    %c0_65 = arith.constant 0 : index
    %c0_66 = arith.constant 0 : index
    %c0_67 = arith.constant 0 : index
    %c0_68 = arith.constant 0 : index
    %78 = vector.load %arg19[%c0_65, %c0_66, %c0_67, %c0_68] : memref<2x4x1x32xf32, #tpu.memory_space<vmem>>, vector<1x1x1x32xf32>
    %79 = vector.shape_cast %78 : vector<1x1x1x32xf32> to vector<1x32xf32>
    %80 = vector.broadcast %79 : vector<1x32xf32> to vector<10x32xf32>
    %81 = arith.addf %77, %80 : vector<10x32xf32>
    %82 = arith.truncf %65 : vector<10x32xf32> to vector<10x32xbf16>
    %83 = arith.truncf %73 : vector<10x32xf32> to vector<10x32xbf16>
    %cst_69 = arith.constant dense<0.000000e+00> : vector<10x10xf32>
    %84 = tpu.matmul %82, %83, %cst_69 {dimension_numbers = #tpu.dot_dimension_numbers<[1], [1], [0], [0], [0, 0, 1, 0], [], []>} : vector<10x32xbf16>, vector<10x32xbf16>, vector<10x10xf32> -> vector<10x10xf32>
    %cst_70 = arith.constant 0.176776692 : f32
    %85 = vector.broadcast %cst_70 : f32 to vector<10x10xf32>
    %86 = arith.mulf %84, %85 : vector<10x10xf32>
    %cst_71 = arith.constant dense<0xFF800000> : vector<10xf32>
    %87 = vector.multi_reduction <maximumf>, %86, %cst_71 [1] : vector<10x10xf32> to vector<10xf32>
    %88 = vector.shape_cast %87 : vector<10xf32> to vector<10x1xf32>
    %89 = vector.broadcast %88 : vector<10x1xf32> to vector<10x10xf32>
    %90 = arith.subf %86, %89 : vector<10x10xf32>
    %91 = math.exp %90 : vector<10x10xf32>
    %cst_72 = arith.constant dense<0.000000e+00> : vector<10xf32>
    %92 = vector.multi_reduction <add>, %91, %cst_72 [1] : vector<10x10xf32> to vector<10xf32>
    %93 = vector.shape_cast %92 : vector<10xf32> to vector<10x1xf32>
    %94 = tpu.reciprocal %93 {approx = true} : vector<10x1xf32> -> vector<10x1xf32>
    %95 = vector.broadcast %94 : vector<10x1xf32> to vector<10x10xf32>
    %96 = arith.mulf %91, %95 : vector<10x10xf32>
    %97 = arith.truncf %96 : vector<10x10xf32> to vector<10x10xbf16>
    %98 = arith.truncf %81 : vector<10x32xf32> to vector<10x32xbf16>
    %cst_73 = arith.constant dense<0.000000e+00> : vector<10x32xf32>
    %99 = tpu.matmul %97, %98, %cst_73 {dimension_numbers = #tpu.dot_dimension_numbers<[1], [0], [0], [1], [0, 0, 1, 1], [], []>} : vector<10x10xbf16>, vector<10x32xbf16>, vector<10x32xf32> -> vector<10x32xf32>
    %c0_74 = arith.constant 0 : index
    %c0_75 = arith.constant 0 : index
    %c0_76 = arith.constant 0 : index
    %c0_77 = arith.constant 0 : index
    %100 = vector.load %arg20[%c0_74, %c0_75, %c0_76, %c0_77] : memref<2x4x32x128xbf16, #tpu.memory_space<vmem>>, vector<1x1x32x128xbf16>
    %101 = vector.shape_cast %100 : vector<1x1x32x128xbf16> to vector<32x128xbf16>
    %102 = arith.truncf %99 : vector<10x32xf32> to vector<10x32xbf16>
    %cst_78 = arith.constant dense<0.000000e+00> : vector<10x128xf32>
    %103 = tpu.matmul %102, %101, %cst_78 {dimension_numbers = #tpu.dot_dimension_numbers<[1], [0], [0], [1], [0, 0, 1, 1], [], []>} : vector<10x32xbf16>, vector<32x128xbf16>, vector<10x128xf32> -> vector<10x128xf32>
    %c0_79 = arith.constant 0 : index
    %c1 = arith.constant 1 : index
    %c0_80 = arith.constant 0 : index
    %c0_81 = arith.constant 0 : index
    %104 = vector.load %arg14[%c0_79, %c1, %c0_80, %c0_81] : memref<2x4x128x32xbf16, #tpu.memory_space<vmem>>, vector<1x1x128x32xbf16>
    %105 = vector.shape_cast %104 : vector<1x1x128x32xbf16> to vector<128x32xbf16>
    %106 = arith.truncf %57 : vector<10x128xf32> to vector<10x128xbf16>
    %cst_82 = arith.constant dense<0.000000e+00> : vector<10x32xf32>
    %107 = tpu.matmul %106, %105, %cst_82 {dimension_numbers = #tpu.dot_dimension_numbers<[1], [0], [0], [1], [0, 0, 1, 1], [], []>} : vector<10x128xbf16>, vector<128x32xbf16>, vector<10x32xf32> -> vector<10x32xf32>
    %c0_83 = arith.constant 0 : index
    %c1_84 = arith.constant 1 : index
    %c0_85 = arith.constant 0 : index
    %c0_86 = arith.constant 0 : index
    %108 = vector.load %arg15[%c0_83, %c1_84, %c0_85, %c0_86] : memref<2x4x1x32xf32, #tpu.memory_space<vmem>>, vector<1x1x1x32xf32>
    %109 = vector.shape_cast %108 : vector<1x1x1x32xf32> to vector<1x32xf32>
    %110 = vector.broadcast %109 : vector<1x32xf32> to vector<10x32xf32>
    %111 = arith.addf %107, %110 : vector<10x32xf32>
    %c0_87 = arith.constant 0 : index
    %c1_88 = arith.constant 1 : index
    %c0_89 = arith.constant 0 : index
    %c0_90 = arith.constant 0 : index
    %112 = vector.load %arg16[%c0_87, %c1_88, %c0_89, %c0_90] : memref<2x4x128x32xbf16, #tpu.memory_space<vmem>>, vector<1x1x128x32xbf16>
    %113 = vector.shape_cast %112 : vector<1x1x128x32xbf16> to vector<128x32xbf16>
    %114 = arith.truncf %57 : vector<10x128xf32> to vector<10x128xbf16>
    %cst_91 = arith.constant dense<0.000000e+00> : vector<10x32xf32>
    %115 = tpu.matmul %114, %113, %cst_91 {dimension_numbers = #tpu.dot_dimension_numbers<[1], [0], [0], [1], [0, 0, 1, 1], [], []>} : vector<10x128xbf16>, vector<128x32xbf16>, vector<10x32xf32> -> vector<10x32xf32>
    %c0_92 = arith.constant 0 : index
    %c1_93 = arith.constant 1 : index
    %c0_94 = arith.constant 0 : index
    %c0_95 = arith.constant 0 : index
    %116 = vector.load %arg17[%c0_92, %c1_93, %c0_94, %c0_95] : memref<2x4x1x32xf32, #tpu.memory_space<vmem>>, vector<1x1x1x32xf32>
    %117 = vector.shape_cast %116 : vector<1x1x1x32xf32> to vector<1x32xf32>
    %118 = vector.broadcast %117 : vector<1x32xf32> to vector<10x32xf32>
    %119 = arith.addf %115, %118 : vector<10x32xf32>
    %c0_96 = arith.constant 0 : index
    %c1_97 = arith.constant 1 : index
    %c0_98 = arith.constant 0 : index
    %c0_99 = arith.constant 0 : index
    %120 = vector.load %arg18[%c0_96, %c1_97, %c0_98, %c0_99] : memref<2x4x128x32xbf16, #tpu.memory_space<vmem>>, vector<1x1x128x32xbf16>
    %121 = vector.shape_cast %120 : vector<1x1x128x32xbf16> to vector<128x32xbf16>
    %122 = arith.truncf %57 : vector<10x128xf32> to vector<10x128xbf16>
    %cst_100 = arith.constant dense<0.000000e+00> : vector<10x32xf32>
    %123 = tpu.matmul %122, %121, %cst_100 {dimension_numbers = #tpu.dot_dimension_numbers<[1], [0], [0], [1], [0, 0, 1, 1], [], []>} : vector<10x128xbf16>, vector<128x32xbf16>, vector<10x32xf32> -> vector<10x32xf32>
    %c0_101 = arith.constant 0 : index
    %c1_102 = arith.constant 1 : index
    %c0_103 = arith.constant 0 : index
    %c0_104 = arith.constant 0 : index
    %124 = vector.load %arg19[%c0_101, %c1_102, %c0_103, %c0_104] : memref<2x4x1x32xf32, #tpu.memory_space<vmem>>, vector<1x1x1x32xf32>
    %125 = vector.shape_cast %124 : vector<1x1x1x32xf32> to vector<1x32xf32>
    %126 = vector.broadcast %125 : vector<1x32xf32> to vector<10x32xf32>
    %127 = arith.addf %123, %126 : vector<10x32xf32>
    %128 = arith.truncf %111 : vector<10x32xf32> to vector<10x32xbf16>
    %129 = arith.truncf %119 : vector<10x32xf32> to vector<10x32xbf16>
    %cst_105 = arith.constant dense<0.000000e+00> : vector<10x10xf32>
    %130 = tpu.matmul %128, %129, %cst_105 {dimension_numbers = #tpu.dot_dimension_numbers<[1], [1], [0], [0], [0, 0, 1, 0], [], []>} : vector<10x32xbf16>, vector<10x32xbf16>, vector<10x10xf32> -> vector<10x10xf32>
    %cst_106 = arith.constant 0.176776692 : f32
    %131 = vector.broadcast %cst_106 : f32 to vector<10x10xf32>
    %132 = arith.mulf %130, %131 : vector<10x10xf32>
    %cst_107 = arith.constant dense<0xFF800000> : vector<10xf32>
    %133 = vector.multi_reduction <maximumf>, %132, %cst_107 [1] : vector<10x10xf32> to vector<10xf32>
    %134 = vector.shape_cast %133 : vector<10xf32> to vector<10x1xf32>
    %135 = vector.broadcast %134 : vector<10x1xf32> to vector<10x10xf32>
    %136 = arith.subf %132, %135 : vector<10x10xf32>
    %137 = math.exp %136 : vector<10x10xf32>
    %cst_108 = arith.constant dense<0.000000e+00> : vector<10xf32>
    %138 = vector.multi_reduction <add>, %137, %cst_108 [1] : vector<10x10xf32> to vector<10xf32>
    %139 = vector.shape_cast %138 : vector<10xf32> to vector<10x1xf32>
    %140 = tpu.reciprocal %139 {approx = true} : vector<10x1xf32> -> vector<10x1xf32>
    %141 = vector.broadcast %140 : vector<10x1xf32> to vector<10x10xf32>
    %142 = arith.mulf %137, %141 : vector<10x10xf32>
    %143 = arith.truncf %142 : vector<10x10xf32> to vector<10x10xbf16>
    %144 = arith.truncf %127 : vector<10x32xf32> to vector<10x32xbf16>
    %cst_109 = arith.constant dense<0.000000e+00> : vector<10x32xf32>
    %145 = tpu.matmul %143, %144, %cst_109 {dimension_numbers = #tpu.dot_dimension_numbers<[1], [0], [0], [1], [0, 0, 1, 1], [], []>} : vector<10x10xbf16>, vector<10x32xbf16>, vector<10x32xf32> -> vector<10x32xf32>
    %c0_110 = arith.constant 0 : index
    %c1_111 = arith.constant 1 : index
    %c0_112 = arith.constant 0 : index
    %c0_113 = arith.constant 0 : index
    %146 = vector.load %arg20[%c0_110, %c1_111, %c0_112, %c0_113] : memref<2x4x32x128xbf16, #tpu.memory_space<vmem>>, vector<1x1x32x128xbf16>
    %147 = vector.shape_cast %146 : vector<1x1x32x128xbf16> to vector<32x128xbf16>
    %148 = arith.truncf %145 : vector<10x32xf32> to vector<10x32xbf16>
    %cst_114 = arith.constant dense<0.000000e+00> : vector<10x128xf32>
    %149 = tpu.matmul %148, %147, %cst_114 {dimension_numbers = #tpu.dot_dimension_numbers<[1], [0], [0], [1], [0, 0, 1, 1], [], []>} : vector<10x32xbf16>, vector<32x128xbf16>, vector<10x128xf32> -> vector<10x128xf32>
    %150 = arith.addf %103, %149 : vector<10x128xf32>
    %c0_115 = arith.constant 0 : index
    %c2 = arith.constant 2 : index
    %c0_116 = arith.constant 0 : index
    %c0_117 = arith.constant 0 : index
    %151 = vector.load %arg14[%c0_115, %c2, %c0_116, %c0_117] : memref<2x4x128x32xbf16, #tpu.memory_space<vmem>>, vector<1x1x128x32xbf16>
    %152 = vector.shape_cast %151 : vector<1x1x128x32xbf16> to vector<128x32xbf16>
    %153 = arith.truncf %57 : vector<10x128xf32> to vector<10x128xbf16>
    %cst_118 = arith.constant dense<0.000000e+00> : vector<10x32xf32>
    %154 = tpu.matmul %153, %152, %cst_118 {dimension_numbers = #tpu.dot_dimension_numbers<[1], [0], [0], [1], [0, 0, 1, 1], [], []>} : vector<10x128xbf16>, vector<128x32xbf16>, vector<10x32xf32> -> vector<10x32xf32>
    %c0_119 = arith.constant 0 : index
    %c2_120 = arith.constant 2 : index
    %c0_121 = arith.constant 0 : index
    %c0_122 = arith.constant 0 : index
    %155 = vector.load %arg15[%c0_119, %c2_120, %c0_121, %c0_122] : memref<2x4x1x32xf32, #tpu.memory_space<vmem>>, vector<1x1x1x32xf32>
    %156 = vector.shape_cast %155 : vector<1x1x1x32xf32> to vector<1x32xf32>
    %157 = vector.broadcast %156 : vector<1x32xf32> to vector<10x32xf32>
    %158 = arith.addf %154, %157 : vector<10x32xf32>
    %c0_123 = arith.constant 0 : index
    %c2_124 = arith.constant 2 : index
    %c0_125 = arith.constant 0 : index
    %c0_126 = arith.constant 0 : index
    %159 = vector.load %arg16[%c0_123, %c2_124, %c0_125, %c0_126] : memref<2x4x128x32xbf16, #tpu.memory_space<vmem>>, vector<1x1x128x32xbf16>
    %160 = vector.shape_cast %159 : vector<1x1x128x32xbf16> to vector<128x32xbf16>
    %161 = arith.truncf %57 : vector<10x128xf32> to vector<10x128xbf16>
    %cst_127 = arith.constant dense<0.000000e+00> : vector<10x32xf32>
    %162 = tpu.matmul %161, %160, %cst_127 {dimension_numbers = #tpu.dot_dimension_numbers<[1], [0], [0], [1], [0, 0, 1, 1], [], []>} : vector<10x128xbf16>, vector<128x32xbf16>, vector<10x32xf32> -> vector<10x32xf32>
    %c0_128 = arith.constant 0 : index
    %c2_129 = arith.constant 2 : index
    %c0_130 = arith.constant 0 : index
    %c0_131 = arith.constant 0 : index
    %163 = vector.load %arg17[%c0_128, %c2_129, %c0_130, %c0_131] : memref<2x4x1x32xf32, #tpu.memory_space<vmem>>, vector<1x1x1x32xf32>
    %164 = vector.shape_cast %163 : vector<1x1x1x32xf32> to vector<1x32xf32>
    %165 = vector.broadcast %164 : vector<1x32xf32> to vector<10x32xf32>
    %166 = arith.addf %162, %165 : vector<10x32xf32>
    %c0_132 = arith.constant 0 : index
    %c2_133 = arith.constant 2 : index
    %c0_134 = arith.constant 0 : index
    %c0_135 = arith.constant 0 : index
    %167 = vector.load %arg18[%c0_132, %c2_133, %c0_134, %c0_135] : memref<2x4x128x32xbf16, #tpu.memory_space<vmem>>, vector<1x1x128x32xbf16>
    %168 = vector.shape_cast %167 : vector<1x1x128x32xbf16> to vector<128x32xbf16>
    %169 = arith.truncf %57 : vector<10x128xf32> to vector<10x128xbf16>
    %cst_136 = arith.constant dense<0.000000e+00> : vector<10x32xf32>
    %170 = tpu.matmul %169, %168, %cst_136 {dimension_numbers = #tpu.dot_dimension_numbers<[1], [0], [0], [1], [0, 0, 1, 1], [], []>} : vector<10x128xbf16>, vector<128x32xbf16>, vector<10x32xf32> -> vector<10x32xf32>
    %c0_137 = arith.constant 0 : index
    %c2_138 = arith.constant 2 : index
    %c0_139 = arith.constant 0 : index
    %c0_140 = arith.constant 0 : index
    %171 = vector.load %arg19[%c0_137, %c2_138, %c0_139, %c0_140] : memref<2x4x1x32xf32, #tpu.memory_space<vmem>>, vector<1x1x1x32xf32>
    %172 = vector.shape_cast %171 : vector<1x1x1x32xf32> to vector<1x32xf32>
    %173 = vector.broadcast %172 : vector<1x32xf32> to vector<10x32xf32>
    %174 = arith.addf %170, %173 : vector<10x32xf32>
    %175 = arith.truncf %158 : vector<10x32xf32> to vector<10x32xbf16>
    %176 = arith.truncf %166 : vector<10x32xf32> to vector<10x32xbf16>
    %cst_141 = arith.constant dense<0.000000e+00> : vector<10x10xf32>
    %177 = tpu.matmul %175, %176, %cst_141 {dimension_numbers = #tpu.dot_dimension_numbers<[1], [1], [0], [0], [0, 0, 1, 0], [], []>} : vector<10x32xbf16>, vector<10x32xbf16>, vector<10x10xf32> -> vector<10x10xf32>
    %cst_142 = arith.constant 0.176776692 : f32
    %178 = vector.broadcast %cst_142 : f32 to vector<10x10xf32>
    %179 = arith.mulf %177, %178 : vector<10x10xf32>
    %cst_143 = arith.constant dense<0xFF800000> : vector<10xf32>
    %180 = vector.multi_reduction <maximumf>, %179, %cst_143 [1] : vector<10x10xf32> to vector<10xf32>
    %181 = vector.shape_cast %180 : vector<10xf32> to vector<10x1xf32>
    %182 = vector.broadcast %181 : vector<10x1xf32> to vector<10x10xf32>
    %183 = arith.subf %179, %182 : vector<10x10xf32>
    %184 = math.exp %183 : vector<10x10xf32>
    %cst_144 = arith.constant dense<0.000000e+00> : vector<10xf32>
    %185 = vector.multi_reduction <add>, %184, %cst_144 [1] : vector<10x10xf32> to vector<10xf32>
    %186 = vector.shape_cast %185 : vector<10xf32> to vector<10x1xf32>
    %187 = tpu.reciprocal %186 {approx = true} : vector<10x1xf32> -> vector<10x1xf32>
    %188 = vector.broadcast %187 : vector<10x1xf32> to vector<10x10xf32>
    %189 = arith.mulf %184, %188 : vector<10x10xf32>
    %190 = arith.truncf %189 : vector<10x10xf32> to vector<10x10xbf16>
    %191 = arith.truncf %174 : vector<10x32xf32> to vector<10x32xbf16>
    %cst_145 = arith.constant dense<0.000000e+00> : vector<10x32xf32>
    %192 = tpu.matmul %190, %191, %cst_145 {dimension_numbers = #tpu.dot_dimension_numbers<[1], [0], [0], [1], [0, 0, 1, 1], [], []>} : vector<10x10xbf16>, vector<10x32xbf16>, vector<10x32xf32> -> vector<10x32xf32>
    %c0_146 = arith.constant 0 : index
    %c2_147 = arith.constant 2 : index
    %c0_148 = arith.constant 0 : index
    %c0_149 = arith.constant 0 : index
    %193 = vector.load %arg20[%c0_146, %c2_147, %c0_148, %c0_149] : memref<2x4x32x128xbf16, #tpu.memory_space<vmem>>, vector<1x1x32x128xbf16>
    %194 = vector.shape_cast %193 : vector<1x1x32x128xbf16> to vector<32x128xbf16>
    %195 = arith.truncf %192 : vector<10x32xf32> to vector<10x32xbf16>
    %cst_150 = arith.constant dense<0.000000e+00> : vector<10x128xf32>
    %196 = tpu.matmul %195, %194, %cst_150 {dimension_numbers = #tpu.dot_dimension_numbers<[1], [0], [0], [1], [0, 0, 1, 1], [], []>} : vector<10x32xbf16>, vector<32x128xbf16>, vector<10x128xf32> -> vector<10x128xf32>
    %197 = arith.addf %150, %196 : vector<10x128xf32>
    %c0_151 = arith.constant 0 : index
    %c3 = arith.constant 3 : index
    %c0_152 = arith.constant 0 : index
    %c0_153 = arith.constant 0 : index
    %198 = vector.load %arg14[%c0_151, %c3, %c0_152, %c0_153] : memref<2x4x128x32xbf16, #tpu.memory_space<vmem>>, vector<1x1x128x32xbf16>
    %199 = vector.shape_cast %198 : vector<1x1x128x32xbf16> to vector<128x32xbf16>
    %200 = arith.truncf %57 : vector<10x128xf32> to vector<10x128xbf16>
    %cst_154 = arith.constant dense<0.000000e+00> : vector<10x32xf32>
    %201 = tpu.matmul %200, %199, %cst_154 {dimension_numbers = #tpu.dot_dimension_numbers<[1], [0], [0], [1], [0, 0, 1, 1], [], []>} : vector<10x128xbf16>, vector<128x32xbf16>, vector<10x32xf32> -> vector<10x32xf32>
    %c0_155 = arith.constant 0 : index
    %c3_156 = arith.constant 3 : index
    %c0_157 = arith.constant 0 : index
    %c0_158 = arith.constant 0 : index
    %202 = vector.load %arg15[%c0_155, %c3_156, %c0_157, %c0_158] : memref<2x4x1x32xf32, #tpu.memory_space<vmem>>, vector<1x1x1x32xf32>
    %203 = vector.shape_cast %202 : vector<1x1x1x32xf32> to vector<1x32xf32>
    %204 = vector.broadcast %203 : vector<1x32xf32> to vector<10x32xf32>
    %205 = arith.addf %201, %204 : vector<10x32xf32>
    %c0_159 = arith.constant 0 : index
    %c3_160 = arith.constant 3 : index
    %c0_161 = arith.constant 0 : index
    %c0_162 = arith.constant 0 : index
    %206 = vector.load %arg16[%c0_159, %c3_160, %c0_161, %c0_162] : memref<2x4x128x32xbf16, #tpu.memory_space<vmem>>, vector<1x1x128x32xbf16>
    %207 = vector.shape_cast %206 : vector<1x1x128x32xbf16> to vector<128x32xbf16>
    %208 = arith.truncf %57 : vector<10x128xf32> to vector<10x128xbf16>
    %cst_163 = arith.constant dense<0.000000e+00> : vector<10x32xf32>
    %209 = tpu.matmul %208, %207, %cst_163 {dimension_numbers = #tpu.dot_dimension_numbers<[1], [0], [0], [1], [0, 0, 1, 1], [], []>} : vector<10x128xbf16>, vector<128x32xbf16>, vector<10x32xf32> -> vector<10x32xf32>
    %c0_164 = arith.constant 0 : index
    %c3_165 = arith.constant 3 : index
    %c0_166 = arith.constant 0 : index
    %c0_167 = arith.constant 0 : index
    %210 = vector.load %arg17[%c0_164, %c3_165, %c0_166, %c0_167] : memref<2x4x1x32xf32, #tpu.memory_space<vmem>>, vector<1x1x1x32xf32>
    %211 = vector.shape_cast %210 : vector<1x1x1x32xf32> to vector<1x32xf32>
    %212 = vector.broadcast %211 : vector<1x32xf32> to vector<10x32xf32>
    %213 = arith.addf %209, %212 : vector<10x32xf32>
    %c0_168 = arith.constant 0 : index
    %c3_169 = arith.constant 3 : index
    %c0_170 = arith.constant 0 : index
    %c0_171 = arith.constant 0 : index
    %214 = vector.load %arg18[%c0_168, %c3_169, %c0_170, %c0_171] : memref<2x4x128x32xbf16, #tpu.memory_space<vmem>>, vector<1x1x128x32xbf16>
    %215 = vector.shape_cast %214 : vector<1x1x128x32xbf16> to vector<128x32xbf16>
    %216 = arith.truncf %57 : vector<10x128xf32> to vector<10x128xbf16>
    %cst_172 = arith.constant dense<0.000000e+00> : vector<10x32xf32>
    %217 = tpu.matmul %216, %215, %cst_172 {dimension_numbers = #tpu.dot_dimension_numbers<[1], [0], [0], [1], [0, 0, 1, 1], [], []>} : vector<10x128xbf16>, vector<128x32xbf16>, vector<10x32xf32> -> vector<10x32xf32>
    %c0_173 = arith.constant 0 : index
    %c3_174 = arith.constant 3 : index
    %c0_175 = arith.constant 0 : index
    %c0_176 = arith.constant 0 : index
    %218 = vector.load %arg19[%c0_173, %c3_174, %c0_175, %c0_176] : memref<2x4x1x32xf32, #tpu.memory_space<vmem>>, vector<1x1x1x32xf32>
    %219 = vector.shape_cast %218 : vector<1x1x1x32xf32> to vector<1x32xf32>
    %220 = vector.broadcast %219 : vector<1x32xf32> to vector<10x32xf32>
    %221 = arith.addf %217, %220 : vector<10x32xf32>
    %222 = arith.truncf %205 : vector<10x32xf32> to vector<10x32xbf16>
    %223 = arith.truncf %213 : vector<10x32xf32> to vector<10x32xbf16>
    %cst_177 = arith.constant dense<0.000000e+00> : vector<10x10xf32>
    %224 = tpu.matmul %222, %223, %cst_177 {dimension_numbers = #tpu.dot_dimension_numbers<[1], [1], [0], [0], [0, 0, 1, 0], [], []>} : vector<10x32xbf16>, vector<10x32xbf16>, vector<10x10xf32> -> vector<10x10xf32>
    %cst_178 = arith.constant 0.176776692 : f32
    %225 = vector.broadcast %cst_178 : f32 to vector<10x10xf32>
    %226 = arith.mulf %224, %225 : vector<10x10xf32>
    %cst_179 = arith.constant dense<0xFF800000> : vector<10xf32>
    %227 = vector.multi_reduction <maximumf>, %226, %cst_179 [1] : vector<10x10xf32> to vector<10xf32>
    %228 = vector.shape_cast %227 : vector<10xf32> to vector<10x1xf32>
    %229 = vector.broadcast %228 : vector<10x1xf32> to vector<10x10xf32>
    %230 = arith.subf %226, %229 : vector<10x10xf32>
    %231 = math.exp %230 : vector<10x10xf32>
    %cst_180 = arith.constant dense<0.000000e+00> : vector<10xf32>
    %232 = vector.multi_reduction <add>, %231, %cst_180 [1] : vector<10x10xf32> to vector<10xf32>
    %233 = vector.shape_cast %232 : vector<10xf32> to vector<10x1xf32>
    %234 = tpu.reciprocal %233 {approx = true} : vector<10x1xf32> -> vector<10x1xf32>
    %235 = vector.broadcast %234 : vector<10x1xf32> to vector<10x10xf32>
    %236 = arith.mulf %231, %235 : vector<10x10xf32>
    %237 = arith.truncf %236 : vector<10x10xf32> to vector<10x10xbf16>
    %238 = arith.truncf %221 : vector<10x32xf32> to vector<10x32xbf16>
    %cst_181 = arith.constant dense<0.000000e+00> : vector<10x32xf32>
    %239 = tpu.matmul %237, %238, %cst_181 {dimension_numbers = #tpu.dot_dimension_numbers<[1], [0], [0], [1], [0, 0, 1, 1], [], []>} : vector<10x10xbf16>, vector<10x32xbf16>, vector<10x32xf32> -> vector<10x32xf32>
    %c0_182 = arith.constant 0 : index
    %c3_183 = arith.constant 3 : index
    %c0_184 = arith.constant 0 : index
    %c0_185 = arith.constant 0 : index
    %240 = vector.load %arg20[%c0_182, %c3_183, %c0_184, %c0_185] : memref<2x4x32x128xbf16, #tpu.memory_space<vmem>>, vector<1x1x32x128xbf16>
    %241 = vector.shape_cast %240 : vector<1x1x32x128xbf16> to vector<32x128xbf16>
    %242 = arith.truncf %239 : vector<10x32xf32> to vector<10x32xbf16>
    %cst_186 = arith.constant dense<0.000000e+00> : vector<10x128xf32>
    %243 = tpu.matmul %242, %241, %cst_186 {dimension_numbers = #tpu.dot_dimension_numbers<[1], [0], [0], [1], [0, 0, 1, 1], [], []>} : vector<10x32xbf16>, vector<32x128xbf16>, vector<10x128xf32> -> vector<10x128xf32>
    %244 = arith.addf %197, %243 : vector<10x128xf32>
    %c0_187 = arith.constant 0 : index
    %c0_188 = arith.constant 0 : index
    %c0_189 = arith.constant 0 : index
    %245 = vector.load %arg21[%c0_187, %c0_188, %c0_189] : memref<2x1x128xf32, #tpu.memory_space<vmem>>, vector<1x1x128xf32>
    %246 = vector.shape_cast %245 : vector<1x1x128xf32> to vector<1x128xf32>
    %247 = vector.broadcast %246 : vector<1x128xf32> to vector<10x128xf32>
    %248 = arith.addf %244, %247 : vector<10x128xf32>
    %249 = arith.addf %57, %248 : vector<10x128xf32>
    %c0_190 = arith.constant 0 : index
    %c0_191 = arith.constant 0 : index
    %c0_192 = arith.constant 0 : index
    %250 = vector.load %arg22[%c0_190, %c0_191, %c0_192] : memref<2x1x128xf32, #tpu.memory_space<vmem>>, vector<1x1x128xf32>
    %251 = vector.shape_cast %250 : vector<1x1x128xf32> to vector<1x128xf32>
    %c0_193 = arith.constant 0 : index
    %c0_194 = arith.constant 0 : index
    %c0_195 = arith.constant 0 : index
    %252 = vector.load %arg23[%c0_193, %c0_194, %c0_195] : memref<2x1x128xf32, #tpu.memory_space<vmem>>, vector<1x1x128xf32>
    %253 = vector.shape_cast %252 : vector<1x1x128xf32> to vector<1x128xf32>
    %cst_196 = arith.constant dense<0.000000e+00> : vector<10xf32>
    %254 = vector.multi_reduction <add>, %249, %cst_196 [1] : vector<10x128xf32> to vector<10xf32>
    %255 = vector.shape_cast %254 : vector<10xf32> to vector<10x1xf32>
    %cst_197 = arith.constant 1.280000e+02 : f32
    %256 = vector.broadcast %cst_197 : f32 to vector<10x1xf32>
    %257 = arith.divf %255, %256 : vector<10x1xf32>
    %258 = vector.broadcast %257 : vector<10x1xf32> to vector<10x128xf32>
    %259 = arith.subf %249, %258 : vector<10x128xf32>
    %260 = arith.mulf %259, %259 : vector<10x128xf32>
    %cst_198 = arith.constant dense<0.000000e+00> : vector<10xf32>
    %261 = vector.multi_reduction <add>, %260, %cst_198 [1] : vector<10x128xf32> to vector<10xf32>
    %262 = vector.shape_cast %261 : vector<10xf32> to vector<10x1xf32>
    %cst_199 = arith.constant 1.280000e+02 : f32
    %263 = vector.broadcast %cst_199 : f32 to vector<10x1xf32>
    %264 = arith.divf %262, %263 : vector<10x1xf32>
    %cst_200 = arith.constant 9.99999974E-6 : f32
    %265 = vector.broadcast %cst_200 : f32 to vector<10x1xf32>
    %266 = arith.addf %264, %265 : vector<10x1xf32>
    %267 = math.rsqrt %266 : vector<10x1xf32>
    %268 = vector.broadcast %267 : vector<10x1xf32> to vector<10x128xf32>
    %269 = arith.mulf %259, %268 : vector<10x128xf32>
    %270 = vector.broadcast %251 : vector<1x128xf32> to vector<10x128xf32>
    %271 = arith.mulf %269, %270 : vector<10x128xf32>
    %272 = vector.broadcast %253 : vector<1x128xf32> to vector<10x128xf32>
    %273 = arith.addf %271, %272 : vector<10x128xf32>
    %c0_201 = arith.constant 0 : index
    %c0_202 = arith.constant 0 : index
    %c0_203 = arith.constant 0 : index
    %274 = vector.load %arg24[%c0_201, %c0_202, %c0_203] : memref<2x128x256xbf16, #tpu.memory_space<vmem>>, vector<1x128x256xbf16>
    %275 = vector.shape_cast %274 : vector<1x128x256xbf16> to vector<128x256xbf16>
    %276 = arith.truncf %273 : vector<10x128xf32> to vector<10x128xbf16>
    %cst_204 = arith.constant dense<0.000000e+00> : vector<10x256xf32>
    %277 = tpu.matmul %276, %275, %cst_204 {dimension_numbers = #tpu.dot_dimension_numbers<[1], [0], [0], [1], [0, 0, 1, 1], [], []>} : vector<10x128xbf16>, vector<128x256xbf16>, vector<10x256xf32> -> vector<10x256xf32>
    %c0_205 = arith.constant 0 : index
    %c0_206 = arith.constant 0 : index
    %c0_207 = arith.constant 0 : index
    %278 = vector.load %arg25[%c0_205, %c0_206, %c0_207] : memref<2x1x256xf32, #tpu.memory_space<vmem>>, vector<1x1x256xf32>
    %279 = vector.shape_cast %278 : vector<1x1x256xf32> to vector<1x256xf32>
    %280 = vector.broadcast %279 : vector<1x256xf32> to vector<10x256xf32>
    %281 = arith.addf %277, %280 : vector<10x256xf32>
    %cst_208 = arith.constant 0.000000e+00 : f32
    %282 = vector.broadcast %cst_208 : f32 to vector<10x256xf32>
    %283 = arith.maximumf %281, %282 : vector<10x256xf32>
    %c0_209 = arith.constant 0 : index
    %c0_210 = arith.constant 0 : index
    %c0_211 = arith.constant 0 : index
    %284 = vector.load %arg26[%c0_209, %c0_210, %c0_211] : memref<2x256x128xbf16, #tpu.memory_space<vmem>>, vector<1x256x128xbf16>
    %285 = vector.shape_cast %284 : vector<1x256x128xbf16> to vector<256x128xbf16>
    %286 = arith.truncf %283 : vector<10x256xf32> to vector<10x256xbf16>
    %cst_212 = arith.constant dense<0.000000e+00> : vector<10x128xf32>
    %287 = tpu.matmul %286, %285, %cst_212 {dimension_numbers = #tpu.dot_dimension_numbers<[1], [0], [0], [1], [0, 0, 1, 1], [], []>} : vector<10x256xbf16>, vector<256x128xbf16>, vector<10x128xf32> -> vector<10x128xf32>
    %c0_213 = arith.constant 0 : index
    %c0_214 = arith.constant 0 : index
    %c0_215 = arith.constant 0 : index
    %288 = vector.load %arg27[%c0_213, %c0_214, %c0_215] : memref<2x1x128xf32, #tpu.memory_space<vmem>>, vector<1x1x128xf32>
    %289 = vector.shape_cast %288 : vector<1x1x128xf32> to vector<1x128xf32>
    %290 = vector.broadcast %289 : vector<1x128xf32> to vector<10x128xf32>
    %291 = arith.addf %287, %290 : vector<10x128xf32>
    %292 = arith.addf %273, %291 : vector<10x128xf32>
    %c0_216 = arith.constant 0 : index
    %c0_217 = arith.constant 0 : index
    %c0_218 = arith.constant 0 : index
    %293 = vector.load %arg28[%c0_216, %c0_217, %c0_218] : memref<2x1x128xf32, #tpu.memory_space<vmem>>, vector<1x1x128xf32>
    %294 = vector.shape_cast %293 : vector<1x1x128xf32> to vector<1x128xf32>
    %c0_219 = arith.constant 0 : index
    %c0_220 = arith.constant 0 : index
    %c0_221 = arith.constant 0 : index
    %295 = vector.load %arg29[%c0_219, %c0_220, %c0_221] : memref<2x1x128xf32, #tpu.memory_space<vmem>>, vector<1x1x128xf32>
    %296 = vector.shape_cast %295 : vector<1x1x128xf32> to vector<1x128xf32>
    %cst_222 = arith.constant dense<0.000000e+00> : vector<10xf32>
    %297 = vector.multi_reduction <add>, %292, %cst_222 [1] : vector<10x128xf32> to vector<10xf32>
    %298 = vector.shape_cast %297 : vector<10xf32> to vector<10x1xf32>
    %cst_223 = arith.constant 1.280000e+02 : f32
    %299 = vector.broadcast %cst_223 : f32 to vector<10x1xf32>
    %300 = arith.divf %298, %299 : vector<10x1xf32>
    %301 = vector.broadcast %300 : vector<10x1xf32> to vector<10x128xf32>
    %302 = arith.subf %292, %301 : vector<10x128xf32>
    %303 = arith.mulf %302, %302 : vector<10x128xf32>
    %cst_224 = arith.constant dense<0.000000e+00> : vector<10xf32>
    %304 = vector.multi_reduction <add>, %303, %cst_224 [1] : vector<10x128xf32> to vector<10xf32>
    %305 = vector.shape_cast %304 : vector<10xf32> to vector<10x1xf32>
    %cst_225 = arith.constant 1.280000e+02 : f32
    %306 = vector.broadcast %cst_225 : f32 to vector<10x1xf32>
    %307 = arith.divf %305, %306 : vector<10x1xf32>
    %cst_226 = arith.constant 9.99999974E-6 : f32
    %308 = vector.broadcast %cst_226 : f32 to vector<10x1xf32>
    %309 = arith.addf %307, %308 : vector<10x1xf32>
    %310 = math.rsqrt %309 : vector<10x1xf32>
    %311 = vector.broadcast %310 : vector<10x1xf32> to vector<10x128xf32>
    %312 = arith.mulf %302, %311 : vector<10x128xf32>
    %313 = vector.broadcast %294 : vector<1x128xf32> to vector<10x128xf32>
    %314 = arith.mulf %312, %313 : vector<10x128xf32>
    %315 = vector.broadcast %296 : vector<1x128xf32> to vector<10x128xf32>
    %316 = arith.addf %314, %315 : vector<10x128xf32>
    %c1_227 = arith.constant 1 : index
    %c0_228 = arith.constant 0 : index
    %c0_229 = arith.constant 0 : index
    %c0_230 = arith.constant 0 : index
    %317 = vector.load %arg14[%c1_227, %c0_228, %c0_229, %c0_230] : memref<2x4x128x32xbf16, #tpu.memory_space<vmem>>, vector<1x1x128x32xbf16>
    %318 = vector.shape_cast %317 : vector<1x1x128x32xbf16> to vector<128x32xbf16>
    %319 = arith.truncf %316 : vector<10x128xf32> to vector<10x128xbf16>
    %cst_231 = arith.constant dense<0.000000e+00> : vector<10x32xf32>
    %320 = tpu.matmul %319, %318, %cst_231 {dimension_numbers = #tpu.dot_dimension_numbers<[1], [0], [0], [1], [0, 0, 1, 1], [], []>} : vector<10x128xbf16>, vector<128x32xbf16>, vector<10x32xf32> -> vector<10x32xf32>
    %c1_232 = arith.constant 1 : index
    %c0_233 = arith.constant 0 : index
    %c0_234 = arith.constant 0 : index
    %c0_235 = arith.constant 0 : index
    %321 = vector.load %arg15[%c1_232, %c0_233, %c0_234, %c0_235] : memref<2x4x1x32xf32, #tpu.memory_space<vmem>>, vector<1x1x1x32xf32>
    %322 = vector.shape_cast %321 : vector<1x1x1x32xf32> to vector<1x32xf32>
    %323 = vector.broadcast %322 : vector<1x32xf32> to vector<10x32xf32>
    %324 = arith.addf %320, %323 : vector<10x32xf32>
    %c1_236 = arith.constant 1 : index
    %c0_237 = arith.constant 0 : index
    %c0_238 = arith.constant 0 : index
    %c0_239 = arith.constant 0 : index
    %325 = vector.load %arg16[%c1_236, %c0_237, %c0_238, %c0_239] : memref<2x4x128x32xbf16, #tpu.memory_space<vmem>>, vector<1x1x128x32xbf16>
    %326 = vector.shape_cast %325 : vector<1x1x128x32xbf16> to vector<128x32xbf16>
    %327 = arith.truncf %316 : vector<10x128xf32> to vector<10x128xbf16>
    %cst_240 = arith.constant dense<0.000000e+00> : vector<10x32xf32>
    %328 = tpu.matmul %327, %326, %cst_240 {dimension_numbers = #tpu.dot_dimension_numbers<[1], [0], [0], [1], [0, 0, 1, 1], [], []>} : vector<10x128xbf16>, vector<128x32xbf16>, vector<10x32xf32> -> vector<10x32xf32>
    %c1_241 = arith.constant 1 : index
    %c0_242 = arith.constant 0 : index
    %c0_243 = arith.constant 0 : index
    %c0_244 = arith.constant 0 : index
    %329 = vector.load %arg17[%c1_241, %c0_242, %c0_243, %c0_244] : memref<2x4x1x32xf32, #tpu.memory_space<vmem>>, vector<1x1x1x32xf32>
    %330 = vector.shape_cast %329 : vector<1x1x1x32xf32> to vector<1x32xf32>
    %331 = vector.broadcast %330 : vector<1x32xf32> to vector<10x32xf32>
    %332 = arith.addf %328, %331 : vector<10x32xf32>
    %c1_245 = arith.constant 1 : index
    %c0_246 = arith.constant 0 : index
    %c0_247 = arith.constant 0 : index
    %c0_248 = arith.constant 0 : index
    %333 = vector.load %arg18[%c1_245, %c0_246, %c0_247, %c0_248] : memref<2x4x128x32xbf16, #tpu.memory_space<vmem>>, vector<1x1x128x32xbf16>
    %334 = vector.shape_cast %333 : vector<1x1x128x32xbf16> to vector<128x32xbf16>
    %335 = arith.truncf %316 : vector<10x128xf32> to vector<10x128xbf16>
    %cst_249 = arith.constant dense<0.000000e+00> : vector<10x32xf32>
    %336 = tpu.matmul %335, %334, %cst_249 {dimension_numbers = #tpu.dot_dimension_numbers<[1], [0], [0], [1], [0, 0, 1, 1], [], []>} : vector<10x128xbf16>, vector<128x32xbf16>, vector<10x32xf32> -> vector<10x32xf32>
    %c1_250 = arith.constant 1 : index
    %c0_251 = arith.constant 0 : index
    %c0_252 = arith.constant 0 : index
    %c0_253 = arith.constant 0 : index
    %337 = vector.load %arg19[%c1_250, %c0_251, %c0_252, %c0_253] : memref<2x4x1x32xf32, #tpu.memory_space<vmem>>, vector<1x1x1x32xf32>
    %338 = vector.shape_cast %337 : vector<1x1x1x32xf32> to vector<1x32xf32>
    %339 = vector.broadcast %338 : vector<1x32xf32> to vector<10x32xf32>
    %340 = arith.addf %336, %339 : vector<10x32xf32>
    %341 = arith.truncf %324 : vector<10x32xf32> to vector<10x32xbf16>
    %342 = arith.truncf %332 : vector<10x32xf32> to vector<10x32xbf16>
    %cst_254 = arith.constant dense<0.000000e+00> : vector<10x10xf32>
    %343 = tpu.matmul %341, %342, %cst_254 {dimension_numbers = #tpu.dot_dimension_numbers<[1], [1], [0], [0], [0, 0, 1, 0], [], []>} : vector<10x32xbf16>, vector<10x32xbf16>, vector<10x10xf32> -> vector<10x10xf32>
    %cst_255 = arith.constant 0.176776692 : f32
    %344 = vector.broadcast %cst_255 : f32 to vector<10x10xf32>
    %345 = arith.mulf %343, %344 : vector<10x10xf32>
    %cst_256 = arith.constant dense<0xFF800000> : vector<10xf32>
    %346 = vector.multi_reduction <maximumf>, %345, %cst_256 [1] : vector<10x10xf32> to vector<10xf32>
    %347 = vector.shape_cast %346 : vector<10xf32> to vector<10x1xf32>
    %348 = vector.broadcast %347 : vector<10x1xf32> to vector<10x10xf32>
    %349 = arith.subf %345, %348 : vector<10x10xf32>
    %350 = math.exp %349 : vector<10x10xf32>
    %cst_257 = arith.constant dense<0.000000e+00> : vector<10xf32>
    %351 = vector.multi_reduction <add>, %350, %cst_257 [1] : vector<10x10xf32> to vector<10xf32>
    %352 = vector.shape_cast %351 : vector<10xf32> to vector<10x1xf32>
    %353 = tpu.reciprocal %352 {approx = true} : vector<10x1xf32> -> vector<10x1xf32>
    %354 = vector.broadcast %353 : vector<10x1xf32> to vector<10x10xf32>
    %355 = arith.mulf %350, %354 : vector<10x10xf32>
    %356 = arith.truncf %355 : vector<10x10xf32> to vector<10x10xbf16>
    %357 = arith.truncf %340 : vector<10x32xf32> to vector<10x32xbf16>
    %cst_258 = arith.constant dense<0.000000e+00> : vector<10x32xf32>
    %358 = tpu.matmul %356, %357, %cst_258 {dimension_numbers = #tpu.dot_dimension_numbers<[1], [0], [0], [1], [0, 0, 1, 1], [], []>} : vector<10x10xbf16>, vector<10x32xbf16>, vector<10x32xf32> -> vector<10x32xf32>
    %c1_259 = arith.constant 1 : index
    %c0_260 = arith.constant 0 : index
    %c0_261 = arith.constant 0 : index
    %c0_262 = arith.constant 0 : index
    %359 = vector.load %arg20[%c1_259, %c0_260, %c0_261, %c0_262] : memref<2x4x32x128xbf16, #tpu.memory_space<vmem>>, vector<1x1x32x128xbf16>
    %360 = vector.shape_cast %359 : vector<1x1x32x128xbf16> to vector<32x128xbf16>
    %361 = arith.truncf %358 : vector<10x32xf32> to vector<10x32xbf16>
    %cst_263 = arith.constant dense<0.000000e+00> : vector<10x128xf32>
    %362 = tpu.matmul %361, %360, %cst_263 {dimension_numbers = #tpu.dot_dimension_numbers<[1], [0], [0], [1], [0, 0, 1, 1], [], []>} : vector<10x32xbf16>, vector<32x128xbf16>, vector<10x128xf32> -> vector<10x128xf32>
    %c1_264 = arith.constant 1 : index
    %c1_265 = arith.constant 1 : index
    %c0_266 = arith.constant 0 : index
    %c0_267 = arith.constant 0 : index
    %363 = vector.load %arg14[%c1_264, %c1_265, %c0_266, %c0_267] : memref<2x4x128x32xbf16, #tpu.memory_space<vmem>>, vector<1x1x128x32xbf16>
    %364 = vector.shape_cast %363 : vector<1x1x128x32xbf16> to vector<128x32xbf16>
    %365 = arith.truncf %316 : vector<10x128xf32> to vector<10x128xbf16>
    %cst_268 = arith.constant dense<0.000000e+00> : vector<10x32xf32>
    %366 = tpu.matmul %365, %364, %cst_268 {dimension_numbers = #tpu.dot_dimension_numbers<[1], [0], [0], [1], [0, 0, 1, 1], [], []>} : vector<10x128xbf16>, vector<128x32xbf16>, vector<10x32xf32> -> vector<10x32xf32>
    %c1_269 = arith.constant 1 : index
    %c1_270 = arith.constant 1 : index
    %c0_271 = arith.constant 0 : index
    %c0_272 = arith.constant 0 : index
    %367 = vector.load %arg15[%c1_269, %c1_270, %c0_271, %c0_272] : memref<2x4x1x32xf32, #tpu.memory_space<vmem>>, vector<1x1x1x32xf32>
    %368 = vector.shape_cast %367 : vector<1x1x1x32xf32> to vector<1x32xf32>
    %369 = vector.broadcast %368 : vector<1x32xf32> to vector<10x32xf32>
    %370 = arith.addf %366, %369 : vector<10x32xf32>
    %c1_273 = arith.constant 1 : index
    %c1_274 = arith.constant 1 : index
    %c0_275 = arith.constant 0 : index
    %c0_276 = arith.constant 0 : index
    %371 = vector.load %arg16[%c1_273, %c1_274, %c0_275, %c0_276] : memref<2x4x128x32xbf16, #tpu.memory_space<vmem>>, vector<1x1x128x32xbf16>
    %372 = vector.shape_cast %371 : vector<1x1x128x32xbf16> to vector<128x32xbf16>
    %373 = arith.truncf %316 : vector<10x128xf32> to vector<10x128xbf16>
    %cst_277 = arith.constant dense<0.000000e+00> : vector<10x32xf32>
    %374 = tpu.matmul %373, %372, %cst_277 {dimension_numbers = #tpu.dot_dimension_numbers<[1], [0], [0], [1], [0, 0, 1, 1], [], []>} : vector<10x128xbf16>, vector<128x32xbf16>, vector<10x32xf32> -> vector<10x32xf32>
    %c1_278 = arith.constant 1 : index
    %c1_279 = arith.constant 1 : index
    %c0_280 = arith.constant 0 : index
    %c0_281 = arith.constant 0 : index
    %375 = vector.load %arg17[%c1_278, %c1_279, %c0_280, %c0_281] : memref<2x4x1x32xf32, #tpu.memory_space<vmem>>, vector<1x1x1x32xf32>
    %376 = vector.shape_cast %375 : vector<1x1x1x32xf32> to vector<1x32xf32>
    %377 = vector.broadcast %376 : vector<1x32xf32> to vector<10x32xf32>
    %378 = arith.addf %374, %377 : vector<10x32xf32>
    %c1_282 = arith.constant 1 : index
    %c1_283 = arith.constant 1 : index
    %c0_284 = arith.constant 0 : index
    %c0_285 = arith.constant 0 : index
    %379 = vector.load %arg18[%c1_282, %c1_283, %c0_284, %c0_285] : memref<2x4x128x32xbf16, #tpu.memory_space<vmem>>, vector<1x1x128x32xbf16>
    %380 = vector.shape_cast %379 : vector<1x1x128x32xbf16> to vector<128x32xbf16>
    %381 = arith.truncf %316 : vector<10x128xf32> to vector<10x128xbf16>
    %cst_286 = arith.constant dense<0.000000e+00> : vector<10x32xf32>
    %382 = tpu.matmul %381, %380, %cst_286 {dimension_numbers = #tpu.dot_dimension_numbers<[1], [0], [0], [1], [0, 0, 1, 1], [], []>} : vector<10x128xbf16>, vector<128x32xbf16>, vector<10x32xf32> -> vector<10x32xf32>
    %c1_287 = arith.constant 1 : index
    %c1_288 = arith.constant 1 : index
    %c0_289 = arith.constant 0 : index
    %c0_290 = arith.constant 0 : index
    %383 = vector.load %arg19[%c1_287, %c1_288, %c0_289, %c0_290] : memref<2x4x1x32xf32, #tpu.memory_space<vmem>>, vector<1x1x1x32xf32>
    %384 = vector.shape_cast %383 : vector<1x1x1x32xf32> to vector<1x32xf32>
    %385 = vector.broadcast %384 : vector<1x32xf32> to vector<10x32xf32>
    %386 = arith.addf %382, %385 : vector<10x32xf32>
    %387 = arith.truncf %370 : vector<10x32xf32> to vector<10x32xbf16>
    %388 = arith.truncf %378 : vector<10x32xf32> to vector<10x32xbf16>
    %cst_291 = arith.constant dense<0.000000e+00> : vector<10x10xf32>
    %389 = tpu.matmul %387, %388, %cst_291 {dimension_numbers = #tpu.dot_dimension_numbers<[1], [1], [0], [0], [0, 0, 1, 0], [], []>} : vector<10x32xbf16>, vector<10x32xbf16>, vector<10x10xf32> -> vector<10x10xf32>
    %cst_292 = arith.constant 0.176776692 : f32
    %390 = vector.broadcast %cst_292 : f32 to vector<10x10xf32>
    %391 = arith.mulf %389, %390 : vector<10x10xf32>
    %cst_293 = arith.constant dense<0xFF800000> : vector<10xf32>
    %392 = vector.multi_reduction <maximumf>, %391, %cst_293 [1] : vector<10x10xf32> to vector<10xf32>
    %393 = vector.shape_cast %392 : vector<10xf32> to vector<10x1xf32>
    %394 = vector.broadcast %393 : vector<10x1xf32> to vector<10x10xf32>
    %395 = arith.subf %391, %394 : vector<10x10xf32>
    %396 = math.exp %395 : vector<10x10xf32>
    %cst_294 = arith.constant dense<0.000000e+00> : vector<10xf32>
    %397 = vector.multi_reduction <add>, %396, %cst_294 [1] : vector<10x10xf32> to vector<10xf32>
    %398 = vector.shape_cast %397 : vector<10xf32> to vector<10x1xf32>
    %399 = tpu.reciprocal %398 {approx = true} : vector<10x1xf32> -> vector<10x1xf32>
    %400 = vector.broadcast %399 : vector<10x1xf32> to vector<10x10xf32>
    %401 = arith.mulf %396, %400 : vector<10x10xf32>
    %402 = arith.truncf %401 : vector<10x10xf32> to vector<10x10xbf16>
    %403 = arith.truncf %386 : vector<10x32xf32> to vector<10x32xbf16>
    %cst_295 = arith.constant dense<0.000000e+00> : vector<10x32xf32>
    %404 = tpu.matmul %402, %403, %cst_295 {dimension_numbers = #tpu.dot_dimension_numbers<[1], [0], [0], [1], [0, 0, 1, 1], [], []>} : vector<10x10xbf16>, vector<10x32xbf16>, vector<10x32xf32> -> vector<10x32xf32>
    %c1_296 = arith.constant 1 : index
    %c1_297 = arith.constant 1 : index
    %c0_298 = arith.constant 0 : index
    %c0_299 = arith.constant 0 : index
    %405 = vector.load %arg20[%c1_296, %c1_297, %c0_298, %c0_299] : memref<2x4x32x128xbf16, #tpu.memory_space<vmem>>, vector<1x1x32x128xbf16>
    %406 = vector.shape_cast %405 : vector<1x1x32x128xbf16> to vector<32x128xbf16>
    %407 = arith.truncf %404 : vector<10x32xf32> to vector<10x32xbf16>
    %cst_300 = arith.constant dense<0.000000e+00> : vector<10x128xf32>
    %408 = tpu.matmul %407, %406, %cst_300 {dimension_numbers = #tpu.dot_dimension_numbers<[1], [0], [0], [1], [0, 0, 1, 1], [], []>} : vector<10x32xbf16>, vector<32x128xbf16>, vector<10x128xf32> -> vector<10x128xf32>
    %409 = arith.addf %362, %408 : vector<10x128xf32>
    %c1_301 = arith.constant 1 : index
    %c2_302 = arith.constant 2 : index
    %c0_303 = arith.constant 0 : index
    %c0_304 = arith.constant 0 : index
    %410 = vector.load %arg14[%c1_301, %c2_302, %c0_303, %c0_304] : memref<2x4x128x32xbf16, #tpu.memory_space<vmem>>, vector<1x1x128x32xbf16>
    %411 = vector.shape_cast %410 : vector<1x1x128x32xbf16> to vector<128x32xbf16>
    %412 = arith.truncf %316 : vector<10x128xf32> to vector<10x128xbf16>
    %cst_305 = arith.constant dense<0.000000e+00> : vector<10x32xf32>
    %413 = tpu.matmul %412, %411, %cst_305 {dimension_numbers = #tpu.dot_dimension_numbers<[1], [0], [0], [1], [0, 0, 1, 1], [], []>} : vector<10x128xbf16>, vector<128x32xbf16>, vector<10x32xf32> -> vector<10x32xf32>
    %c1_306 = arith.constant 1 : index
    %c2_307 = arith.constant 2 : index
    %c0_308 = arith.constant 0 : index
    %c0_309 = arith.constant 0 : index
    %414 = vector.load %arg15[%c1_306, %c2_307, %c0_308, %c0_309] : memref<2x4x1x32xf32, #tpu.memory_space<vmem>>, vector<1x1x1x32xf32>
    %415 = vector.shape_cast %414 : vector<1x1x1x32xf32> to vector<1x32xf32>
    %416 = vector.broadcast %415 : vector<1x32xf32> to vector<10x32xf32>
    %417 = arith.addf %413, %416 : vector<10x32xf32>
    %c1_310 = arith.constant 1 : index
    %c2_311 = arith.constant 2 : index
    %c0_312 = arith.constant 0 : index
    %c0_313 = arith.constant 0 : index
    %418 = vector.load %arg16[%c1_310, %c2_311, %c0_312, %c0_313] : memref<2x4x128x32xbf16, #tpu.memory_space<vmem>>, vector<1x1x128x32xbf16>
    %419 = vector.shape_cast %418 : vector<1x1x128x32xbf16> to vector<128x32xbf16>
    %420 = arith.truncf %316 : vector<10x128xf32> to vector<10x128xbf16>
    %cst_314 = arith.constant dense<0.000000e+00> : vector<10x32xf32>
    %421 = tpu.matmul %420, %419, %cst_314 {dimension_numbers = #tpu.dot_dimension_numbers<[1], [0], [0], [1], [0, 0, 1, 1], [], []>} : vector<10x128xbf16>, vector<128x32xbf16>, vector<10x32xf32> -> vector<10x32xf32>
    %c1_315 = arith.constant 1 : index
    %c2_316 = arith.constant 2 : index
    %c0_317 = arith.constant 0 : index
    %c0_318 = arith.constant 0 : index
    %422 = vector.load %arg17[%c1_315, %c2_316, %c0_317, %c0_318] : memref<2x4x1x32xf32, #tpu.memory_space<vmem>>, vector<1x1x1x32xf32>
    %423 = vector.shape_cast %422 : vector<1x1x1x32xf32> to vector<1x32xf32>
    %424 = vector.broadcast %423 : vector<1x32xf32> to vector<10x32xf32>
    %425 = arith.addf %421, %424 : vector<10x32xf32>
    %c1_319 = arith.constant 1 : index
    %c2_320 = arith.constant 2 : index
    %c0_321 = arith.constant 0 : index
    %c0_322 = arith.constant 0 : index
    %426 = vector.load %arg18[%c1_319, %c2_320, %c0_321, %c0_322] : memref<2x4x128x32xbf16, #tpu.memory_space<vmem>>, vector<1x1x128x32xbf16>
    %427 = vector.shape_cast %426 : vector<1x1x128x32xbf16> to vector<128x32xbf16>
    %428 = arith.truncf %316 : vector<10x128xf32> to vector<10x128xbf16>
    %cst_323 = arith.constant dense<0.000000e+00> : vector<10x32xf32>
    %429 = tpu.matmul %428, %427, %cst_323 {dimension_numbers = #tpu.dot_dimension_numbers<[1], [0], [0], [1], [0, 0, 1, 1], [], []>} : vector<10x128xbf16>, vector<128x32xbf16>, vector<10x32xf32> -> vector<10x32xf32>
    %c1_324 = arith.constant 1 : index
    %c2_325 = arith.constant 2 : index
    %c0_326 = arith.constant 0 : index
    %c0_327 = arith.constant 0 : index
    %430 = vector.load %arg19[%c1_324, %c2_325, %c0_326, %c0_327] : memref<2x4x1x32xf32, #tpu.memory_space<vmem>>, vector<1x1x1x32xf32>
    %431 = vector.shape_cast %430 : vector<1x1x1x32xf32> to vector<1x32xf32>
    %432 = vector.broadcast %431 : vector<1x32xf32> to vector<10x32xf32>
    %433 = arith.addf %429, %432 : vector<10x32xf32>
    %434 = arith.truncf %417 : vector<10x32xf32> to vector<10x32xbf16>
    %435 = arith.truncf %425 : vector<10x32xf32> to vector<10x32xbf16>
    %cst_328 = arith.constant dense<0.000000e+00> : vector<10x10xf32>
    %436 = tpu.matmul %434, %435, %cst_328 {dimension_numbers = #tpu.dot_dimension_numbers<[1], [1], [0], [0], [0, 0, 1, 0], [], []>} : vector<10x32xbf16>, vector<10x32xbf16>, vector<10x10xf32> -> vector<10x10xf32>
    %cst_329 = arith.constant 0.176776692 : f32
    %437 = vector.broadcast %cst_329 : f32 to vector<10x10xf32>
    %438 = arith.mulf %436, %437 : vector<10x10xf32>
    %cst_330 = arith.constant dense<0xFF800000> : vector<10xf32>
    %439 = vector.multi_reduction <maximumf>, %438, %cst_330 [1] : vector<10x10xf32> to vector<10xf32>
    %440 = vector.shape_cast %439 : vector<10xf32> to vector<10x1xf32>
    %441 = vector.broadcast %440 : vector<10x1xf32> to vector<10x10xf32>
    %442 = arith.subf %438, %441 : vector<10x10xf32>
    %443 = math.exp %442 : vector<10x10xf32>
    %cst_331 = arith.constant dense<0.000000e+00> : vector<10xf32>
    %444 = vector.multi_reduction <add>, %443, %cst_331 [1] : vector<10x10xf32> to vector<10xf32>
    %445 = vector.shape_cast %444 : vector<10xf32> to vector<10x1xf32>
    %446 = tpu.reciprocal %445 {approx = true} : vector<10x1xf32> -> vector<10x1xf32>
    %447 = vector.broadcast %446 : vector<10x1xf32> to vector<10x10xf32>
    %448 = arith.mulf %443, %447 : vector<10x10xf32>
    %449 = arith.truncf %448 : vector<10x10xf32> to vector<10x10xbf16>
    %450 = arith.truncf %433 : vector<10x32xf32> to vector<10x32xbf16>
    %cst_332 = arith.constant dense<0.000000e+00> : vector<10x32xf32>
    %451 = tpu.matmul %449, %450, %cst_332 {dimension_numbers = #tpu.dot_dimension_numbers<[1], [0], [0], [1], [0, 0, 1, 1], [], []>} : vector<10x10xbf16>, vector<10x32xbf16>, vector<10x32xf32> -> vector<10x32xf32>
    %c1_333 = arith.constant 1 : index
    %c2_334 = arith.constant 2 : index
    %c0_335 = arith.constant 0 : index
    %c0_336 = arith.constant 0 : index
    %452 = vector.load %arg20[%c1_333, %c2_334, %c0_335, %c0_336] : memref<2x4x32x128xbf16, #tpu.memory_space<vmem>>, vector<1x1x32x128xbf16>
    %453 = vector.shape_cast %452 : vector<1x1x32x128xbf16> to vector<32x128xbf16>
    %454 = arith.truncf %451 : vector<10x32xf32> to vector<10x32xbf16>
    %cst_337 = arith.constant dense<0.000000e+00> : vector<10x128xf32>
    %455 = tpu.matmul %454, %453, %cst_337 {dimension_numbers = #tpu.dot_dimension_numbers<[1], [0], [0], [1], [0, 0, 1, 1], [], []>} : vector<10x32xbf16>, vector<32x128xbf16>, vector<10x128xf32> -> vector<10x128xf32>
    %456 = arith.addf %409, %455 : vector<10x128xf32>
    %c1_338 = arith.constant 1 : index
    %c3_339 = arith.constant 3 : index
    %c0_340 = arith.constant 0 : index
    %c0_341 = arith.constant 0 : index
    %457 = vector.load %arg14[%c1_338, %c3_339, %c0_340, %c0_341] : memref<2x4x128x32xbf16, #tpu.memory_space<vmem>>, vector<1x1x128x32xbf16>
    %458 = vector.shape_cast %457 : vector<1x1x128x32xbf16> to vector<128x32xbf16>
    %459 = arith.truncf %316 : vector<10x128xf32> to vector<10x128xbf16>
    %cst_342 = arith.constant dense<0.000000e+00> : vector<10x32xf32>
    %460 = tpu.matmul %459, %458, %cst_342 {dimension_numbers = #tpu.dot_dimension_numbers<[1], [0], [0], [1], [0, 0, 1, 1], [], []>} : vector<10x128xbf16>, vector<128x32xbf16>, vector<10x32xf32> -> vector<10x32xf32>
    %c1_343 = arith.constant 1 : index
    %c3_344 = arith.constant 3 : index
    %c0_345 = arith.constant 0 : index
    %c0_346 = arith.constant 0 : index
    %461 = vector.load %arg15[%c1_343, %c3_344, %c0_345, %c0_346] : memref<2x4x1x32xf32, #tpu.memory_space<vmem>>, vector<1x1x1x32xf32>
    %462 = vector.shape_cast %461 : vector<1x1x1x32xf32> to vector<1x32xf32>
    %463 = vector.broadcast %462 : vector<1x32xf32> to vector<10x32xf32>
    %464 = arith.addf %460, %463 : vector<10x32xf32>
    %c1_347 = arith.constant 1 : index
    %c3_348 = arith.constant 3 : index
    %c0_349 = arith.constant 0 : index
    %c0_350 = arith.constant 0 : index
    %465 = vector.load %arg16[%c1_347, %c3_348, %c0_349, %c0_350] : memref<2x4x128x32xbf16, #tpu.memory_space<vmem>>, vector<1x1x128x32xbf16>
    %466 = vector.shape_cast %465 : vector<1x1x128x32xbf16> to vector<128x32xbf16>
    %467 = arith.truncf %316 : vector<10x128xf32> to vector<10x128xbf16>
    %cst_351 = arith.constant dense<0.000000e+00> : vector<10x32xf32>
    %468 = tpu.matmul %467, %466, %cst_351 {dimension_numbers = #tpu.dot_dimension_numbers<[1], [0], [0], [1], [0, 0, 1, 1], [], []>} : vector<10x128xbf16>, vector<128x32xbf16>, vector<10x32xf32> -> vector<10x32xf32>
    %c1_352 = arith.constant 1 : index
    %c3_353 = arith.constant 3 : index
    %c0_354 = arith.constant 0 : index
    %c0_355 = arith.constant 0 : index
    %469 = vector.load %arg17[%c1_352, %c3_353, %c0_354, %c0_355] : memref<2x4x1x32xf32, #tpu.memory_space<vmem>>, vector<1x1x1x32xf32>
    %470 = vector.shape_cast %469 : vector<1x1x1x32xf32> to vector<1x32xf32>
    %471 = vector.broadcast %470 : vector<1x32xf32> to vector<10x32xf32>
    %472 = arith.addf %468, %471 : vector<10x32xf32>
    %c1_356 = arith.constant 1 : index
    %c3_357 = arith.constant 3 : index
    %c0_358 = arith.constant 0 : index
    %c0_359 = arith.constant 0 : index
    %473 = vector.load %arg18[%c1_356, %c3_357, %c0_358, %c0_359] : memref<2x4x128x32xbf16, #tpu.memory_space<vmem>>, vector<1x1x128x32xbf16>
    %474 = vector.shape_cast %473 : vector<1x1x128x32xbf16> to vector<128x32xbf16>
    %475 = arith.truncf %316 : vector<10x128xf32> to vector<10x128xbf16>
    %cst_360 = arith.constant dense<0.000000e+00> : vector<10x32xf32>
    %476 = tpu.matmul %475, %474, %cst_360 {dimension_numbers = #tpu.dot_dimension_numbers<[1], [0], [0], [1], [0, 0, 1, 1], [], []>} : vector<10x128xbf16>, vector<128x32xbf16>, vector<10x32xf32> -> vector<10x32xf32>
    %c1_361 = arith.constant 1 : index
    %c3_362 = arith.constant 3 : index
    %c0_363 = arith.constant 0 : index
    %c0_364 = arith.constant 0 : index
    %477 = vector.load %arg19[%c1_361, %c3_362, %c0_363, %c0_364] : memref<2x4x1x32xf32, #tpu.memory_space<vmem>>, vector<1x1x1x32xf32>
    %478 = vector.shape_cast %477 : vector<1x1x1x32xf32> to vector<1x32xf32>
    %479 = vector.broadcast %478 : vector<1x32xf32> to vector<10x32xf32>
    %480 = arith.addf %476, %479 : vector<10x32xf32>
    %481 = arith.truncf %464 : vector<10x32xf32> to vector<10x32xbf16>
    %482 = arith.truncf %472 : vector<10x32xf32> to vector<10x32xbf16>
    %cst_365 = arith.constant dense<0.000000e+00> : vector<10x10xf32>
    %483 = tpu.matmul %481, %482, %cst_365 {dimension_numbers = #tpu.dot_dimension_numbers<[1], [1], [0], [0], [0, 0, 1, 0], [], []>} : vector<10x32xbf16>, vector<10x32xbf16>, vector<10x10xf32> -> vector<10x10xf32>
    %cst_366 = arith.constant 0.176776692 : f32
    %484 = vector.broadcast %cst_366 : f32 to vector<10x10xf32>
    %485 = arith.mulf %483, %484 : vector<10x10xf32>
    %cst_367 = arith.constant dense<0xFF800000> : vector<10xf32>
    %486 = vector.multi_reduction <maximumf>, %485, %cst_367 [1] : vector<10x10xf32> to vector<10xf32>
    %487 = vector.shape_cast %486 : vector<10xf32> to vector<10x1xf32>
    %488 = vector.broadcast %487 : vector<10x1xf32> to vector<10x10xf32>
    %489 = arith.subf %485, %488 : vector<10x10xf32>
    %490 = math.exp %489 : vector<10x10xf32>
    %cst_368 = arith.constant dense<0.000000e+00> : vector<10xf32>
    %491 = vector.multi_reduction <add>, %490, %cst_368 [1] : vector<10x10xf32> to vector<10xf32>
    %492 = vector.shape_cast %491 : vector<10xf32> to vector<10x1xf32>
    %493 = tpu.reciprocal %492 {approx = true} : vector<10x1xf32> -> vector<10x1xf32>
    %494 = vector.broadcast %493 : vector<10x1xf32> to vector<10x10xf32>
    %495 = arith.mulf %490, %494 : vector<10x10xf32>
    %496 = arith.truncf %495 : vector<10x10xf32> to vector<10x10xbf16>
    %497 = arith.truncf %480 : vector<10x32xf32> to vector<10x32xbf16>
    %cst_369 = arith.constant dense<0.000000e+00> : vector<10x32xf32>
    %498 = tpu.matmul %496, %497, %cst_369 {dimension_numbers = #tpu.dot_dimension_numbers<[1], [0], [0], [1], [0, 0, 1, 1], [], []>} : vector<10x10xbf16>, vector<10x32xbf16>, vector<10x32xf32> -> vector<10x32xf32>
    %c1_370 = arith.constant 1 : index
    %c3_371 = arith.constant 3 : index
    %c0_372 = arith.constant 0 : index
    %c0_373 = arith.constant 0 : index
    %499 = vector.load %arg20[%c1_370, %c3_371, %c0_372, %c0_373] : memref<2x4x32x128xbf16, #tpu.memory_space<vmem>>, vector<1x1x32x128xbf16>
    %500 = vector.shape_cast %499 : vector<1x1x32x128xbf16> to vector<32x128xbf16>
    %501 = arith.truncf %498 : vector<10x32xf32> to vector<10x32xbf16>
    %cst_374 = arith.constant dense<0.000000e+00> : vector<10x128xf32>
    %502 = tpu.matmul %501, %500, %cst_374 {dimension_numbers = #tpu.dot_dimension_numbers<[1], [0], [0], [1], [0, 0, 1, 1], [], []>} : vector<10x32xbf16>, vector<32x128xbf16>, vector<10x128xf32> -> vector<10x128xf32>
    %503 = arith.addf %456, %502 : vector<10x128xf32>
    %c1_375 = arith.constant 1 : index
    %c0_376 = arith.constant 0 : index
    %c0_377 = arith.constant 0 : index
    %504 = vector.load %arg21[%c1_375, %c0_376, %c0_377] : memref<2x1x128xf32, #tpu.memory_space<vmem>>, vector<1x1x128xf32>
    %505 = vector.shape_cast %504 : vector<1x1x128xf32> to vector<1x128xf32>
    %506 = vector.broadcast %505 : vector<1x128xf32> to vector<10x128xf32>
    %507 = arith.addf %503, %506 : vector<10x128xf32>
    %508 = arith.addf %316, %507 : vector<10x128xf32>
    %c1_378 = arith.constant 1 : index
    %c0_379 = arith.constant 0 : index
    %c0_380 = arith.constant 0 : index
    %509 = vector.load %arg22[%c1_378, %c0_379, %c0_380] : memref<2x1x128xf32, #tpu.memory_space<vmem>>, vector<1x1x128xf32>
    %510 = vector.shape_cast %509 : vector<1x1x128xf32> to vector<1x128xf32>
    %c1_381 = arith.constant 1 : index
    %c0_382 = arith.constant 0 : index
    %c0_383 = arith.constant 0 : index
    %511 = vector.load %arg23[%c1_381, %c0_382, %c0_383] : memref<2x1x128xf32, #tpu.memory_space<vmem>>, vector<1x1x128xf32>
    %512 = vector.shape_cast %511 : vector<1x1x128xf32> to vector<1x128xf32>
    %cst_384 = arith.constant dense<0.000000e+00> : vector<10xf32>
    %513 = vector.multi_reduction <add>, %508, %cst_384 [1] : vector<10x128xf32> to vector<10xf32>
    %514 = vector.shape_cast %513 : vector<10xf32> to vector<10x1xf32>
    %cst_385 = arith.constant 1.280000e+02 : f32
    %515 = vector.broadcast %cst_385 : f32 to vector<10x1xf32>
    %516 = arith.divf %514, %515 : vector<10x1xf32>
    %517 = vector.broadcast %516 : vector<10x1xf32> to vector<10x128xf32>
    %518 = arith.subf %508, %517 : vector<10x128xf32>
    %519 = arith.mulf %518, %518 : vector<10x128xf32>
    %cst_386 = arith.constant dense<0.000000e+00> : vector<10xf32>
    %520 = vector.multi_reduction <add>, %519, %cst_386 [1] : vector<10x128xf32> to vector<10xf32>
    %521 = vector.shape_cast %520 : vector<10xf32> to vector<10x1xf32>
    %cst_387 = arith.constant 1.280000e+02 : f32
    %522 = vector.broadcast %cst_387 : f32 to vector<10x1xf32>
    %523 = arith.divf %521, %522 : vector<10x1xf32>
    %cst_388 = arith.constant 9.99999974E-6 : f32
    %524 = vector.broadcast %cst_388 : f32 to vector<10x1xf32>
    %525 = arith.addf %523, %524 : vector<10x1xf32>
    %526 = math.rsqrt %525 : vector<10x1xf32>
    %527 = vector.broadcast %526 : vector<10x1xf32> to vector<10x128xf32>
    %528 = arith.mulf %518, %527 : vector<10x128xf32>
    %529 = vector.broadcast %510 : vector<1x128xf32> to vector<10x128xf32>
    %530 = arith.mulf %528, %529 : vector<10x128xf32>
    %531 = vector.broadcast %512 : vector<1x128xf32> to vector<10x128xf32>
    %532 = arith.addf %530, %531 : vector<10x128xf32>
    %c1_389 = arith.constant 1 : index
    %c0_390 = arith.constant 0 : index
    %c0_391 = arith.constant 0 : index
    %533 = vector.load %arg24[%c1_389, %c0_390, %c0_391] : memref<2x128x256xbf16, #tpu.memory_space<vmem>>, vector<1x128x256xbf16>
    %534 = vector.shape_cast %533 : vector<1x128x256xbf16> to vector<128x256xbf16>
    %535 = arith.truncf %532 : vector<10x128xf32> to vector<10x128xbf16>
    %cst_392 = arith.constant dense<0.000000e+00> : vector<10x256xf32>
    %536 = tpu.matmul %535, %534, %cst_392 {dimension_numbers = #tpu.dot_dimension_numbers<[1], [0], [0], [1], [0, 0, 1, 1], [], []>} : vector<10x128xbf16>, vector<128x256xbf16>, vector<10x256xf32> -> vector<10x256xf32>
    %c1_393 = arith.constant 1 : index
    %c0_394 = arith.constant 0 : index
    %c0_395 = arith.constant 0 : index
    %537 = vector.load %arg25[%c1_393, %c0_394, %c0_395] : memref<2x1x256xf32, #tpu.memory_space<vmem>>, vector<1x1x256xf32>
    %538 = vector.shape_cast %537 : vector<1x1x256xf32> to vector<1x256xf32>
    %539 = vector.broadcast %538 : vector<1x256xf32> to vector<10x256xf32>
    %540 = arith.addf %536, %539 : vector<10x256xf32>
    %cst_396 = arith.constant 0.000000e+00 : f32
    %541 = vector.broadcast %cst_396 : f32 to vector<10x256xf32>
    %542 = arith.maximumf %540, %541 : vector<10x256xf32>
    %c1_397 = arith.constant 1 : index
    %c0_398 = arith.constant 0 : index
    %c0_399 = arith.constant 0 : index
    %543 = vector.load %arg26[%c1_397, %c0_398, %c0_399] : memref<2x256x128xbf16, #tpu.memory_space<vmem>>, vector<1x256x128xbf16>
    %544 = vector.shape_cast %543 : vector<1x256x128xbf16> to vector<256x128xbf16>
    %545 = arith.truncf %542 : vector<10x256xf32> to vector<10x256xbf16>
    %cst_400 = arith.constant dense<0.000000e+00> : vector<10x128xf32>
    %546 = tpu.matmul %545, %544, %cst_400 {dimension_numbers = #tpu.dot_dimension_numbers<[1], [0], [0], [1], [0, 0, 1, 1], [], []>} : vector<10x256xbf16>, vector<256x128xbf16>, vector<10x128xf32> -> vector<10x128xf32>
    %c1_401 = arith.constant 1 : index
    %c0_402 = arith.constant 0 : index
    %c0_403 = arith.constant 0 : index
    %547 = vector.load %arg27[%c1_401, %c0_402, %c0_403] : memref<2x1x128xf32, #tpu.memory_space<vmem>>, vector<1x1x128xf32>
    %548 = vector.shape_cast %547 : vector<1x1x128xf32> to vector<1x128xf32>
    %549 = vector.broadcast %548 : vector<1x128xf32> to vector<10x128xf32>
    %550 = arith.addf %546, %549 : vector<10x128xf32>
    %551 = arith.addf %532, %550 : vector<10x128xf32>
    %c1_404 = arith.constant 1 : index
    %c0_405 = arith.constant 0 : index
    %c0_406 = arith.constant 0 : index
    %552 = vector.load %arg28[%c1_404, %c0_405, %c0_406] : memref<2x1x128xf32, #tpu.memory_space<vmem>>, vector<1x1x128xf32>
    %553 = vector.shape_cast %552 : vector<1x1x128xf32> to vector<1x128xf32>
    %c1_407 = arith.constant 1 : index
    %c0_408 = arith.constant 0 : index
    %c0_409 = arith.constant 0 : index
    %554 = vector.load %arg29[%c1_407, %c0_408, %c0_409] : memref<2x1x128xf32, #tpu.memory_space<vmem>>, vector<1x1x128xf32>
    %555 = vector.shape_cast %554 : vector<1x1x128xf32> to vector<1x128xf32>
    %cst_410 = arith.constant dense<0.000000e+00> : vector<10xf32>
    %556 = vector.multi_reduction <add>, %551, %cst_410 [1] : vector<10x128xf32> to vector<10xf32>
    %557 = vector.shape_cast %556 : vector<10xf32> to vector<10x1xf32>
    %cst_411 = arith.constant 1.280000e+02 : f32
    %558 = vector.broadcast %cst_411 : f32 to vector<10x1xf32>
    %559 = arith.divf %557, %558 : vector<10x1xf32>
    %560 = vector.broadcast %559 : vector<10x1xf32> to vector<10x128xf32>
    %561 = arith.subf %551, %560 : vector<10x128xf32>
    %562 = arith.mulf %561, %561 : vector<10x128xf32>
    %cst_412 = arith.constant dense<0.000000e+00> : vector<10xf32>
    %563 = vector.multi_reduction <add>, %562, %cst_412 [1] : vector<10x128xf32> to vector<10xf32>
    %564 = vector.shape_cast %563 : vector<10xf32> to vector<10x1xf32>
    %cst_413 = arith.constant 1.280000e+02 : f32
    %565 = vector.broadcast %cst_413 : f32 to vector<10x1xf32>
    %566 = arith.divf %564, %565 : vector<10x1xf32>
    %cst_414 = arith.constant 9.99999974E-6 : f32
    %567 = vector.broadcast %cst_414 : f32 to vector<10x1xf32>
    %568 = arith.addf %566, %567 : vector<10x1xf32>
    %569 = math.rsqrt %568 : vector<10x1xf32>
    %570 = vector.broadcast %569 : vector<10x1xf32> to vector<10x128xf32>
    %571 = arith.mulf %561, %570 : vector<10x128xf32>
    %572 = vector.broadcast %553 : vector<1x128xf32> to vector<10x128xf32>
    %573 = arith.mulf %571, %572 : vector<10x128xf32>
    %574 = vector.broadcast %555 : vector<1x128xf32> to vector<10x128xf32>
    %575 = arith.addf %573, %574 : vector<10x128xf32>
    %576 = vector.extract_strided_slice %575 {offsets = [8, 0], sizes = [2, 128], strides = [1, 1]} : vector<10x128xf32> to vector<2x128xf32>
    %c0_415 = arith.constant 0 : index
    %c0_416 = arith.constant 0 : index
    %577 = vector.load %arg30[%c0_415, %c0_416] : memref<1x128xf32, #tpu.memory_space<vmem>>, vector<1x128xf32>
    %578 = arith.mulf %576, %576 : vector<2x128xf32>
    %cst_417 = arith.constant dense<0.000000e+00> : vector<2xf32>
    %579 = vector.multi_reduction <add>, %578, %cst_417 [1] : vector<2x128xf32> to vector<2xf32>
    %580 = vector.shape_cast %579 : vector<2xf32> to vector<2x1xf32>
    %cst_418 = arith.constant 1.280000e+02 : f32
    %581 = vector.broadcast %cst_418 : f32 to vector<2x1xf32>
    %582 = arith.divf %580, %581 : vector<2x1xf32>
    %cst_419 = arith.constant 1.1920929E-7 : f32
    %583 = vector.broadcast %cst_419 : f32 to vector<2x1xf32>
    %584 = arith.addf %582, %583 : vector<2x1xf32>
    %585 = math.rsqrt %584 : vector<2x1xf32>
    %586 = vector.broadcast %585 : vector<2x1xf32> to vector<2x128xf32>
    %587 = arith.mulf %576, %586 : vector<2x128xf32>
    %588 = vector.broadcast %577 : vector<1x128xf32> to vector<2x128xf32>
    %589 = arith.mulf %587, %588 : vector<2x128xf32>
    %c0_420 = arith.constant 0 : index
    %c0_421 = arith.constant 0 : index
    %590 = vector.load %arg31[%c0_420, %c0_421] : memref<128x128xbf16, #tpu.memory_space<vmem>>, vector<128x128xbf16>
    %591 = arith.truncf %589 : vector<2x128xf32> to vector<2x128xbf16>
    %cst_422 = arith.constant dense<0.000000e+00> : vector<2x128xf32>
    %592 = tpu.matmul %591, %590, %cst_422 {dimension_numbers = #tpu.dot_dimension_numbers<[1], [0], [0], [1], [0, 0, 1, 1], [], []>} : vector<2x128xbf16>, vector<128x128xbf16>, vector<2x128xf32> -> vector<2x128xf32>
    %c0_423 = arith.constant 0 : index
    %c0_424 = arith.constant 0 : index
    %593 = vector.load %arg32[%c0_423, %c0_424] : memref<1x128xf32, #tpu.memory_space<vmem>>, vector<1x128xf32>
    %594 = vector.broadcast %593 : vector<1x128xf32> to vector<2x128xf32>
    %595 = arith.addf %592, %594 : vector<2x128xf32>
    %c0_425 = arith.constant 0 : index
    %c0_426 = arith.constant 0 : index
    %c0_427 = arith.constant 0 : index
    %596 = vector.load %arg33[%c0_425, %c0_426, %c0_427] : memref<1x2x128xf32, #tpu.memory_space<vmem>>, vector<1x2x128xf32>
    %597 = vector.shape_cast %596 : vector<1x2x128xf32> to vector<2x128xf32>
    %598 = vector.shape_cast %595 : vector<2x128xf32> to vector<1x2x128xf32>
    tpu.vector_store %arg33[%c0_425, %c0_426, %c0_427], %598 {strides = array<i32>} : memref<1x2x128xf32, #tpu.memory_space<vmem>>, vector<1x2x128xf32>,
    return
  }
  func.func @transform_0(%arg0: i32) -> (i32, i32, i32) {
    %c0_i32 = arith.constant 0 : i32
    %c0_i32_0 = arith.constant 0 : i32
    %c0_i32_1 = arith.constant 0 : i32
    return %arg0, %c0_i32, %c0_i32_0 : i32, i32, i32
  }
  func.func @transform_1(%arg0: i32) -> (i32, i32, i32) {
    %c0_i32 = arith.constant 0 : i32
    %c0_i32_0 = arith.constant 0 : i32
    %c0_i32_1 = arith.constant 0 : i32
    return %arg0, %c0_i32, %c0_i32_0 : i32, i32, i32
  }
  func.func @transform_2(%arg0: i32) -> (i32, i32, i32) {
    %c0_i32 = arith.constant 0 : i32
    %c0_i32_0 = arith.constant 0 : i32
    %c0_i32_1 = arith.constant 0 : i32
    return %arg0, %c0_i32, %c0_i32_0 : i32, i32, i32
  }
  func.func @transform_3(%arg0: i32) -> (i32, i32) {
    %c0_i32 = arith.constant 0 : i32
    %c0_i32_0 = arith.constant 0 : i32
    %c0_i32_1 = arith.constant 0 : i32
    return %c0_i32, %c0_i32_0 : i32, i32
  }
  func.func @transform_4(%arg0: i32) -> (i32, i32) {
    %c0_i32 = arith.constant 0 : i32
    %c0_i32_0 = arith.constant 0 : i32
    %c0_i32_1 = arith.constant 0 : i32
    return %c0_i32, %c0_i32_0 : i32, i32
  }
  func.func @transform_5(%arg0: i32) -> (i32, i32) {
    %c0_i32 = arith.constant 0 : i32
    %c0_i32_0 = arith.constant 0 : i32
    %c0_i32_1 = arith.constant 0 : i32
    return %c0_i32, %c0_i32_0 : i32, i32
  }
  func.func @transform_6(%arg0: i32) -> (i32, i32) {
    %c0_i32 = arith.constant 0 : i32
    %c0_i32_0 = arith.constant 0 : i32
    %c0_i32_1 = arith.constant 0 : i32
    return %c0_i32, %c0_i32_0 : i32, i32
  }
  func.func @transform_7(%arg0: i32) -> (i32, i32) {
    %c0_i32 = arith.constant 0 : i32
    %c0_i32_0 = arith.constant 0 : i32
    %c0_i32_1 = arith.constant 0 : i32
    return %c0_i32, %c0_i32_0 : i32, i32
  }
  func.func @transform_8(%arg0: i32) -> (i32, i32) {
    %c0_i32 = arith.constant 0 : i32
    %c0_i32_0 = arith.constant 0 : i32
    %c0_i32_1 = arith.constant 0 : i32
    return %c0_i32, %c0_i32_0 : i32, i32
  }
  func.func @transform_9(%arg0: i32) -> (i32, i32) {
    %c0_i32 = arith.constant 0 : i32
    %c0_i32_0 = arith.constant 0 : i32
    %c0_i32_1 = arith.constant 0 : i32
    return %c0_i32, %c0_i32_0 : i32, i32
  }
  func.func @transform_10(%arg0: i32) -> (i32, i32) {
    %c0_i32 = arith.constant 0 : i32
    %c0_i32_0 = arith.constant 0 : i32
    %c0_i32_1 = arith.constant 0 : i32
    return %c0_i32, %c0_i32_0 : i32, i32
  }
  func.func @transform_11(%arg0: i32) -> (i32, i32) {
    %c0_i32 = arith.constant 0 : i32
    %c0_i32_0 = arith.constant 0 : i32
    %c0_i32_1 = arith.constant 0 : i32
    return %c0_i32, %c0_i32_0 : i32, i32
  }
  func.func @transform_12(%arg0: i32) -> (i32, i32) {
    %c0_i32 = arith.constant 0 : i32
    %c0_i32_0 = arith.constant 0 : i32
    %c0_i32_1 = arith.constant 0 : i32
    return %c0_i32, %c0_i32_0 : i32, i32
  }
  func.func @transform_13(%arg0: i32) -> (i32, i32, i32, i32) {
    %c0_i32 = arith.constant 0 : i32
    %c0_i32_0 = arith.constant 0 : i32
    %c0_i32_1 = arith.constant 0 : i32
    %c0_i32_2 = arith.constant 0 : i32
    %c0_i32_3 = arith.constant 0 : i32
    return %c0_i32, %c0_i32_0, %c0_i32_1, %c0_i32_2 : i32, i32, i32, i32
  }
  func.func @transform_14(%arg0: i32) -> (i32, i32, i32, i32) {
    %c0_i32 = arith.constant 0 : i32
    %c0_i32_0 = arith.constant 0 : i32
    %c0_i32_1 = arith.constant 0 : i32
    %c0_i32_2 = arith.constant 0 : i32
    %c0_i32_3 = arith.constant 0 : i32
    return %c0_i32, %c0_i32_0, %c0_i32_1, %c0_i32_2 : i32, i32, i32, i32
  }
  func.func @transform_15(%arg0: i32) -> (i32, i32, i32, i32) {
    %c0_i32 = arith.constant 0 : i32
    %c0_i32_0 = arith.constant 0 : i32
    %c0_i32_1 = arith.constant 0 : i32
    %c0_i32_2 = arith.constant 0 : i32
    %c0_i32_3 = arith.constant 0 : i32
    return %c0_i32, %c0_i32_0, %c0_i32_1, %c0_i32_2 : i32, i32, i32, i32
  }
  func.func @transform_16(%arg0: i32) -> (i32, i32, i32, i32) {
    %c0_i32 = arith.constant 0 : i32
    %c0_i32_0 = arith.constant 0 : i32
    %c0_i32_1 = arith.constant 0 : i32
    %c0_i32_2 = arith.constant 0 : i32
    %c0_i32_3 = arith.constant 0 : i32
    return %c0_i32, %c0_i32_0, %c0_i32_1, %c0_i32_2 : i32, i32, i32, i32
  }
  func.func @transform_17(%arg0: i32) -> (i32, i32, i32, i32) {
    %c0_i32 = arith.constant 0 : i32
    %c0_i32_0 = arith.constant 0 : i32
    %c0_i32_1 = arith.constant 0 : i32
    %c0_i32_2 = arith.constant 0 : i32
    %c0_i32_3 = arith.constant 0 : i32
    return %c0_i32, %c0_i32_0, %c0_i32_1, %c0_i32_2 : i32, i32, i32, i32
  }
  func.func @transform_18(%arg0: i32) -> (i32, i32, i32, i32) {
    %c0_i32 = arith.constant 0 : i32
    %c0_i32_0 = arith.constant 0 : i32
    %c0_i32_1 = arith.constant 0 : i32
    %c0_i32_2 = arith.constant 0 : i32
    %c0_i32_3 = arith.constant 0 : i32
    return %c0_i32, %c0_i32_0, %c0_i32_1, %c0_i32_2 : i32, i32, i32, i32
  }
  func.func @transform_19(%arg0: i32) -> (i32, i32, i32, i32) {
    %c0_i32 = arith.constant 0 : i32
    %c0_i32_0 = arith.constant 0 : i32
    %c0_i32_1 = arith.constant 0 : i32
    %c0_i32_2 = arith.constant 0 : i32
    %c0_i32_3 = arith.constant 0 : i32
    return %c0_i32, %c0_i32_0, %c0_i32_1, %c0_i32_2 : i32, i32, i32, i32
  }
  func.func @transform_20(%arg0: i32) -> (i32, i32, i32) {
    %c0_i32 = arith.constant 0 : i32
    %c0_i32_0 = arith.constant 0 : i32
    %c0_i32_1 = arith.constant 0 : i32
    %c0_i32_2 = arith.constant 0 : i32
    return %c0_i32, %c0_i32_0, %c0_i32_1 : i32, i32, i32
  }
  func.func @transform_21(%arg0: i32) -> (i32, i32, i32) {
    %c0_i32 = arith.constant 0 : i32
    %c0_i32_0 = arith.constant 0 : i32
    %c0_i32_1 = arith.constant 0 : i32
    %c0_i32_2 = arith.constant 0 : i32
    return %c0_i32, %c0_i32_0, %c0_i32_1 : i32, i32, i32
  }
  func.func @transform_22(%arg0: i32) -> (i32, i32, i32) {
    %c0_i32 = arith.constant 0 : i32
    %c0_i32_0 = arith.constant 0 : i32
    %c0_i32_1 = arith.constant 0 : i32
    %c0_i32_2 = arith.constant 0 : i32
    return %c0_i32, %c0_i32_0, %c0_i32_1 : i32, i32, i32
  }
  func.func @transform_23(%arg0: i32) -> (i32, i32, i32) {
    %c0_i32 = arith.constant 0 : i32
    %c0_i32_0 = arith.constant 0 : i32
    %c0_i32_1 = arith.constant 0 : i32
    %c0_i32_2 = arith.constant 0 : i32
    return %c0_i32, %c0_i32_0, %c0_i32_1 : i32, i32, i32
  }
  func.func @transform_24(%arg0: i32) -> (i32, i32, i32) {
    %c0_i32 = arith.constant 0 : i32
    %c0_i32_0 = arith.constant 0 : i32
    %c0_i32_1 = arith.constant 0 : i32
    %c0_i32_2 = arith.constant 0 : i32
    return %c0_i32, %c0_i32_0, %c0_i32_1 : i32, i32, i32
  }
  func.func @transform_25(%arg0: i32) -> (i32, i32, i32) {
    %c0_i32 = arith.constant 0 : i32
    %c0_i32_0 = arith.constant 0 : i32
    %c0_i32_1 = arith.constant 0 : i32
    %c0_i32_2 = arith.constant 0 : i32
    return %c0_i32, %c0_i32_0, %c0_i32_1 : i32, i32, i32
  }
  func.func @transform_26(%arg0: i32) -> (i32, i32, i32) {
    %c0_i32 = arith.constant 0 : i32
    %c0_i32_0 = arith.constant 0 : i32
    %c0_i32_1 = arith.constant 0 : i32
    %c0_i32_2 = arith.constant 0 : i32
    return %c0_i32, %c0_i32_0, %c0_i32_1 : i32, i32, i32
  }
  func.func @transform_27(%arg0: i32) -> (i32, i32, i32) {
    %c0_i32 = arith.constant 0 : i32
    %c0_i32_0 = arith.constant 0 : i32
    %c0_i32_1 = arith.constant 0 : i32
    %c0_i32_2 = arith.constant 0 : i32
    return %c0_i32, %c0_i32_0, %c0_i32_1 : i32, i32, i32
  }
  func.func @transform_28(%arg0: i32) -> (i32, i32, i32) {
    %c0_i32 = arith.constant 0 : i32
    %c0_i32_0 = arith.constant 0 : i32
    %c0_i32_1 = arith.constant 0 : i32
    %c0_i32_2 = arith.constant 0 : i32
    return %c0_i32, %c0_i32_0, %c0_i32_1 : i32, i32, i32
  }
  func.func @transform_29(%arg0: i32) -> (i32, i32) {
    %c0_i32 = arith.constant 0 : i32
    %c0_i32_0 = arith.constant 0 : i32
    %c0_i32_1 = arith.constant 0 : i32
    return %c0_i32, %c0_i32_0 : i32, i32
  }
  func.func @transform_30(%arg0: i32) -> (i32, i32) {
    %c0_i32 = arith.constant 0 : i32
    %c0_i32_0 = arith.constant 0 : i32
    %c0_i32_1 = arith.constant 0 : i32
    return %c0_i32, %c0_i32_0 : i32, i32
  }
  func.func @transform_31(%arg0: i32) -> (i32, i32) {
    %c0_i32 = arith.constant 0 : i32
    %c0_i32_0 = arith.constant 0 : i32
    %c0_i32_1 = arith.constant 0 : i32
    return %c0_i32, %c0_i32_0 : i32, i32
  }
  func.func @transform_32(%arg0: i32) -> (i32, i32, i32) {
    %c0_i32 = arith.constant 0 : i32
    %c0_i32_0 = arith.constant 0 : i32
    %c0_i32_1 = arith.constant 0 : i32
    return %arg0, %c0_i32, %c0_i32_0 : i32, i32, i32
  }
}

</mosaic_0001>

<llo_original>
// kernel: verti_encoder_forward.1
$region0: #{verti_encoder_forward.1}
  #allocation0 [shape = 'u32[]', space=smem, size = 0x4, offset = 0x4, fixed_abs, tag = 'smem constant byte address 0x4 - core index']
  #allocation1 [shape = 'u32[72,128]{1,0:T(1,128)}', space=vmem, size = 0x9000, scoped, tag = 'internal scratch']
  #allocation2 [shape = 'f32[10,128]{1,0:T(8,128)}', space=vmem, size = 0x2000, scoped, tag = 'scratch operand']
  %s0 = inlined_call_operand.smem [shape: u32[33], index: -1, kind: input, shape index: {}]
  %s1 = sld [smem:[%s0]]
  %s2 = scalar_lea.smem %s0, 1
  %s3 = sld [smem:[%s2]]
  %s4 = scalar_lea.smem %s0, 2
  %s5 = sld [smem:[%s4]]
  %s6 = scalar_lea.smem %s0, 3
  %s7 = sld [smem:[%s6]]
  %s8 = scalar_lea.smem %s0, 4
  %s9 = sld [smem:[%s8]]
  %s10 = scalar_lea.smem %s0, 5
  %s11 = sld [smem:[%s10]]
  %s12 = scalar_lea.smem %s0, 6
  %s13 = sld [smem:[%s12]]
  %s14 = scalar_lea.smem %s0, 7
  %s15 = sld [smem:[%s14]]
  %s16 = scalar_lea.smem %s0, 8
  %s17 = sld [smem:[%s16]]
  %s18 = scalar_lea.smem %s0, 9
  %s19 = sld [smem:[%s18]]
  %s20 = scalar_lea.smem %s0, 10
  %s21 = sld [smem:[%s20]]
  %s22 = scalar_lea.smem %s0, 11
  %s23 = sld [smem:[%s22]]
  %s24 = scalar_lea.smem %s0, 12
  %s25 = sld [smem:[%s24]]
  %s26 = scalar_lea.smem %s0, 13
  %s27 = sld [smem:[%s26]]
  %s28 = scalar_lea.smem %s0, 14
  %s29 = sld [smem:[%s28]]
  %s30 = scalar_lea.smem %s0, 15
  %s31 = sld [smem:[%s30]]
  %s32 = scalar_lea.smem %s0, 16
  %s33 = sld [smem:[%s32]]
  %s34 = scalar_lea.smem %s0, 17
  %s35 = sld [smem:[%s34]]
  %s36 = scalar_lea.smem %s0, 18
  %s37 = sld [smem:[%s36]]
  %s38 = scalar_lea.smem %s0, 19
  %s39 = sld [smem:[%s38]]
  %s40 = scalar_lea.smem %s0, 20
  %s41 = sld [smem:[%s40]]
  %s42 = scalar_lea.smem %s0, 21
  %s43 = sld [smem:[%s42]]
  %s44 = scalar_lea.smem %s0, 22
  %s45 = sld [smem:[%s44]]
  %s46 = scalar_lea.smem %s0, 23
  %s47 = sld [smem:[%s46]]
  %s48 = scalar_lea.smem %s0, 24
  %s49 = sld [smem:[%s48]]
  %s50 = scalar_lea.smem %s0, 25
  %s51 = sld [smem:[%s50]]
  %s52 = scalar_lea.smem %s0, 26
  %s53 = sld [smem:[%s52]]
  %s54 = scalar_lea.smem %s0, 27
  %s55 = sld [smem:[%s54]]
  %s56 = scalar_lea.smem %s0, 28
  %s57 = sld [smem:[%s56]]
  %s58 = scalar_lea.smem %s0, 29
  %s59 = sld [smem:[%s58]]
  %s60 = scalar_lea.smem %s0, 30
  %s61 = sld [smem:[%s60]]
  %s62 = scalar_lea.smem %s0, 31
  %s63 = sld [smem:[%s62]]
  %s64 = scalar_lea.smem %s0, 32
  %s65 = sld [smem:[%s64]]
  %s66 = sld [smem:[#allocation0]]
  $region161: #{verti_encoder_forward.1} parent=0
    _
  %s68 = ssub.s32 1, %s66
  %s69 = scalar_select 0, %s68, %s66
  $region1: #{verti_encoder_forward.1} parent=0
    #allocation3 [shape = 'u8[2048]{0}', space=vmem, size = 0x800, scoped, tag = 'output window, operand 0']
    #allocation4 [shape = 's32[2]{0}', space=sflag, size = 0x8, scoped, tag = 'scoped memory for verti_encoder_forward.1']
    %70 = vsyncpa [#allocation4], 0
    %s71 = scalar_lea.sflag [#allocation4], 1
    %72 = vsyncpa %s71, 0
    loop: start=0, step=1, limit=4
    $region2: #{verti_encoder_forward.1} parent=1 // loop_pre_header
      _
    $region3: #{verti_encoder_forward.1} parent=1 // loop_header
      %s74 = sphi 0, %s78
      %p75 = scmp.ge.s32.totalorder %s74, 4
      %s84 = sphi 0, %s86
      %s87 = sphi 0, %s84
      %s88 = sphi 0, %s87
      %s104 = sphi 0, %s88
      %s110 = sphi 0, %s112
      %s113 = sphi 0, %s110
      %s114 = sphi 0, %s113
      %s130 = sphi 0, %s114
      %s136 = sphi 0, %s138
      %s139 = sphi 0, %s136
      %s140 = sphi 0, %s139
      %s156 = sphi 0, %s140
      %s160 = sphi 0, %s160
      %s162 = sphi 0, %s160
      %s163 = sphi 0, %s162
      %s177 = sphi 0, %s163
      %s181 = sphi 0, %s181
      %s183 = sphi 0, %s181
      %s184 = sphi 0, %s183
      %s198 = sphi 0, %s184
      %s202 = sphi 0, %s202
      %s204 = sphi 0, %s202
      %s205 = sphi 0, %s204
      %s219 = sphi 0, %s205
      %s223 = sphi 0, %s223
      %s225 = sphi 0, %s223
      %s226 = sphi 0, %s225
      %s240 = sphi 0, %s226
      %s244 = sphi 0, %s244
      %s246 = sphi 0, %s244
      %s247 = sphi 0, %s246
      %s261 = sphi 0, %s247
      %s265 = sphi 0, %s265
      %s267 = sphi 0, %s265
      %s268 = sphi 0, %s267
      %s282 = sphi 0, %s268
      %s286 = sphi 0, %s286
      %s288 = sphi 0, %s286
      %s289 = sphi 0, %s288
      %s303 = sphi 0, %s289
      %s307 = sphi 0, %s307
      %s309 = sphi 0, %s307
      %s310 = sphi 0, %s309
      %s324 = sphi 0, %s310
      %s328 = sphi 0, %s328
      %s330 = sphi 0, %s328
      %s331 = sphi 0, %s330
      %s345 = sphi 0, %s331
      %s349 = sphi 0, %s349
      %s351 = sphi 0, %s349
      %s352 = sphi 0, %s351
      %s366 = sphi 0, %s352
      %s370 = sphi 0, %s370
      %s372 = sphi 0, %s370
      %s373 = sphi 0, %s372
      %s387 = sphi 0, %s373
      %s391 = sphi 0, %s391
      %s393 = sphi 0, %s391
      %s394 = sphi 0, %s393
      %s408 = sphi 0, %s394
      %s412 = sphi 0, %s412
      %s414 = sphi 0, %s412
      %s415 = sphi 0, %s414
      %s429 = sphi 0, %s415
      %s433 = sphi 0, %s433
      %s435 = sphi 0, %s433
      %s436 = sphi 0, %s435
      %s450 = sphi 0, %s436
      %s454 = sphi 0, %s454
      %s456 = sphi 0, %s454
      %s457 = sphi 0, %s456
      %s471 = sphi 0, %s457
      %s475 = sphi 0, %s475
      %s477 = sphi 0, %s475
      %s478 = sphi 0, %s477
      %s492 = sphi 0, %s478
      %s496 = sphi 0, %s496
      %s498 = sphi 0, %s496
      %s499 = sphi 0, %s498
      %s513 = sphi 0, %s499
      %s517 = sphi 0, %s517
      %s519 = sphi 0, %s517
      %s520 = sphi 0, %s519
      %s534 = sphi 0, %s520
      %s538 = sphi 0, %s538
      %s540 = sphi 0, %s538
      %s541 = sphi 0, %s540
      %s555 = sphi 0, %s541
      %s559 = sphi 0, %s559
      %s561 = sphi 0, %s559
      %s562 = sphi 0, %s561
      %s576 = sphi 0, %s562
      %s580 = sphi 0, %s580
      %s582 = sphi 0, %s580
      %s583 = sphi 0, %s582
      %s597 = sphi 0, %s583
      %s601 = sphi 0, %s601
      %s603 = sphi 0, %s601
      %s604 = sphi 0, %s603
      %s618 = sphi 0, %s604
      %s622 = sphi 0, %s622
      %s624 = sphi 0, %s622
      %s625 = sphi 0, %s624
      %s639 = sphi 0, %s625
      %s643 = sphi 0, %s643
      %s645 = sphi 0, %s643
      %s646 = sphi 0, %s645
      %s660 = sphi 0, %s646
      %s664 = sphi 0, %s664
      %s666 = sphi 0, %s664
      %s667 = sphi 0, %s666
      %s681 = sphi 0, %s667
      %s685 = sphi 0, %s685
      %s687 = sphi 0, %s685
      %s688 = sphi 0, %s687
      %s702 = sphi 0, %s688
      %s706 = sphi 0, %s706
      %s708 = sphi 0, %s706
      %s709 = sphi 0, %s708
      %s723 = sphi 0, %s709
      %s727 = sphi 0, %s727
      %s729 = sphi 0, %s727
      %s730 = sphi 0, %s729
      %s744 = sphi 0, %s730
      %s748 = sphi 0, %s748
      %s750 = sphi 0, %s748
      %s751 = sphi 0, %s750
      %s765 = sphi 0, %s751
      %s771 = sphi 0, %s773
      %s774 = sphi 0, %s771
      %s775 = sphi 0, %s774
      %s791 = sphi 0, %s775
    $region4: #{verti_encoder_forward.1} parent=1 // loop_header_branch
      %77 = sbr.rel (%p75) target = $region8
    $region5: #{verti_encoder_forward.1} parent=1 // loop_body
      %s79 = ssub.s32 %s74, 1
      %s80 = ssub.s32 %s74, 2
      %s81 = sadd.s32 %s74, 1
      %s82 = ssub.s32 %s74, %s81
      %p83 = scmp.eq.s32.totalorder %s82, 0
      %s85 = sadd.s32 %s84, 1
      %s86 = scalar_select %p83, %s84, %s85
      %p89 = pneg %p83
      %p90 = scmp.eq.s32.totalorder %s74, 1
      %p91 = por %p89, %p90
      %p92 = scmp.ne.s32.totalorder %s84, %s87
      %p93 = scmp.eq.s32.totalorder %s74, 0
      %p94 = por %p92, %p93
      %p95 = scmp.ne.s32.totalorder %s84, %s87
      %p96 = scmp.eq.s32.totalorder %s79, 1
      %p97 = por %p95, %p96
      %p98 = scmp.ne.s32.totalorder %s87, %s88
      %p99 = scmp.eq.s32.totalorder %s79, 0
      %p100 = por %p98, %p99
      %p101 = scmp.ne.s32.totalorder %s87, %s88
      %p102 = scmp.eq.s32.totalorder %s80, 1
      %p103 = por %p101, %p102
      %p105 = scmp.ne.s32.totalorder %s88, %s104
      %p106 = scmp.eq.s32.totalorder %s80, 0
      %p107 = por %p105, %p106
      %s108 = ssub.s32 %s74, %s81
      %p109 = scmp.eq.s32.totalorder %s108, 0
      %s111 = sadd.s32 %s110, 1
      %s112 = scalar_select %p109, %s110, %s111
      %p115 = pneg %p109
      %p116 = scmp.eq.s32.totalorder %s74, 1
      %p117 = por %p115, %p116
      %p118 = scmp.ne.s32.totalorder %s110, %s113
      %p119 = scmp.eq.s32.totalorder %s74, 0
      %p120 = por %p118, %p119
      %p121 = scmp.ne.s32.totalorder %s110, %s113
      %p122 = scmp.eq.s32.totalorder %s79, 1
      %p123 = por %p121, %p122
      %p124 = scmp.ne.s32.totalorder %s113, %s114
      %p125 = scmp.eq.s32.totalorder %s79, 0
      %p126 = por %p124, %p125
      %p127 = scmp.ne.s32.totalorder %s113, %s114
      %p128 = scmp.eq.s32.totalorder %s80, 1
      %p129 = por %p127, %p128
      %p131 = scmp.ne.s32.totalorder %s114, %s130
      %p132 = scmp.eq.s32.totalorder %s80, 0
      %p133 = por %p131, %p132
      %s134 = ssub.s32 %s74, %s81
      %p135 = scmp.eq.s32.totalorder %s134, 0
      %s137 = sadd.s32 %s136, 1
      %s138 = scalar_select %p135, %s136, %s137
      %p141 = pneg %p135
      %p142 = scmp.eq.s32.totalorder %s74, 1
      %p143 = por %p141, %p142
      %p144 = scmp.ne.s32.totalorder %s136, %s139
      %p145 = scmp.eq.s32.totalorder %s74, 0
      %p146 = por %p144, %p145
      %p147 = scmp.ne.s32.totalorder %s136, %s139
      %p148 = scmp.eq.s32.totalorder %s79, 1
      %p149 = por %p147, %p148
      %p150 = scmp.ne.s32.totalorder %s139, %s140
      %p151 = scmp.eq.s32.totalorder %s79, 0
      %p152 = por %p150, %p151
      %p153 = scmp.ne.s32.totalorder %s139, %s140
      %p154 = scmp.eq.s32.totalorder %s80, 1
      %p155 = por %p153, %p154
      %p157 = scmp.ne.s32.totalorder %s140, %s156
      %p158 = scmp.eq.s32.totalorder %s80, 0
      %p159 = por %p157, %p158
      %s161 = sadd.s32 %s160, 1
      %p164 = scmp.eq.s32.totalorder %s74, 1
      %p165 = scmp.ne.s32.totalorder %s160, %s162
      %p166 = scmp.eq.s32.totalorder %s74, 0
      %p167 = por %p165, %p166
      %p168 = scmp.ne.s32.totalorder %s160, %s162
      %p169 = scmp.eq.s32.totalorder %s79, 1
      %p170 = por %p168, %p169
      %p171 = scmp.ne.s32.totalorder %s162, %s163
      %p172 = scmp.eq.s32.totalorder %s79, 0
      %p173 = por %p171, %p172
      %p174 = scmp.ne.s32.totalorder %s162, %s163
      %p175 = scmp.eq.s32.totalorder %s80, 1
      %p176 = por %p174, %p175
      %p178 = scmp.ne.s32.totalorder %s163, %s177
      %p179 = scmp.eq.s32.totalorder %s80, 0
      %p180 = por %p178, %p179
      %s182 = sadd.s32 %s181, 1
      %p185 = scmp.eq.s32.totalorder %s74, 1
      %p186 = scmp.ne.s32.totalorder %s181, %s183
      %p187 = scmp.eq.s32.totalorder %s74, 0
      %p188 = por %p186, %p187
      %p189 = scmp.ne.s32.totalorder %s181, %s183
      %p190 = scmp.eq.s32.totalorder %s79, 1
      %p191 = por %p189, %p190
      %p192 = scmp.ne.s32.totalorder %s183, %s184
      %p193 = scmp.eq.s32.totalorder %s79, 0
      %p194 = por %p192, %p193
      %p195 = scmp.ne.s32.totalorder %s183, %s184
      %p196 = scmp.eq.s32.totalorder %s80, 1
      %p197 = por %p195, %p196
      %p199 = scmp.ne.s32.totalorder %s184, %s198
      %p200 = scmp.eq.s32.totalorder %s80, 0
      %p201 = por %p199, %p200
      %s203 = sadd.s32 %s202, 1
      %p206 = scmp.eq.s32.totalorder %s74, 1
      %p207 = scmp.ne.s32.totalorder %s202, %s204
      %p208 = scmp.eq.s32.totalorder %s74, 0
      %p209 = por %p207, %p208
      %p210 = scmp.ne.s32.totalorder %s202, %s204
      %p211 = scmp.eq.s32.totalorder %s79, 1
      %p212 = por %p210, %p211
      %p213 = scmp.ne.s32.totalorder %s204, %s205
      %p214 = scmp.eq.s32.totalorder %s79, 0
      %p215 = por %p213, %p214
      %p216 = scmp.ne.s32.totalorder %s204, %s205
      %p217 = scmp.eq.s32.totalorder %s80, 1
      %p218 = por %p216, %p217
      %p220 = scmp.ne.s32.totalorder %s205, %s219
      %p221 = scmp.eq.s32.totalorder %s80, 0
      %p222 = por %p220, %p221
      %s224 = sadd.s32 %s223, 1
      %p227 = scmp.eq.s32.totalorder %s74, 1
      %p228 = scmp.ne.s32.totalorder %s223, %s225
      %p229 = scmp.eq.s32.totalorder %s74, 0
      %p230 = por %p228, %p229
      %p231 = scmp.ne.s32.totalorder %s223, %s225
      %p232 = scmp.eq.s32.totalorder %s79, 1
      %p233 = por %p231, %p232
      %p234 = scmp.ne.s32.totalorder %s225, %s226
      %p235 = scmp.eq.s32.totalorder %s79, 0
      %p236 = por %p234, %p235
      %p237 = scmp.ne.s32.totalorder %s225, %s226
      %p238 = scmp.eq.s32.totalorder %s80, 1
      %p239 = por %p237, %p238
      %p241 = scmp.ne.s32.totalorder %s226, %s240
      %p242 = scmp.eq.s32.totalorder %s80, 0
      %p243 = por %p241, %p242
      %s245 = sadd.s32 %s244, 1
      %p248 = scmp.eq.s32.totalorder %s74, 1
      %p249 = scmp.ne.s32.totalorder %s244, %s246
      %p250 = scmp.eq.s32.totalorder %s74, 0
      %p251 = por %p249, %p250
      %p252 = scmp.ne.s32.totalorder %s244, %s246
      %p253 = scmp.eq.s32.totalorder %s79, 1
      %p254 = por %p252, %p253
      %p255 = scmp.ne.s32.totalorder %s246, %s247
      %p256 = scmp.eq.s32.totalorder %s79, 0
      %p257 = por %p255, %p256
      %p258 = scmp.ne.s32.totalorder %s246, %s247
      %p259 = scmp.eq.s32.totalorder %s80, 1
      %p260 = por %p258, %p259
      %p262 = scmp.ne.s32.totalorder %s247, %s261
      %p263 = scmp.eq.s32.totalorder %s80, 0
      %p264 = por %p262, %p263
      %s266 = sadd.s32 %s265, 1
      %p269 = scmp.eq.s32.totalorder %s74, 1
      %p270 = scmp.ne.s32.totalorder %s265, %s267
      %p271 = scmp.eq.s32.totalorder %s74, 0
      %p272 = por %p270, %p271
      %p273 = scmp.ne.s32.totalorder %s265, %s267
      %p274 = scmp.eq.s32.totalorder %s79, 1
      %p275 = por %p273, %p274
      %p276 = scmp.ne.s32.totalorder %s267, %s268
      %p277 = scmp.eq.s32.totalorder %s79, 0
      %p278 = por %p276, %p277
      %p279 = scmp.ne.s32.totalorder %s267, %s268
      %p280 = scmp.eq.s32.totalorder %s80, 1
      %p281 = por %p279, %p280
      %p283 = scmp.ne.s32.totalorder %s268, %s282
      %p284 = scmp.eq.s32.totalorder %s80, 0
      %p285 = por %p283, %p284
      %s287 = sadd.s32 %s286, 1
      %p290 = scmp.eq.s32.totalorder %s74, 1
      %p291 = scmp.ne.s32.totalorder %s286, %s288
      %p292 = scmp.eq.s32.totalorder %s74, 0
      %p293 = por %p291, %p292
      %p294 = scmp.ne.s32.totalorder %s286, %s288
      %p295 = scmp.eq.s32.totalorder %s79, 1
      %p296 = por %p294, %p295
      %p297 = scmp.ne.s32.totalorder %s288, %s289
      %p298 = scmp.eq.s32.totalorder %s79, 0
      %p299 = por %p297, %p298
      %p300 = scmp.ne.s32.totalorder %s288, %s289
      %p301 = scmp.eq.s32.totalorder %s80, 1
      %p302 = por %p300, %p301
      %p304 = scmp.ne.s32.totalorder %s289, %s303
      %p305 = scmp.eq.s32.totalorder %s80, 0
      %p306 = por %p304, %p305
      %s308 = sadd.s32 %s307, 1
      %p311 = scmp.eq.s32.totalorder %s74, 1
      %p312 = scmp.ne.s32.totalorder %s307, %s309
      %p313 = scmp.eq.s32.totalorder %s74, 0
      %p314 = por %p312, %p313
      %p315 = scmp.ne.s32.totalorder %s307, %s309
      %p316 = scmp.eq.s32.totalorder %s79, 1
      %p317 = por %p315, %p316
      %p318 = scmp.ne.s32.totalorder %s309, %s310
      %p319 = scmp.eq.s32.totalorder %s79, 0
      %p320 = por %p318, %p319
      %p321 = scmp.ne.s32.totalorder %s309, %s310
      %p322 = scmp.eq.s32.totalorder %s80, 1
      %p323 = por %p321, %p322
      %p325 = scmp.ne.s32.totalorder %s310, %s324
      %p326 = scmp.eq.s32.totalorder %s80, 0
      %p327 = por %p325, %p326
      %s329 = sadd.s32 %s328, 1
      %p332 = scmp.eq.s32.totalorder %s74, 1
      %p333 = scmp.ne.s32.totalorder %s328, %s330
      %p334 = scmp.eq.s32.totalorder %s74, 0
      %p335 = por %p333, %p334
      %p336 = scmp.ne.s32.totalorder %s328, %s330
      %p337 = scmp.eq.s32.totalorder %s79, 1
      %p338 = por %p336, %p337
      %p339 = scmp.ne.s32.totalorder %s330, %s331
      %p340 = scmp.eq.s32.totalorder %s79, 0
      %p341 = por %p339, %p340
      %p342 = scmp.ne.s32.totalorder %s330, %s331
      %p343 = scmp.eq.s32.totalorder %s80, 1
      %p344 = por %p342, %p343
      %p346 = scmp.ne.s32.totalorder %s331, %s345
      %p347 = scmp.eq.s32.totalorder %s80, 0
      %p348 = por %p346, %p347
      %s350 = sadd.s32 %s349, 1
      %p353 = scmp.eq.s32.totalorder %s74, 1
      %p354 = scmp.ne.s32.totalorder %s349, %s351
      %p355 = scmp.eq.s32.totalorder %s74, 0
      %p356 = por %p354, %p355
      %p357 = scmp.ne.s32.totalorder %s349, %s351
      %p358 = scmp.eq.s32.totalorder %s79, 1
      %p359 = por %p357, %p358
      %p360 = scmp.ne.s32.totalorder %s351, %s352
      %p361 = scmp.eq.s32.totalorder %s79, 0
      %p362 = por %p360, %p361
      %p363 = scmp.ne.s32.totalorder %s351, %s352
      %p364 = scmp.eq.s32.totalorder %s80, 1
      %p365 = por %p363, %p364
      %p367 = scmp.ne.s32.totalorder %s352, %s366
      %p368 = scmp.eq.s32.totalorder %s80, 0
      %p369 = por %p367, %p368
      %s371 = sadd.s32 %s370, 1
      %p374 = scmp.eq.s32.totalorder %s74, 1
      %p375 = scmp.ne.s32.totalorder %s370, %s372
      %p376 = scmp.eq.s32.totalorder %s74, 0
      %p377 = por %p375, %p376
      %p378 = scmp.ne.s32.totalorder %s370, %s372
      %p379 = scmp.eq.s32.totalorder %s79, 1
      %p380 = por %p378, %p379
      %p381 = scmp.ne.s32.totalorder %s372, %s373
      %p382 = scmp.eq.s32.totalorder %s79, 0
      %p383 = por %p381, %p382
      %p384 = scmp.ne.s32.totalorder %s372, %s373
      %p385 = scmp.eq.s32.totalorder %s80, 1
      %p386 = por %p384, %p385
      %p388 = scmp.ne.s32.totalorder %s373, %s387
      %p389 = scmp.eq.s32.totalorder %s80, 0
      %p390 = por %p388, %p389
      %s392 = sadd.s32 %s391, 1
      %p395 = scmp.eq.s32.totalorder %s74, 1
      %p396 = scmp.ne.s32.totalorder %s391, %s393
      %p397 = scmp.eq.s32.totalorder %s74, 0
      %p398 = por %p396, %p397
      %p399 = scmp.ne.s32.totalorder %s391, %s393
      %p400 = scmp.eq.s32.totalorder %s79, 1
      %p401 = por %p399, %p400
      %p402 = scmp.ne.s32.totalorder %s393, %s394
      %p403 = scmp.eq.s32.totalorder %s79, 0
      %p404 = por %p402, %p403
      %p405 = scmp.ne.s32.totalorder %s393, %s394
      %p406 = scmp.eq.s32.totalorder %s80, 1
      %p407 = por %p405, %p406
      %p409 = scmp.ne.s32.totalorder %s394, %s408
      %p410 = scmp.eq.s32.totalorder %s80, 0
      %p411 = por %p409, %p410
      %s413 = sadd.s32 %s412, 1
      %p416 = scmp.eq.s32.totalorder %s74, 1
      %p417 = scmp.ne.s32.totalorder %s412, %s414
      %p418 = scmp.eq.s32.totalorder %s74, 0
      %p419 = por %p417, %p418
      %p420 = scmp.ne.s32.totalorder %s412, %s414
      %p421 = scmp.eq.s32.totalorder %s79, 1
      %p422 = por %p420, %p421
      %p423 = scmp.ne.s32.totalorder %s414, %s415
      %p424 = scmp.eq.s32.totalorder %s79, 0
      %p425 = por %p423, %p424
      %p426 = scmp.ne.s32.totalorder %s414, %s415
      %p427 = scmp.eq.s32.totalorder %s80, 1
      %p428 = por %p426, %p427
      %p430 = scmp.ne.s32.totalorder %s415, %s429
      %p431 = scmp.eq.s32.totalorder %s80, 0
      %p432 = por %p430, %p431
      %s434 = sadd.s32 %s433, 1
      %p437 = scmp.eq.s32.totalorder %s74, 1
      %p438 = scmp.ne.s32.totalorder %s433, %s435
      %p439 = scmp.eq.s32.totalorder %s74, 0
      %p440 = por %p438, %p439
      %p441 = scmp.ne.s32.totalorder %s433, %s435
      %p442 = scmp.eq.s32.totalorder %s79, 1
      %p443 = por %p441, %p442
      %p444 = scmp.ne.s32.totalorder %s435, %s436
      %p445 = scmp.eq.s32.totalorder %s79, 0
      %p446 = por %p444, %p445
      %p447 = scmp.ne.s32.totalorder %s435, %s436
      %p448 = scmp.eq.s32.totalorder %s80, 1
      %p449 = por %p447, %p448
      %p451 = scmp.ne.s32.totalorder %s436, %s450
      %p452 = scmp.eq.s32.totalorder %s80, 0
      %p453 = por %p451, %p452
      %s455 = sadd.s32 %s454, 1
      %p458 = scmp.eq.s32.totalorder %s74, 1
      %p459 = scmp.ne.s32.totalorder %s454, %s456
      %p460 = scmp.eq.s32.totalorder %s74, 0
      %p461 = por %p459, %p460
      %p462 = scmp.ne.s32.totalorder %s454, %s456
      %p463 = scmp.eq.s32.totalorder %s79, 1
      %p464 = por %p462, %p463
      %p465 = scmp.ne.s32.totalorder %s456, %s457
      %p466 = scmp.eq.s32.totalorder %s79, 0
      %p467 = por %p465, %p466
      %p468 = scmp.ne.s32.totalorder %s456, %s457
      %p469 = scmp.eq.s32.totalorder %s80, 1
      %p470 = por %p468, %p469
      %p472 = scmp.ne.s32.totalorder %s457, %s471
      %p473 = scmp.eq.s32.totalorder %s80, 0
      %p474 = por %p472, %p473
      %s476 = sadd.s32 %s475, 1
      %p479 = scmp.eq.s32.totalorder %s74, 1
      %p480 = scmp.ne.s32.totalorder %s475, %s477
      %p481 = scmp.eq.s32.totalorder %s74, 0
      %p482 = por %p480, %p481
      %p483 = scmp.ne.s32.totalorder %s475, %s477
      %p484 = scmp.eq.s32.totalorder %s79, 1
      %p485 = por %p483, %p484
      %p486 = scmp.ne.s32.totalorder %s477, %s478
      %p487 = scmp.eq.s32.totalorder %s79, 0
      %p488 = por %p486, %p487
      %p489 = scmp.ne.s32.totalorder %s477, %s478
      %p490 = scmp.eq.s32.totalorder %s80, 1
      %p491 = por %p489, %p490
      %p493 = scmp.ne.s32.totalorder %s478, %s492
      %p494 = scmp.eq.s32.totalorder %s80, 0
      %p495 = por %p493, %p494
      %s497 = sadd.s32 %s496, 1
      %p500 = scmp.eq.s32.totalorder %s74, 1
      %p501 = scmp.ne.s32.totalorder %s496, %s498
      %p502 = scmp.eq.s32.totalorder %s74, 0
      %p503 = por %p501, %p502
      %p504 = scmp.ne.s32.totalorder %s496, %s498
      %p505 = scmp.eq.s32.totalorder %s79, 1
      %p506 = por %p504, %p505
      %p507 = scmp.ne.s32.totalorder %s498, %s499
      %p508 = scmp.eq.s32.totalorder %s79, 0
      %p509 = por %p507, %p508
      %p510 = scmp.ne.s32.totalorder %s498, %s499
      %p511 = scmp.eq.s32.totalorder %s80, 1
      %p512 = por %p510, %p511
      %p514 = scmp.ne.s32.totalorder %s499, %s513
      %p515 = scmp.eq.s32.totalorder %s80, 0
      %p516 = por %p514, %p515
      %s518 = sadd.s32 %s517, 1
      %p521 = scmp.eq.s32.totalorder %s74, 1
      %p522 = scmp.ne.s32.totalorder %s517, %s519
      %p523 = scmp.eq.s32.totalorder %s74, 0
      %p524 = por %p522, %p523
      %p525 = scmp.ne.s32.totalorder %s517, %s519
      %p526 = scmp.eq.s32.totalorder %s79, 1
      %p527 = por %p525, %p526
      %p528 = scmp.ne.s32.totalorder %s519, %s520
      %p529 = scmp.eq.s32.totalorder %s79, 0
      %p530 = por %p528, %p529
      %p531 = scmp.ne.s32.totalorder %s519, %s520
      %p532 = scmp.eq.s32.totalorder %s80, 1
      %p533 = por %p531, %p532
      %p535 = scmp.ne.s32.totalorder %s520, %s534
      %p536 = scmp.eq.s32.totalorder %s80, 0
      %p537 = por %p535, %p536
      %s539 = sadd.s32 %s538, 1
      %p542 = scmp.eq.s32.totalorder %s74, 1
      %p543 = scmp.ne.s32.totalorder %s538, %s540
      %p544 = scmp.eq.s32.totalorder %s74, 0
      %p545 = por %p543, %p544
      %p546 = scmp.ne.s32.totalorder %s538, %s540
      %p547 = scmp.eq.s32.totalorder %s79, 1
      %p548 = por %p546, %p547
      %p549 = scmp.ne.s32.totalorder %s540, %s541
      %p550 = scmp.eq.s32.totalorder %s79, 0
      %p551 = por %p549, %p550
      %p552 = scmp.ne.s32.totalorder %s540, %s541
      %p553 = scmp.eq.s32.totalorder %s80, 1
      %p554 = por %p552, %p553
      %p556 = scmp.ne.s32.totalorder %s541, %s555
      %p557 = scmp.eq.s32.totalorder %s80, 0
      %p558 = por %p556, %p557
      %s560 = sadd.s32 %s559, 1
      %p563 = scmp.eq.s32.totalorder %s74, 1
      %p564 = scmp.ne.s32.totalorder %s559, %s561
      %p565 = scmp.eq.s32.totalorder %s74, 0
      %p566 = por %p564, %p565
      %p567 = scmp.ne.s32.totalorder %s559, %s561
      %p568 = scmp.eq.s32.totalorder %s79, 1
      %p569 = por %p567, %p568
      %p570 = scmp.ne.s32.totalorder %s561, %s562
      %p571 = scmp.eq.s32.totalorder %s79, 0
      %p572 = por %p570, %p571
      %p573 = scmp.ne.s32.totalorder %s561, %s562
      %p574 = scmp.eq.s32.totalorder %s80, 1
      %p575 = por %p573, %p574
      %p577 = scmp.ne.s32.totalorder %s562, %s576
      %p578 = scmp.eq.s32.totalorder %s80, 0
      %p579 = por %p577, %p578
      %s581 = sadd.s32 %s580, 1
      %p584 = scmp.eq.s32.totalorder %s74, 1
      %p585 = scmp.ne.s32.totalorder %s580, %s582
      %p586 = scmp.eq.s32.totalorder %s74, 0
      %p587 = por %p585, %p586
      %p588 = scmp.ne.s32.totalorder %s580, %s582
      %p589 = scmp.eq.s32.totalorder %s79, 1
      %p590 = por %p588, %p589
      %p591 = scmp.ne.s32.totalorder %s582, %s583
      %p592 = scmp.eq.s32.totalorder %s79, 0
      %p593 = por %p591, %p592
      %p594 = scmp.ne.s32.totalorder %s582, %s583
      %p595 = scmp.eq.s32.totalorder %s80, 1
      %p596 = por %p594, %p595
      %p598 = scmp.ne.s32.totalorder %s583, %s597
      %p599 = scmp.eq.s32.totalorder %s80, 0
      %p600 = por %p598, %p599
      %s602 = sadd.s32 %s601, 1
      %p605 = scmp.eq.s32.totalorder %s74, 1
      %p606 = scmp.ne.s32.totalorder %s601, %s603
      %p607 = scmp.eq.s32.totalorder %s74, 0
      %p608 = por %p606, %p607
      %p609 = scmp.ne.s32.totalorder %s601, %s603
      %p610 = scmp.eq.s32.totalorder %s79, 1
      %p611 = por %p609, %p610
      %p612 = scmp.ne.s32.totalorder %s603, %s604
      %p613 = scmp.eq.s32.totalorder %s79, 0
      %p614 = por %p612, %p613
      %p615 = scmp.ne.s32.totalorder %s603, %s604
      %p616 = scmp.eq.s32.totalorder %s80, 1
      %p617 = por %p615, %p616
      %p619 = scmp.ne.s32.totalorder %s604, %s618
      %p620 = scmp.eq.s32.totalorder %s80, 0
      %p621 = por %p619, %p620
      %s623 = sadd.s32 %s622, 1
      %p626 = scmp.eq.s32.totalorder %s74, 1
      %p627 = scmp.ne.s32.totalorder %s622, %s624
      %p628 = scmp.eq.s32.totalorder %s74, 0
      %p629 = por %p627, %p628
      %p630 = scmp.ne.s32.totalorder %s622, %s624
      %p631 = scmp.eq.s32.totalorder %s79, 1
      %p632 = por %p630, %p631
      %p633 = scmp.ne.s32.totalorder %s624, %s625
      %p634 = scmp.eq.s32.totalorder %s79, 0
      %p635 = por %p633, %p634
      %p636 = scmp.ne.s32.totalorder %s624, %s625
      %p637 = scmp.eq.s32.totalorder %s80, 1
      %p638 = por %p636, %p637
      %p640 = scmp.ne.s32.totalorder %s625, %s639
      %p641 = scmp.eq.s32.totalorder %s80, 0
      %p642 = por %p640, %p641
      %s644 = sadd.s32 %s643, 1
      %p647 = scmp.eq.s32.totalorder %s74, 1
      %p648 = scmp.ne.s32.totalorder %s643, %s645
      %p649 = scmp.eq.s32.totalorder %s74, 0
      %p650 = por %p648, %p649
      %p651 = scmp.ne.s32.totalorder %s643, %s645
      %p652 = scmp.eq.s32.totalorder %s79, 1
      %p653 = por %p651, %p652
      %p654 = scmp.ne.s32.totalorder %s645, %s646
      %p655 = scmp.eq.s32.totalorder %s79, 0
      %p656 = por %p654, %p655
      %p657 = scmp.ne.s32.totalorder %s645, %s646
      %p658 = scmp.eq.s32.totalorder %s80, 1
      %p659 = por %p657, %p658
      %p661 = scmp.ne.s32.totalorder %s646, %s660
      %p662 = scmp.eq.s32.totalorder %s80, 0
      %p663 = por %p661, %p662
      %s665 = sadd.s32 %s664, 1
      %p668 = scmp.eq.s32.totalorder %s74, 1
      %p669 = scmp.ne.s32.totalorder %s664, %s666
      %p670 = scmp.eq.s32.totalorder %s74, 0
      %p671 = por %p669, %p670
      %p672 = scmp.ne.s32.totalorder %s664, %s666
      %p673 = scmp.eq.s32.totalorder %s79, 1
      %p674 = por %p672, %p673
      %p675 = scmp.ne.s32.totalorder %s666, %s667
      %p676 = scmp.eq.s32.totalorder %s79, 0
      %p677 = por %p675, %p676
      %p678 = scmp.ne.s32.totalorder %s666, %s667
      %p679 = scmp.eq.s32.totalorder %s80, 1
      %p680 = por %p678, %p679
      %p682 = scmp.ne.s32.totalorder %s667, %s681
      %p683 = scmp.eq.s32.totalorder %s80, 0
      %p684 = por %p682, %p683
      %s686 = sadd.s32 %s685, 1
      %p689 = scmp.eq.s32.totalorder %s74, 1
      %p690 = scmp.ne.s32.totalorder %s685, %s687
      %p691 = scmp.eq.s32.totalorder %s74, 0
      %p692 = por %p690, %p691
      %p693 = scmp.ne.s32.totalorder %s685, %s687
      %p694 = scmp.eq.s32.totalorder %s79, 1
      %p695 = por %p693, %p694
      %p696 = scmp.ne.s32.totalorder %s687, %s688
      %p697 = scmp.eq.s32.totalorder %s79, 0
      %p698 = por %p696, %p697
      %p699 = scmp.ne.s32.totalorder %s687, %s688
      %p700 = scmp.eq.s32.totalorder %s80, 1
      %p701 = por %p699, %p700
      %p703 = scmp.ne.s32.totalorder %s688, %s702
      %p704 = scmp.eq.s32.totalorder %s80, 0
      %p705 = por %p703, %p704
      %s707 = sadd.s32 %s706, 1
      %p710 = scmp.eq.s32.totalorder %s74, 1
      %p711 = scmp.ne.s32.totalorder %s706, %s708
      %p712 = scmp.eq.s32.totalorder %s74, 0
      %p713 = por %p711, %p712
      %p714 = scmp.ne.s32.totalorder %s706, %s708
      %p715 = scmp.eq.s32.totalorder %s79, 1
      %p716 = por %p714, %p715
      %p717 = scmp.ne.s32.totalorder %s708, %s709
      %p718 = scmp.eq.s32.totalorder %s79, 0
      %p719 = por %p717, %p718
      %p720 = scmp.ne.s32.totalorder %s708, %s709
      %p721 = scmp.eq.s32.totalorder %s80, 1
      %p722 = por %p720, %p721
      %p724 = scmp.ne.s32.totalorder %s709, %s723
      %p725 = scmp.eq.s32.totalorder %s80, 0
      %p726 = por %p724, %p725
      %s728 = sadd.s32 %s727, 1
      %p731 = scmp.eq.s32.totalorder %s74, 1
      %p732 = scmp.ne.s32.totalorder %s727, %s729
      %p733 = scmp.eq.s32.totalorder %s74, 0
      %p734 = por %p732, %p733
      %p735 = scmp.ne.s32.totalorder %s727, %s729
      %p736 = scmp.eq.s32.totalorder %s79, 1
      %p737 = por %p735, %p736
      %p738 = scmp.ne.s32.totalorder %s729, %s730
      %p739 = scmp.eq.s32.totalorder %s79, 0
      %p740 = por %p738, %p739
      %p741 = scmp.ne.s32.totalorder %s729, %s730
      %p742 = scmp.eq.s32.totalorder %s80, 1
      %p743 = por %p741, %p742
      %p745 = scmp.ne.s32.totalorder %s730, %s744
      %p746 = scmp.eq.s32.totalorder %s80, 0
      %p747 = por %p745, %p746
      %s749 = sadd.s32 %s748, 1
      %p752 = scmp.eq.s32.totalorder %s74, 1
      %p753 = scmp.ne.s32.totalorder %s748, %s750
      %p754 = scmp.eq.s32.totalorder %s74, 0
      %p755 = por %p753, %p754
      %p756 = scmp.ne.s32.totalorder %s748, %s750
      %p757 = scmp.eq.s32.totalorder %s79, 1
      %p758 = por %p756, %p757
      %p759 = scmp.ne.s32.totalorder %s750, %s751
      %p760 = scmp.eq.s32.totalorder %s79, 0
      %p761 = por %p759, %p760
      %p762 = scmp.ne.s32.totalorder %s750, %s751
      %p763 = scmp.eq.s32.totalorder %s80, 1
      %p764 = por %p762, %p763
      %p766 = scmp.ne.s32.totalorder %s751, %s765
      %p767 = scmp.eq.s32.totalorder %s80, 0
      %p768 = por %p766, %p767
      %s769 = ssub.s32 %s74, %s81
      %p770 = scmp.eq.s32.totalorder %s769, 0
      %s772 = sadd.s32 %s771, 1
      %s773 = scalar_select %p770, %s771, %s772
      %p776 = pneg %p770
      %p777 = scmp.eq.s32.totalorder %s74, 1
      %p778 = por %p776, %p777
      %p779 = scmp.ne.s32.totalorder %s771, %s774
      %p780 = scmp.eq.s32.totalorder %s74, 0
      %p781 = por %p779, %p780
      %p782 = scmp.ne.s32.totalorder %s771, %s774
      %p783 = scmp.eq.s32.totalorder %s79, 1
      %p784 = por %p782, %p783
      %p785 = scmp.ne.s32.totalorder %s774, %s775
      %p786 = scmp.eq.s32.totalorder %s79, 0
      %p787 = por %p785, %p786
      %p788 = scmp.ne.s32.totalorder %s774, %s775
      %p789 = scmp.eq.s32.totalorder %s80, 1
      %p790 = por %p788, %p789
      %p792 = scmp.ne.s32.totalorder %s775, %s791
      %p793 = scmp.eq.s32.totalorder %s80, 0
      %p794 = por %p792, %p793
      %p795 = scmp.le.s32.totalorder 1, %s74
      %p796 = scmp.lt.s32.totalorder %s74, 3
      %p797 = pnand %p795, %p796
      %p798 = pneg %p797
      // Predicated region
      $region9: #{verti_encoder_forward.1} parent=5 // pred_check
        _
      $region10: #{verti_encoder_forward.1} parent=5 // pred_check_branch
        %800 = sbr.rel (%p797) target = $region12
      $region11: #{verti_encoder_forward.1} parent=5 // pred_region
        %s801 = ssub.s32 %s74, 1
        // Predicated region
        $region13: #{verti_encoder_forward.1} parent=11 // pred_check
          %p802 = pneg %p173
        $region14: #{verti_encoder_forward.1} parent=11 // pred_check_branch
          %804 = sbr.rel (%p802) target = $region16
        $region15: #{verti_encoder_forward.1} parent=11 // pred_region
          _
        $region16: #{verti_encoder_forward.1} parent=11 // pred_fallthru
          _
        // Predicated region
        $region17: #{verti_encoder_forward.1} parent=11 // pred_check
          %p805 = pneg %p194
        $region18: #{verti_encoder_forward.1} parent=11 // pred_check_branch
          %807 = sbr.rel (%p805) target = $region20
        $region19: #{verti_encoder_forward.1} parent=11 // pred_region
          _
        $region20: #{verti_encoder_forward.1} parent=11 // pred_fallthru
          _
        // Predicated region
        $region21: #{verti_encoder_forward.1} parent=11 // pred_check
          %p808 = pneg %p215
        $region22: #{verti_encoder_forward.1} parent=11 // pred_check_branch
          %810 = sbr.rel (%p808) target = $region24
        $region23: #{verti_encoder_forward.1} parent=11 // pred_region
          _
        $region24: #{verti_encoder_forward.1} parent=11 // pred_fallthru
          _
        // Predicated region
        $region25: #{verti_encoder_forward.1} parent=11 // pred_check
          %p811 = pneg %p236
        $region26: #{verti_encoder_forward.1} parent=11 // pred_check_branch
          %813 = sbr.rel (%p811) target = $region28
        $region27: #{verti_encoder_forward.1} parent=11 // pred_region
          _
        $region28: #{verti_encoder_forward.1} parent=11 // pred_fallthru
          _
        // Predicated region
        $region29: #{verti_encoder_forward.1} parent=11 // pred_check
          %p814 = pneg %p257
        $region30: #{verti_encoder_forward.1} parent=11 // pred_check_branch
          %816 = sbr.rel (%p814) target = $region32
        $region31: #{verti_encoder_forward.1} parent=11 // pred_region
          _
        $region32: #{verti_encoder_forward.1} parent=11 // pred_fallthru
          _
        // Predicated region
        $region33: #{verti_encoder_forward.1} parent=11 // pred_check
          %p817 = pneg %p278
        $region34: #{verti_encoder_forward.1} parent=11 // pred_check_branch
          %819 = sbr.rel (%p817) target = $region36
        $region35: #{verti_encoder_forward.1} parent=11 // pred_region
          _
        $region36: #{verti_encoder_forward.1} parent=11 // pred_fallthru
          _
        // Predicated region
        $region37: #{verti_encoder_forward.1} parent=11 // pred_check
          %p820 = pneg %p299
        $region38: #{verti_encoder_forward.1} parent=11 // pred_check_branch
          %822 = sbr.rel (%p820) target = $region40
        $region39: #{verti_encoder_forward.1} parent=11 // pred_region
          _
        $region40: #{verti_encoder_forward.1} parent=11 // pred_fallthru
          _
        // Predicated region
        $region41: #{verti_encoder_forward.1} parent=11 // pred_check
          %p823 = pneg %p320
        $region42: #{verti_encoder_forward.1} parent=11 // pred_check_branch
          %825 = sbr.rel (%p823) target = $region44
        $region43: #{verti_encoder_forward.1} parent=11 // pred_region
          _
        $region44: #{verti_encoder_forward.1} parent=11 // pred_fallthru
          _
        // Predicated region
        $region45: #{verti_encoder_forward.1} parent=11 // pred_check
          %p826 = pneg %p341
        $region46: #{verti_encoder_forward.1} parent=11 // pred_check_branch
          %828 = sbr.rel (%p826) target = $region48
        $region47: #{verti_encoder_forward.1} parent=11 // pred_region
          _
        $region48: #{verti_encoder_forward.1} parent=11 // pred_fallthru
          _
        // Predicated region
        $region49: #{verti_encoder_forward.1} parent=11 // pred_check
          %p829 = pneg %p362
        $region50: #{verti_encoder_forward.1} parent=11 // pred_check_branch
          %831 = sbr.rel (%p829) target = $region52
        $region51: #{verti_encoder_forward.1} parent=11 // pred_region
          _
        $region52: #{verti_encoder_forward.1} parent=11 // pred_fallthru
          _
        // Predicated region
        $region53: #{verti_encoder_forward.1} parent=11 // pred_check
          %p832 = pneg %p383
        $region54: #{verti_encoder_forward.1} parent=11 // pred_check_branch
          %834 = sbr.rel (%p832) target = $region56
        $region55: #{verti_encoder_forward.1} parent=11 // pred_region
          _
        $region56: #{verti_encoder_forward.1} parent=11 // pred_fallthru
          _
        // Predicated region
        $region57: #{verti_encoder_forward.1} parent=11 // pred_check
          %p835 = pneg %p404
        $region58: #{verti_encoder_forward.1} parent=11 // pred_check_branch
          %837 = sbr.rel (%p835) target = $region60
        $region59: #{verti_encoder_forward.1} parent=11 // pred_region
          _
        $region60: #{verti_encoder_forward.1} parent=11 // pred_fallthru
          _
        // Predicated region
        $region61: #{verti_encoder_forward.1} parent=11 // pred_check
          %p838 = pneg %p425
        $region62: #{verti_encoder_forward.1} parent=11 // pred_check_branch
          %840 = sbr.rel (%p838) target = $region64
        $region63: #{verti_encoder_forward.1} parent=11 // pred_region
          _
        $region64: #{verti_encoder_forward.1} parent=11 // pred_fallthru
          _
        // Predicated region
        $region65: #{verti_encoder_forward.1} parent=11 // pred_check
          %p841 = pneg %p446
        $region66: #{verti_encoder_forward.1} parent=11 // pred_check_branch
          %843 = sbr.rel (%p841) target = $region68
        $region67: #{verti_encoder_forward.1} parent=11 // pred_region
          _
        $region68: #{verti_encoder_forward.1} parent=11 // pred_fallthru
          _
        // Predicated region
        $region69: #{verti_encoder_forward.1} parent=11 // pred_check
          %p844 = pneg %p467
        $region70: #{verti_encoder_forward.1} parent=11 // pred_check_branch
          %846 = sbr.rel (%p844) target = $region72
        $region71: #{verti_encoder_forward.1} parent=11 // pred_region
          _
        $region72: #{verti_encoder_forward.1} parent=11 // pred_fallthru
          _
        // Predicated region
        $region73: #{verti_encoder_forward.1} parent=11 // pred_check
          %p847 = pneg %p488
        $region74: #{verti_encoder_forward.1} parent=11 // pred_check_branch
          %849 = sbr.rel (%p847) target = $region76
        $region75: #{verti_encoder_forward.1} parent=11 // pred_region
          _
        $region76: #{verti_encoder_forward.1} parent=11 // pred_fallthru
          _
        // Predicated region
        $region77: #{verti_encoder_forward.1} parent=11 // pred_check
          %p850 = pneg %p509
        $region78: #{verti_encoder_forward.1} parent=11 // pred_check_branch
          %852 = sbr.rel (%p850) target = $region80
        $region79: #{verti_encoder_forward.1} parent=11 // pred_region
          _
        $region80: #{verti_encoder_forward.1} parent=11 // pred_fallthru
          _
        // Predicated region
        $region81: #{verti_encoder_forward.1} parent=11 // pred_check
          %p853 = pneg %p530
        $region82: #{verti_encoder_forward.1} parent=11 // pred_check_branch
          %855 = sbr.rel (%p853) target = $region84
        $region83: #{verti_encoder_forward.1} parent=11 // pred_region
          _
        $region84: #{verti_encoder_forward.1} parent=11 // pred_fallthru
          _
        // Predicated region
        $region85: #{verti_encoder_forward.1} parent=11 // pred_check
          %p856 = pneg %p551
        $region86: #{verti_encoder_forward.1} parent=11 // pred_check_branch
          %858 = sbr.rel (%p856) target = $region88
        $region87: #{verti_encoder_forward.1} parent=11 // pred_region
          _
        $region88: #{verti_encoder_forward.1} parent=11 // pred_fallthru
          _
        // Predicated region
        $region89: #{verti_encoder_forward.1} parent=11 // pred_check
          %p859 = pneg %p572
        $region90: #{verti_encoder_forward.1} parent=11 // pred_check_branch
          %861 = sbr.rel (%p859) target = $region92
        $region91: #{verti_encoder_forward.1} parent=11 // pred_region
          _
        $region92: #{verti_encoder_forward.1} parent=11 // pred_fallthru
          _
        // Predicated region
        $region93: #{verti_encoder_forward.1} parent=11 // pred_check
          %p862 = pneg %p593
        $region94: #{verti_encoder_forward.1} parent=11 // pred_check_branch
          %864 = sbr.rel (%p862) target = $region96
        $region95: #{verti_encoder_forward.1} parent=11 // pred_region
          _
        $region96: #{verti_encoder_forward.1} parent=11 // pred_fallthru
          _
        // Predicated region
        $region97: #{verti_encoder_forward.1} parent=11 // pred_check
          %p865 = pneg %p614
        $region98: #{verti_encoder_forward.1} parent=11 // pred_check_branch
          %867 = sbr.rel (%p865) target = $region100
        $region99: #{verti_encoder_forward.1} parent=11 // pred_region
          _
        $region100: #{verti_encoder_forward.1} parent=11 // pred_fallthru
          _
        // Predicated region
        $region101: #{verti_encoder_forward.1} parent=11 // pred_check
          %p868 = pneg %p635
        $region102: #{verti_encoder_forward.1} parent=11 // pred_check_branch
          %870 = sbr.rel (%p868) target = $region104
        $region103: #{verti_encoder_forward.1} parent=11 // pred_region
          _
        $region104: #{verti_encoder_forward.1} parent=11 // pred_fallthru
          _
        // Predicated region
        $region105: #{verti_encoder_forward.1} parent=11 // pred_check
          %p871 = pneg %p656
        $region106: #{verti_encoder_forward.1} parent=11 // pred_check_branch
          %873 = sbr.rel (%p871) target = $region108
        $region107: #{verti_encoder_forward.1} parent=11 // pred_region
          _
        $region108: #{verti_encoder_forward.1} parent=11 // pred_fallthru
          _
        // Predicated region
        $region109: #{verti_encoder_forward.1} parent=11 // pred_check
          %p874 = pneg %p677
        $region110: #{verti_encoder_forward.1} parent=11 // pred_check_branch
          %876 = sbr.rel (%p874) target = $region112
        $region111: #{verti_encoder_forward.1} parent=11 // pred_region
          _
        $region112: #{verti_encoder_forward.1} parent=11 // pred_fallthru
          _
        // Predicated region
        $region113: #{verti_encoder_forward.1} parent=11 // pred_check
          %p877 = pneg %p698
        $region114: #{verti_encoder_forward.1} parent=11 // pred_check_branch
          %879 = sbr.rel (%p877) target = $region116
        $region115: #{verti_encoder_forward.1} parent=11 // pred_region
          _
        $region116: #{verti_encoder_forward.1} parent=11 // pred_fallthru
          _
        // Predicated region
        $region117: #{verti_encoder_forward.1} parent=11 // pred_check
          %p880 = pneg %p719
        $region118: #{verti_encoder_forward.1} parent=11 // pred_check_branch
          %882 = sbr.rel (%p880) target = $region120
        $region119: #{verti_encoder_forward.1} parent=11 // pred_region
          _
        $region120: #{verti_encoder_forward.1} parent=11 // pred_fallthru
          _
        // Predicated region
        $region121: #{verti_encoder_forward.1} parent=11 // pred_check
          %p883 = pneg %p740
        $region122: #{verti_encoder_forward.1} parent=11 // pred_check_branch
          %885 = sbr.rel (%p883) target = $region124
        $region123: #{verti_encoder_forward.1} parent=11 // pred_region
          _
        $region124: #{verti_encoder_forward.1} parent=11 // pred_fallthru
          _
        // Predicated region
        $region125: #{verti_encoder_forward.1} parent=11 // pred_check
          %p886 = pneg %p761
        $region126: #{verti_encoder_forward.1} parent=11 // pred_check_branch
          %888 = sbr.rel (%p886) target = $region128
        $region127: #{verti_encoder_forward.1} parent=11 // pred_region
          _
        $region128: #{verti_encoder_forward.1} parent=11 // pred_fallthru
          _
      $region12: #{verti_encoder_forward.1} parent=5 // pred_fallthru
        _
      %p889 = scmp.lt.s32.totalorder %s74, 2
      // Predicated region
      $region129: #{verti_encoder_forward.1} parent=5 // pred_check
        %p890 = pneg %p889
      $region130: #{verti_encoder_forward.1} parent=5 // pred_check_branch
        %892 = sbr.rel (%p890) target = $region132
      $region131: #{verti_encoder_forward.1} parent=5 // pred_region
        // Predicated region
        $region133: #{verti_encoder_forward.1} parent=131 // pred_check
          %p893 = pneg %p94
        $region134: #{verti_encoder_forward.1} parent=131 // pred_check_branch
          %895 = sbr.rel (%p893) target = $region136
        $region135: #{verti_encoder_forward.1} parent=131 // pred_region
          %p896 = scmp.lt.s32.totalorder %s74, 1
          %s897 = scalar_select %p896, %s74, 1
          %s898 = smul.addr %s897, 2
          %s899 = smul.addr %s898, 8
          %s900 = scalar_lea.vmem %s1, %s899
        $region136: #{verti_encoder_forward.1} parent=131 // pred_fallthru
          _
        // Predicated region
        $region137: #{verti_encoder_forward.1} parent=131 // pred_check
          %p901 = pneg %p120
        $region138: #{verti_encoder_forward.1} parent=131 // pred_check_branch
          %903 = sbr.rel (%p901) target = $region140
        $region139: #{verti_encoder_forward.1} parent=131 // pred_region
          %p904 = scmp.lt.s32.totalorder %s74, 1
          %s905 = scalar_select %p904, %s74, 1
          %s906 = smul.addr %s905, 8
          %s907 = scalar_lea.vmem %s3, %s906
        $region140: #{verti_encoder_forward.1} parent=131 // pred_fallthru
          _
        // Predicated region
        $region141: #{verti_encoder_forward.1} parent=131 // pred_check
          %p908 = pneg %p146
        $region142: #{verti_encoder_forward.1} parent=131 // pred_check_branch
          %910 = sbr.rel (%p908) target = $region144
        $region143: #{verti_encoder_forward.1} parent=131 // pred_region
          %p911 = scmp.lt.s32.totalorder %s74, 1
          %s912 = scalar_select %p911, %s74, 1
          %s913 = smul.addr %s912, 8
          %s914 = scalar_lea.vmem %s5, %s913
        $region144: #{verti_encoder_forward.1} parent=131 // pred_fallthru
          _
      $region132: #{verti_encoder_forward.1} parent=5 // pred_fallthru
        _
      %p915 = scmp.le.s32.totalorder 1, %s74
      %p916 = scmp.lt.s32.totalorder %s74, 3
      %p917 = pnand %p915, %p916
      %p918 = pneg %p917
      // Predicated region
      $region145: #{verti_encoder_forward.1} parent=5 // pred_check
        _
      $region146: #{verti_encoder_forward.1} parent=5 // pred_check_branch
        %920 = sbr.rel (%p917) target = $region148
      $region147: #{verti_encoder_forward.1} parent=5 // pred_region
        %s921 = ssub.s32 %s74, 1
        %p922 = scmp.lt.s32.totalorder %s79, 1
        %s923 = scalar_select %p922, %s79, 1
        %s924 = smul.addr %s923, 2
        %s925 = smul.addr %s924, 8
        %s926 = scalar_lea.vmem %s1, %s925
        %p927 = pneg %p100
        %p928 = pneg %p97
        %p929 = scmp.lt.s32.totalorder %s79, 1
        %s930 = scalar_select %p929, %s79, 1
        %s931 = smul.addr %s930, 8
        %s932 = scalar_lea.vmem %s3, %s931
        %p933 = pneg %p126
        %p934 = pneg %p123
        %p935 = scmp.lt.s32.totalorder %s79, 1
        %s936 = scalar_select %p935, %s79, 1
        %s937 = smul.addr %s936, 8
        %s938 = scalar_lea.vmem %s5, %s937
        %p939 = pneg %p152
        %p940 = pneg %p149
        %p941 = pneg %p173
        %p942 = pneg %p170
        %p943 = pneg %p194
        %p944 = pneg %p191
        %p945 = pneg %p215
        %p946 = pneg %p212
        %p947 = pneg %p236
        %p948 = pneg %p233
        %p949 = pneg %p257
        %p950 = pneg %p254
        %p951 = pneg %p278
        %p952 = pneg %p275
        %p953 = pneg %p299
        %p954 = pneg %p296
        %p955 = pneg %p320
        %p956 = pneg %p317
        %p957 = pneg %p341
        %p958 = pneg %p338
        %p959 = pneg %p362
        %p960 = pneg %p359
        %p961 = pneg %p383
        %p962 = pneg %p380
        %p963 = pneg %p404
        %p964 = pneg %p401
        %p965 = pneg %p425
        %p966 = pneg %p422
        %p967 = pneg %p446
        %p968 = pneg %p443
        %p969 = pneg %p467
        %p970 = pneg %p464
        %p971 = pneg %p488
        %p972 = pneg %p485
        %p973 = pneg %p509
        %p974 = pneg %p506
        %p975 = pneg %p530
        %p976 = pneg %p527
        %p977 = pneg %p551
        %p978 = pneg %p548
        %p979 = pneg %p572
        %p980 = pneg %p569
        %p981 = pneg %p593
        %p982 = pneg %p590
        %p983 = pneg %p614
        %p984 = pneg %p611
        %p985 = pneg %p635
        %p986 = pneg %p632
        %p987 = pneg %p656
        %p988 = pneg %p653
        %p989 = pneg %p677
        %p990 = pneg %p674
        %p991 = pneg %p698
        %p992 = pneg %p695
        %p993 = pneg %p719
        %p994 = pneg %p716
        %p995 = pneg %p740
        %p996 = pneg %p737
        %p997 = pneg %p761
        %p998 = pneg %p758
        %p999 = pneg %p787
        %p1000 = pneg %p784
        %s1001 = sand.u32 %s774, 1
        %s1002 = scalar_lea.sflag [#allocation4], %s1001
        %s1003 = sand.u32 %s774, 1
        %s1004 = smul.addr %s1003, 2
        %s1005 = scalar_lea.vmem [#allocation3], %s1004
        %p1006 = scmp.lt.s32.totalorder %s79, 1
        %s1007 = scalar_select %p1006, %s79, 1
        %s1008 = smul.addr %s1007, 2
        %s1009 = smul.addr %s1008, 8
        %s1010 = scalar_lea.vmem %s1, %s1009
        %p1011 = scmp.lt.s32.totalorder %s79, 1
        %s1012 = scalar_select %p1011, %s79, 1
        %s1013 = smul.addr %s1012, 8
        %s1014 = scalar_lea.vmem %s3, %s1013
        %p1015 = scmp.lt.s32.totalorder %s79, 1
        %s1016 = scalar_select %p1015, %s79, 1
        %s1017 = smul.addr %s1016, 8
        %s1018 = scalar_lea.vmem %s5, %s1017
        %v1020 = vld [vmem:[%s1010] sm:$0xff]
        %v1021 = vld [vmem:[%s1010 + $0x8] sm:$0xff]
        %v1022 = vld [vmem:[%s7] sm:$0xf]
        %v1023 = vld [vmem:[%s7 + $0x4] sm:$0xf]
        %v1024 = vld [vmem:[%s7 + $0x8] sm:$0xf]
        %v1025 = vld [vmem:[%s7 + $0xc] sm:$0xf]
        %v1026 = vld [vmem:[%s7 + $0x10] sm:$0xf]
        %v1027 = vld [vmem:[%s7 + $0x14] sm:$0xf]
        %v1028 = vld [vmem:[%s7 + $0x18] sm:$0xf]
        %v1029 = vld [vmem:[%s7 + $0x1c] sm:$0xf]
        %v1030 = vld [vmem:[%s7 + $0x20] sm:$0xf]
        %v1031 = vld [vmem:[%s7 + $0x24] sm:$0xf]
        %v1032 = vld [vmem:[%s7 + $0x28] sm:$0xf]
        %v1033 = vld [vmem:[%s7 + $0x2c] sm:$0xf]
        %v1034 = vld [vmem:[%s7 + $0x30] sm:$0xf]
        %v1035 = vld [vmem:[%s7 + $0x34] sm:$0xf]
        %v1036 = vld [vmem:[%s7 + $0x38] sm:$0xf]
        %v1037 = vld [vmem:[%s7 + $0x3c] sm:$0xf]
        %v1038 = vld [vmem:[%s7 + $0x40] sm:$0xf]
        %v1039 = vld [vmem:[%s7 + $0x44] sm:$0xf]
        %v1040 = vld [vmem:[%s7 + $0x48] sm:$0xf]
        %v1041 = vld [vmem:[%s7 + $0x4c] sm:$0xf]
        %v1042 = vld [vmem:[%s7 + $0x50] sm:$0xf]
        %v1043 = vld [vmem:[%s7 + $0x54] sm:$0xf]
        %v1044 = vld [vmem:[%s7 + $0x58] sm:$0xf]
        %v1045 = vld [vmem:[%s7 + $0x5c] sm:$0xf]
        %v1046 = vld [vmem:[%s7 + $0x60] sm:$0xf]
        %v1047 = vld [vmem:[%s7 + $0x64] sm:$0xf]
        %v1048 = vld [vmem:[%s7 + $0x68] sm:$0xf]
        %v1049 = vld [vmem:[%s7 + $0x6c] sm:$0xf]
        %v1050 = vld [vmem:[%s7 + $0x70] sm:$0xf]
        %v1051 = vld [vmem:[%s7 + $0x74] sm:$0xf]
        %v1052 = vld [vmem:[%s7 + $0x78] sm:$0xf]
        %v1053 = vld [vmem:[%s7 + $0x7c] sm:$0xf]
        %v1054 = vpack.c.bf16 %v1020, %v1020
        %v1055 = vpack.c.bf16 %v1021, %v1021
        %v1056 = vld [vmem:[%s1014] sm:$0xff]
        %v1057 = vld [vmem:[%s9] sm:$0x1]
        %v1058 = vpack.c.bf16 %v1056, %v1056
        %vm1059 = vcmask 15360
        %v1061 = vsel %vm1059, %v1058, 0
        %vm1063 = vcmask 1040384
        %v1065 = vsel %vm1063, %v1057, 0
        %1067 = vmatpush.bf16.msra.mxu0 0
        %1068 = vmatpush.bf16.msra.mxu0 0
        %1069 = vmatpush.bf16.msra.mxu0 0
        %1070 = vmatpush.bf16.msra.mxu0 0
        %1071 = vmatpush.bf16.msra.mxu0 0
        %1072 = vmatpush.bf16.msra.mxu0 0
        %1073 = vmatpush.bf16.msra.mxu0 0
        %1074 = vmatpush.bf16.msra.mxu0 %v1065
        %1075 = vmatmul.bf16.gmra.mxu0 %v1061
        %v1076 = vpop.f32.mrf.mxu0
        %v1077 = vadd.f32 0.0, %v1076
        %v1078 = vpop.f32.mrf.mxu0
        %1079 = vdwg.mxu0
        %v1112 = vunpack.c.l.b16 %v1022
        %v1113 = vunpack.c.l.b16 %v1023
        %v1114 = vunpack.c.l.b16 %v1024
        %v1115 = vunpack.c.l.b16 %v1025
        %v1116 = vunpack.c.l.b16 %v1026
        %v1117 = vunpack.c.l.b16 %v1027
        %v1118 = vunpack.c.l.b16 %v1028
        %v1119 = vunpack.c.l.b16 %v1029
        %v1120 = vunpack.c.l.b16 %v1030
        %v1121 = vunpack.c.l.b16 %v1031
        %v1122 = vunpack.c.l.b16 %v1032
        %v1123 = vunpack.c.l.b16 %v1033
        %v1124 = vunpack.c.l.b16 %v1034
        %v1125 = vunpack.c.l.b16 %v1035
        %v1126 = vunpack.c.l.b16 %v1036
        %v1127 = vunpack.c.l.b16 %v1037
        %v1128 = vunpack.c.l.b16 %v1038
        %v1129 = vunpack.c.l.b16 %v1039
        %v1130 = vunpack.c.l.b16 %v1040
        %v1131 = vunpack.c.l.b16 %v1041
        %v1132 = vunpack.c.l.b16 %v1042
        %v1133 = vunpack.c.l.b16 %v1043
        %v1134 = vunpack.c.l.b16 %v1044
        %v1135 = vunpack.c.l.b16 %v1045
        %v1136 = vunpack.c.l.b16 %v1046
        %v1137 = vunpack.c.l.b16 %v1047
        %v1138 = vunpack.c.l.b16 %v1048
        %v1139 = vunpack.c.l.b16 %v1049
        %v1140 = vunpack.c.l.b16 %v1050
        %v1141 = vunpack.c.l.b16 %v1051
        %v1142 = vunpack.c.l.b16 %v1052
        %v1143 = vunpack.c.l.b16 %v1053
        %v1144 = vpack.c.b16 %v1113, %v1112
        %v1145 = vpack.c.b16 %v1115, %v1114
        %v1146 = vpack.c.b16 %v1117, %v1116
        %v1147 = vpack.c.b16 %v1119, %v1118
        %v1148 = vpack.c.b16 %v1121, %v1120
        %v1149 = vpack.c.b16 %v1123, %v1122
        %v1150 = vpack.c.b16 %v1125, %v1124
        %v1151 = vpack.c.b16 %v1127, %v1126
        %v1152 = vpack.c.b16 %v1129, %v1128
        %v1153 = vpack.c.b16 %v1131, %v1130
        %v1154 = vpack.c.b16 %v1133, %v1132
        %v1155 = vpack.c.b16 %v1135, %v1134
        %v1156 = vpack.c.b16 %v1137, %v1136
        %v1157 = vpack.c.b16 %v1139, %v1138
        %v1158 = vpack.c.b16 %v1141, %v1140
        %v1159 = vpack.c.b16 %v1143, %v1142
        %1176 = vmatpush.bf16.msra.mxu0 %v1151
        %1177 = vmatpush.bf16.msra.mxu0 %v1150
        %1178 = vmatpush.bf16.msra.mxu0 %v1149
        %1179 = vmatpush.bf16.msra.mxu0 %v1148
        %1180 = vmatpush.bf16.msra.mxu0 %v1147
        %1181 = vmatpush.bf16.msra.mxu0 %v1146
        %1182 = vmatpush.bf16.msra.mxu0 %v1145
        %1183 = vmatpush.bf16.msra.mxu0 %v1144
        %1184 = vmatmul.bf16.gmra.mxu0 %v1054
        %v1185 = vpop.f32.mrf.mxu0
        %v1186 = vadd.f32 %v1077, %v1185
        %v1187 = vpop.f32.mrf.mxu0
        %1188 = vdwg.mxu0
        %1189 = vmatpush.bf16.msra.mxu0 %v1159
        %1190 = vmatpush.bf16.msra.mxu0 %v1158
        %1191 = vmatpush.bf16.msra.mxu0 %v1157
        %1192 = vmatpush.bf16.msra.mxu0 %v1156
        %1193 = vmatpush.bf16.msra.mxu0 %v1155
        %1194 = vmatpush.bf16.msra.mxu0 %v1154
        %1195 = vmatpush.bf16.msra.mxu0 %v1153
        %1196 = vmatpush.bf16.msra.mxu0 %v1152
        %1197 = vmatmul.bf16.gmra.mxu0 %v1055
        %v1198 = vpop.f32.mrf.mxu0
        %v1199 = vadd.f32 %v1186, %v1198
        %v1200 = vpop.f32.mrf.mxu0
        %1201 = vdwg.mxu0
        %v1202 = vld [vmem:[%s1018] sm:$0xff]
        %v1203 = vld [vmem:[%s11] sm:$0x7]
        %v1204 = vpack.c.bf16 %v1202, %v1202
        %vm1205 = vcmask 48128
        %v1207 = vsel %vm1205, %v1204, 0
        %vm1209 = vcmask 1042432
        %v1211 = vsel %vm1209, %v1203, 0
        %1213 = vmatpush.bf16.msra.mxu0 0
        %1214 = vmatpush.bf16.msra.mxu0 0
        %1215 = vmatpush.bf16.msra.mxu0 0
        %1216 = vmatpush.bf16.msra.mxu0 0
        %1217 = vmatpush.bf16.msra.mxu0 0
        %1218 = vmatpush.bf16.msra.mxu0 0
        %1219 = vmatpush.bf16.msra.mxu0 0
        %1220 = vmatpush.bf16.msra.mxu0 %v1211
        %1221 = vmatmul.bf16.gmra.mxu0 %v1207
        %v1222 = vpop.f32.mrf.mxu0
        %v1223 = vadd.f32 0.0, %v1222
        %v1224 = vpop.f32.mrf.mxu0
        %1225 = vdwg.mxu0
        %v1226 = vadd.f32 %v1199, %v1223
        %v1227 = vld [vmem:[%s13] sm:$0x1]
        %v1229 = vperm.slane %v1227, 0
        %v1231 = vadd.f32 %v1226, %v1229
        %v1232 = vld [vmem:[%s15] sm:$0x1]
        %v1233 = vmul.f32 %v1231, %v1231
        %1234 = vadd.xlane.f32.xlu0 %v1233
        %v1235 = vpop.xlane.xlu0 %1234
        %v1236 = vrcp.pop 128.0
        %v1237 = vmul.f32 128.0, %v1236
        %v1238 = vsub.f32 1.0, %v1237
        %v1239 = vmul.f32 %v1236, %v1238
        %v1240 = vadd.f32 %v1236, %v1239
        %vm1241 = vweird.f32 %v1236
        %v1242 = vsel %vm1241, %v1236, %v1240
        %v1243 = vmul.f32 %v1235, %v1242
        %v1244 = vadd.f32 %v1243, 1.1920929e-07
        %v1245 = vrsqrt.pop %v1244
        %v1246 = vmul.f32 %v1245, %v1244
        %v1247 = vmul.f32 %v1246, %v1245
        %v1248 = vmul.f32 0.5, %v1247
        %v1249 = vsub.f32 1.5, %v1248
        %v1250 = vmul.f32 %v1245, %v1249
        %vm1251 = vweird.f32 %v1244
        %vm1252 = vweird.f32 %v1245
        %vm1253 = vmor %vm1251, %vm1252
        %v1254 = vsel %vm1253, %v1245, %v1250
        %v1255 = vmul.f32 %v1231, %v1254
        %v1257 = vperm.slane %v1232, 0
        %v1259 = vmul.f32 %v1255, %v1257
        %v1260 = vld [vmem:[%s17] sm:$0xf]
        %v1261 = vld [vmem:[%s17 + $0x4] sm:$0xf]
        %v1262 = vld [vmem:[%s17 + $0x8] sm:$0xf]
        %v1263 = vld [vmem:[%s17 + $0xc] sm:$0xf]
        %v1264 = vld [vmem:[%s17 + $0x10] sm:$0xf]
        %v1265 = vld [vmem:[%s17 + $0x14] sm:$0xf]
        %v1266 = vld [vmem:[%s17 + $0x18] sm:$0xf]
        %v1267 = vld [vmem:[%s17 + $0x1c] sm:$0xf]
        %v1268 = vld [vmem:[%s17 + $0x20] sm:$0xf]
        %v1269 = vld [vmem:[%s17 + $0x24] sm:$0xf]
        %v1270 = vld [vmem:[%s17 + $0x28] sm:$0xf]
        %v1271 = vld [vmem:[%s17 + $0x2c] sm:$0xf]
        %v1272 = vld [vmem:[%s17 + $0x30] sm:$0xf]
        %v1273 = vld [vmem:[%s17 + $0x34] sm:$0xf]
        %v1274 = vld [vmem:[%s17 + $0x38] sm:$0xf]
        %v1275 = vld [vmem:[%s17 + $0x3c] sm:$0xf]
        %v1276 = vpack.c.bf16 %v1259, %v1259
        %v1277 = vld [vmem:[%s19] sm:$0x1]
        %v1279 = vperm.slane %v1277, 0
        %v1297 = vunpack.c.l.b16 %v1260
        %v1298 = vunpack.c.l.b16 %v1261
        %v1299 = vunpack.c.l.b16 %v1262
        %v1300 = vunpack.c.l.b16 %v1263
        %v1301 = vunpack.c.l.b16 %v1264
        %v1302 = vunpack.c.l.b16 %v1265
        %v1303 = vunpack.c.l.b16 %v1266
        %v1304 = vunpack.c.l.b16 %v1267
        %v1305 = vunpack.c.l.b16 %v1268
        %v1306 = vunpack.c.l.b16 %v1269
        %v1307 = vunpack.c.l.b16 %v1270
        %v1308 = vunpack.c.l.b16 %v1271
        %v1309 = vunpack.c.l.b16 %v1272
        %v1310 = vunpack.c.l.b16 %v1273
        %v1311 = vunpack.c.l.b16 %v1274
        %v1312 = vunpack.c.l.b16 %v1275
        %v1313 = vpack.c.b16 %v1298, %v1297
        %v1314 = vpack.c.b16 %v1300, %v1299
        %v1315 = vpack.c.b16 %v1302, %v1301
        %v1316 = vpack.c.b16 %v1304, %v1303
        %v1317 = vpack.c.b16 %v1306, %v1305
        %v1318 = vpack.c.b16 %v1308, %v1307
        %v1319 = vpack.c.b16 %v1310, %v1309
        %v1320 = vpack.c.b16 %v1312, %v1311
        %1329 = vmatpush.bf16.msra.mxu0 %v1320
        %1330 = vmatpush.bf16.msra.mxu0 %v1319
        %1331 = vmatpush.bf16.msra.mxu0 %v1318
        %1332 = vmatpush.bf16.msra.mxu0 %v1317
        %1333 = vmatpush.bf16.msra.mxu0 %v1316
        %1334 = vmatpush.bf16.msra.mxu0 %v1315
        %1335 = vmatpush.bf16.msra.mxu0 %v1314
        %1336 = vmatpush.bf16.msra.mxu0 %v1313
        %1337 = vmatmul.bf16.gmra.mxu0 %v1276
        %v1338 = vpop.f32.mrf.mxu0
        %v1339 = vadd.f32 %v1279, %v1338
        %v1340 = vpop.f32.mrf.mxu0
        %1341 = vdwg.mxu0
        %1342 = vst [vmem:[#allocation2] sm:$0xff] %v1339
        %v1343 = vld [vmem:[%s21] sm:$0x3]
        %1344 = vst [vmem:[#allocation2 + $0x8] sm:$0x3] %v1343
        %v1345 = vld [vmem:[#allocation2] sm:$0xff]
        %v1346 = vld [vmem:[#allocation2 + $0x8] sm:$0x3]
        %v1347 = vld [vmem:[%s23] sm:$0xff]
        %v1348 = vld [vmem:[%s23 + $0x8] sm:$0x3]
        %v1349 = vadd.f32 %v1345, %v1347
        %v1350 = vadd.f32 %v1346, %v1348
        %v1351 = vld [vmem:[%s25] sm:$0x1]
        %v1352 = vmul.f32 %v1349, %v1349
        %v1353 = vmul.f32 %v1350, %v1350
        %1354 = vadd.xlane.f32.xlu0 %v1352
        %v1355 = vpop.xlane.xlu0 %1354
        %vm1356 = vcmask 1041408
        %v1357 = vsel %vm1356, %v1353, 0.0
        %1358 = vadd.xlane.f32.xlu0 %v1357
        %v1359 = vpop.xlane.xlu0 %1358
        %v1360 = vmul.f32 %v1355, %v1242
        %v1361 = vmul.f32 %v1359, %v1242
        %v1362 = vadd.f32 %v1360, 1.1920929e-07
        %v1363 = vadd.f32 %v1361, 1.1920929e-07
        %v1364 = vrsqrt.pop %v1362
        %v1365 = vmul.f32 %v1364, %v1362
        %v1366 = vmul.f32 %v1365, %v1364
        %v1367 = vmul.f32 0.5, %v1366
        %v1368 = vsub.f32 1.5, %v1367
        %v1369 = vmul.f32 %v1364, %v1368
        %vm1370 = vweird.f32 %v1362
        %vm1371 = vweird.f32 %v1364
        %vm1372 = vmor %vm1370, %vm1371
        %v1373 = vsel %vm1372, %v1364, %v1369
        %v1374 = vrsqrt.pop %v1363
        %v1375 = vmul.f32 %v1374, %v1363
        %v1376 = vmul.f32 %v1375, %v1374
        %v1377 = vmul.f32 0.5, %v1376
        %v1378 = vsub.f32 1.5, %v1377
        %v1379 = vmul.f32 %v1374, %v1378
        %vm1380 = vweird.f32 %v1363
        %vm1381 = vweird.f32 %v1374
        %vm1382 = vmor %vm1380, %vm1381
        %v1383 = vsel %vm1382, %v1374, %v1379
        %v1384 = vmul.f32 %v1349, %v1373
        %v1385 = vmul.f32 %v1350, %v1383
        %v1387 = vperm.slane %v1351, 0
        %v1389 = vmul.f32 %v1384, %v1387
        %v1390 = vmul.f32 %v1385, %v1387
        %v1391 = vld [vmem:[%s27] sm:$0xf]
        %v1392 = vld [vmem:[%s27 + $0x4] sm:$0xf]
        %v1393 = vld [vmem:[%s27 + $0x8] sm:$0xf]
        %v1394 = vld [vmem:[%s27 + $0xc] sm:$0xf]
        %v1395 = vld [vmem:[%s27 + $0x10] sm:$0xf]
        %v1396 = vld [vmem:[%s27 + $0x14] sm:$0xf]
        %v1397 = vld [vmem:[%s27 + $0x18] sm:$0xf]
        %v1398 = vld [vmem:[%s27 + $0x1c] sm:$0xf]
        %v1399 = vld [vmem:[%s27 + $0x20] sm:$0xf]
        %v1400 = vld [vmem:[%s27 + $0x24] sm:$0xf]
        %v1401 = vld [vmem:[%s27 + $0x28] sm:$0xf]
        %v1402 = vld [vmem:[%s27 + $0x2c] sm:$0xf]
        %v1403 = vld [vmem:[%s27 + $0x30] sm:$0xf]
        %v1404 = vld [vmem:[%s27 + $0x34] sm:$0xf]
        %v1405 = vld [vmem:[%s27 + $0x38] sm:$0xf]
        %v1406 = vld [vmem:[%s27 + $0x3c] sm:$0xf]
        %v1407 = vpack.c.bf16 %v1390, %v1389
        %v1408 = vld [vmem:[%s29] sm:$0x1]
        %v1410 = vperm.slane %v1408, 0
        %v1428 = vunpack.c.l.b16 %v1391
        %v1429 = vunpack.c.l.b16 %v1392
        %v1430 = vunpack.c.l.b16 %v1393
        %v1431 = vunpack.c.l.b16 %v1394
        %v1432 = vunpack.c.l.b16 %v1395
        %v1433 = vunpack.c.l.b16 %v1396
        %v1434 = vunpack.c.l.b16 %v1397
        %v1435 = vunpack.c.l.b16 %v1398
        %v1436 = vunpack.c.l.b16 %v1399
        %v1437 = vunpack.c.l.b16 %v1400
        %v1438 = vunpack.c.l.b16 %v1401
        %v1439 = vunpack.c.l.b16 %v1402
        %v1440 = vunpack.c.l.b16 %v1403
        %v1441 = vunpack.c.l.b16 %v1404
        %v1442 = vunpack.c.l.b16 %v1405
        %v1443 = vunpack.c.l.b16 %v1406
        %v1444 = vpack.c.b16 %v1429, %v1428
        %v1445 = vpack.c.b16 %v1431, %v1430
        %v1446 = vpack.c.b16 %v1433, %v1432
        %v1447 = vpack.c.b16 %v1435, %v1434
        %v1448 = vpack.c.b16 %v1437, %v1436
        %v1449 = vpack.c.b16 %v1439, %v1438
        %v1450 = vpack.c.b16 %v1441, %v1440
        %v1451 = vpack.c.b16 %v1443, %v1442
        %1460 = vmatpush.bf16.msra.mxu0 %v1451
        %1461 = vmatpush.bf16.msra.mxu0 %v1450
        %1462 = vmatpush.bf16.msra.mxu0 %v1449
        %1463 = vmatpush.bf16.msra.mxu0 %v1448
        %1464 = vmatpush.bf16.msra.mxu0 %v1447
        %1465 = vmatpush.bf16.msra.mxu0 %v1446
        %1466 = vmatpush.bf16.msra.mxu0 %v1445
        %1467 = vmatpush.bf16.msra.mxu0 %v1444
        %1468 = vmatmul.bf16.gmra.mxu0 %v1407
        %v1469 = vpop.f32.mrf.mxu0
        %v1470 = vadd.f32 %v1410, %v1469
        %v1471 = vpop.f32.mrf.mxu0
        %v1472 = vadd.f32 %v1410, %v1471
        %1473 = vdwg.mxu0
        %v1474 = vld [vmem:[%s31] sm:$0xf]
        %v1475 = vld [vmem:[%s31 + $0x4] sm:$0xf]
        %v1476 = vld [vmem:[%s31 + $0x8] sm:$0xf]
        %v1477 = vld [vmem:[%s31 + $0xc] sm:$0xf]
        %v1478 = vld [vmem:[%s31 + $0x10] sm:$0xf]
        %v1479 = vld [vmem:[%s31 + $0x14] sm:$0xf]
        %v1480 = vld [vmem:[%s31 + $0x18] sm:$0xf]
        %v1481 = vld [vmem:[%s31 + $0x1c] sm:$0xf]
        %v1482 = vld [vmem:[%s31 + $0x20] sm:$0xf]
        %v1483 = vld [vmem:[%s31 + $0x24] sm:$0xf]
        %v1484 = vld [vmem:[%s31 + $0x28] sm:$0xf]
        %v1485 = vld [vmem:[%s31 + $0x2c] sm:$0xf]
        %v1486 = vld [vmem:[%s31 + $0x30] sm:$0xf]
        %v1487 = vld [vmem:[%s31 + $0x34] sm:$0xf]
        %v1488 = vld [vmem:[%s31 + $0x38] sm:$0xf]
        %v1489 = vld [vmem:[%s31 + $0x3c] sm:$0xf]
        %v1490 = vld [vmem:[%s33] sm:$0x1]
        %v1492 = vperm.slane %v1490, 0
        %v1510 = vunpack.c.l.b16 %v1474
        %v1511 = vunpack.c.l.b16 %v1475
        %v1512 = vunpack.c.l.b16 %v1476
        %v1513 = vunpack.c.l.b16 %v1477
        %v1514 = vunpack.c.l.b16 %v1478
        %v1515 = vunpack.c.l.b16 %v1479
        %v1516 = vunpack.c.l.b16 %v1480
        %v1517 = vunpack.c.l.b16 %v1481
        %v1518 = vunpack.c.l.b16 %v1482
        %v1519 = vunpack.c.l.b16 %v1483
        %v1520 = vunpack.c.l.b16 %v1484
        %v1521 = vunpack.c.l.b16 %v1485
        %v1522 = vunpack.c.l.b16 %v1486
        %v1523 = vunpack.c.l.b16 %v1487
        %v1524 = vunpack.c.l.b16 %v1488
        %v1525 = vunpack.c.l.b16 %v1489
        %v1526 = vpack.c.b16 %v1511, %v1510
        %v1527 = vpack.c.b16 %v1513, %v1512
        %v1528 = vpack.c.b16 %v1515, %v1514
        %v1529 = vpack.c.b16 %v1517, %v1516
        %v1530 = vpack.c.b16 %v1519, %v1518
        %v1531 = vpack.c.b16 %v1521, %v1520
        %v1532 = vpack.c.b16 %v1523, %v1522
        %v1533 = vpack.c.b16 %v1525, %v1524
        %1542 = vmatpush.bf16.msra.mxu0 %v1533
        %1543 = vmatpush.bf16.msra.mxu0 %v1532
        %1544 = vmatpush.bf16.msra.mxu0 %v1531
        %1545 = vmatpush.bf16.msra.mxu0 %v1530
        %1546 = vmatpush.bf16.msra.mxu0 %v1529
        %1547 = vmatpush.bf16.msra.mxu0 %v1528
        %1548 = vmatpush.bf16.msra.mxu0 %v1527
        %1549 = vmatpush.bf16.msra.mxu0 %v1526
        %1550 = vmatmul.bf16.gmra.mxu0 %v1407
        %v1551 = vpop.f32.mrf.mxu0
        %v1552 = vadd.f32 %v1492, %v1551
        %v1553 = vpop.f32.mrf.mxu0
        %v1554 = vadd.f32 %v1492, %v1553
        %1555 = vdwg.mxu0
        %v1556 = vld [vmem:[%s35] sm:$0xf]
        %v1557 = vld [vmem:[%s35 + $0x4] sm:$0xf]
        %v1558 = vld [vmem:[%s35 + $0x8] sm:$0xf]
        %v1559 = vld [vmem:[%s35 + $0xc] sm:$0xf]
        %v1560 = vld [vmem:[%s35 + $0x10] sm:$0xf]
        %v1561 = vld [vmem:[%s35 + $0x14] sm:$0xf]
        %v1562 = vld [vmem:[%s35 + $0x18] sm:$0xf]
        %v1563 = vld [vmem:[%s35 + $0x1c] sm:$0xf]
        %v1564 = vld [vmem:[%s35 + $0x20] sm:$0xf]
        %v1565 = vld [vmem:[%s35 + $0x24] sm:$0xf]
        %v1566 = vld [vmem:[%s35 + $0x28] sm:$0xf]
        %v1567 = vld [vmem:[%s35 + $0x2c] sm:$0xf]
        %v1568 = vld [vmem:[%s35 + $0x30] sm:$0xf]
        %v1569 = vld [vmem:[%s35 + $0x34] sm:$0xf]
        %v1570 = vld [vmem:[%s35 + $0x38] sm:$0xf]
        %v1571 = vld [vmem:[%s35 + $0x3c] sm:$0xf]
        %v1572 = vld [vmem:[%s37] sm:$0x1]
        %v1574 = vperm.slane %v1572, 0
        %v1592 = vunpack.c.l.b16 %v1556
        %v1593 = vunpack.c.l.b16 %v1557
        %v1594 = vunpack.c.l.b16 %v1558
        %v1595 = vunpack.c.l.b16 %v1559
        %v1596 = vunpack.c.l.b16 %v1560
        %v1597 = vunpack.c.l.b16 %v1561
        %v1598 = vunpack.c.l.b16 %v1562
        %v1599 = vunpack.c.l.b16 %v1563
        %v1600 = vunpack.c.l.b16 %v1564
        %v1601 = vunpack.c.l.b16 %v1565
        %v1602 = vunpack.c.l.b16 %v1566
        %v1603 = vunpack.c.l.b16 %v1567
        %v1604 = vunpack.c.l.b16 %v1568
        %v1605 = vunpack.c.l.b16 %v1569
        %v1606 = vunpack.c.l.b16 %v1570
        %v1607 = vunpack.c.l.b16 %v1571
        %v1608 = vpack.c.b16 %v1593, %v1592
        %v1609 = vpack.c.b16 %v1595, %v1594
        %v1610 = vpack.c.b16 %v1597, %v1596
        %v1611 = vpack.c.b16 %v1599, %v1598
        %v1612 = vpack.c.b16 %v1601, %v1600
        %v1613 = vpack.c.b16 %v1603, %v1602
        %v1614 = vpack.c.b16 %v1605, %v1604
        %v1615 = vpack.c.b16 %v1607, %v1606
        %1624 = vmatpush.bf16.msra.mxu0 %v1615
        %1625 = vmatpush.bf16.msra.mxu0 %v1614
        %1626 = vmatpush.bf16.msra.mxu0 %v1613
        %1627 = vmatpush.bf16.msra.mxu0 %v1612
        %1628 = vmatpush.bf16.msra.mxu0 %v1611
        %1629 = vmatpush.bf16.msra.mxu0 %v1610
        %1630 = vmatpush.bf16.msra.mxu0 %v1609
        %1631 = vmatpush.bf16.msra.mxu0 %v1608
        %1632 = vmatmul.bf16.gmra.mxu0 %v1407
        %v1633 = vpop.f32.mrf.mxu0
        %v1634 = vadd.f32 %v1574, %v1633
        %v1635 = vpop.f32.mrf.mxu0
        %v1636 = vadd.f32 %v1574, %v1635
        %1637 = vdwg.mxu0
        %v1638 = vpack.c.bf16 %v1472, %v1470
        %v1639 = vpack.c.bf16 %v1554, %v1552
        %vm1640 = vcmask 261120
        %v1642 = vsel %vm1640, %v1638, 0
        %v1645 = vsel %vm1640, %v1639, 0
        %1647 = vmatpush.bf16.xpose.msra.mxu0 0
        %1648 = vmatpush.bf16.xpose.msra.mxu0 0
        %1649 = vmatpush.bf16.xpose.msra.mxu0 0
        %1650 = vmatpush.bf16.xpose.msra.mxu0 0
        %1651 = vmatpush.bf16.xpose.msra.mxu0 0
        %1652 = vmatpush.bf16.xpose.msra.mxu0 0
        %1653 = vmatpush.bf16.xpose.msra.mxu0 0
        %1654 = vmatpush.bf16.xpose.msra.mxu0 %v1645
        %1655 = vmatmul.bf16.gmra.mxu0 %v1642
        %v1656 = vpop.f32.mrf.mxu0
        %v1657 = vadd.f32 0.0, %v1656
        %v1658 = vpop.f32.mrf.mxu0
        %v1659 = vadd.f32 0.0, %v1658
        %1660 = vdwg.mxu0
        %v1661 = vmul.f32 %v1657, 0.17677669
        %v1662 = vmul.f32 %v1659, 0.17677669
        %vm1663 = vcmask 80896
        %v1664 = vsel %vm1663, %v1661, -inf
        %1665 = vmax.xlane.f32.xlu0 %v1664
        %v1666 = vpop.xlane.xlu0 %1665
        %vm1667 = vcmask 74752
        %v1668 = vsel %vm1667, %v1662, -inf
        %1669 = vmax.xlane.f32.xlu0 %v1668
        %v1670 = vpop.xlane.xlu0 %1669
        %v1671 = vsub.f32 %v1661, %v1666
        %v1672 = vsub.f32 %v1662, %v1670
        %v1673 = vmul.f32 %v1671, 1.442695
        %v1674 = vpow.pop %v1673
        %v1675 = vmul.f32 %v1672, 1.442695
        %v1676 = vpow.pop %v1675
        %v1677 = vsel %vm1663, %v1674, 0.0
        %1678 = vadd.xlane.f32.xlu0 %v1677
        %v1679 = vpop.xlane.xlu0 %1678
        %v1680 = vsel %vm1667, %v1676, 0.0
        %1681 = vadd.xlane.f32.xlu0 %v1680
        %v1682 = vpop.xlane.xlu0 %1681
        %v1683 = vrcp.pop %v1679
        %v1684 = vrcp.pop %v1682
        %v1685 = vmul.f32 %v1674, %v1683
        %v1686 = vmul.f32 %v1676, %v1684
        %v1687 = vpack.c.bf16 %v1686, %v1685
        %v1688 = vpack.c.bf16 %v1636, %v1634
        %v1690 = vsel %vm1663, %v1687, 0
        %vm1692 = vcmask 1044480
        %v1694 = vsel %vm1692, %v1688, 0
        %1696 = vmatpush.bf16.msra.mxu0 0
        %1697 = vmatpush.bf16.msra.mxu0 0
        %1698 = vmatpush.bf16.msra.mxu0 0
        %1699 = vmatpush.bf16.msra.mxu0 0
        %1700 = vmatpush.bf16.msra.mxu0 0
        %1701 = vmatpush.bf16.msra.mxu0 0
        %1702 = vmatpush.bf16.msra.mxu0 0
        %1703 = vmatpush.bf16.msra.mxu0 %v1694
        %1704 = vmatmul.bf16.gmra.mxu0 %v1690
        %v1705 = vpop.f32.mrf.mxu0
        %v1706 = vadd.f32 0.0, %v1705
        %v1707 = vpop.f32.mrf.mxu0
        %v1708 = vadd.f32 0.0, %v1707
        %1709 = vdwg.mxu0
        %v1710 = vld [vmem:[%s39] sm:$0xf]
        %v1711 = vld [vmem:[%s39 + $0x4] sm:$0xf]
        %v1712 = vld [vmem:[%s39 + $0x8] sm:$0xf]
        %v1713 = vld [vmem:[%s39 + $0xc] sm:$0xf]
        %v1714 = vpack.c.bf16 %v1708, %v1706
        %s1715 = scalar_lea.vmem %s27, 64
        %v1716 = vld [vmem:[%s1715] sm:$0xf]
        %v1717 = vld [vmem:[%s1715 + $0x4] sm:$0xf]
        %v1718 = vld [vmem:[%s1715 + $0x8] sm:$0xf]
        %v1719 = vld [vmem:[%s1715 + $0xc] sm:$0xf]
        %v1720 = vld [vmem:[%s1715 + $0x10] sm:$0xf]
        %v1721 = vld [vmem:[%s1715 + $0x14] sm:$0xf]
        %v1722 = vld [vmem:[%s1715 + $0x18] sm:$0xf]
        %v1723 = vld [vmem:[%s1715 + $0x1c] sm:$0xf]
        %v1724 = vld [vmem:[%s1715 + $0x20] sm:$0xf]
        %v1725 = vld [vmem:[%s1715 + $0x24] sm:$0xf]
        %v1726 = vld [vmem:[%s1715 + $0x28] sm:$0xf]
        %v1727 = vld [vmem:[%s1715 + $0x2c] sm:$0xf]
        %v1728 = vld [vmem:[%s1715 + $0x30] sm:$0xf]
        %v1729 = vld [vmem:[%s1715 + $0x34] sm:$0xf]
        %v1730 = vld [vmem:[%s1715 + $0x38] sm:$0xf]
        %v1731 = vld [vmem:[%s1715 + $0x3c] sm:$0xf]
        %s1732 = scalar_lea.vmem %s29, 1
        %v1733 = vld [vmem:[%s1732] sm:$0x1]
        %v1735 = vperm.slane %v1733, 0
        %v1753 = vunpack.c.l.b16 %v1716
        %v1754 = vunpack.c.l.b16 %v1717
        %v1755 = vunpack.c.l.b16 %v1718
        %v1756 = vunpack.c.l.b16 %v1719
        %v1757 = vunpack.c.l.b16 %v1720
        %v1758 = vunpack.c.l.b16 %v1721
        %v1759 = vunpack.c.l.b16 %v1722
        %v1760 = vunpack.c.l.b16 %v1723
        %v1761 = vunpack.c.l.b16 %v1724
        %v1762 = vunpack.c.l.b16 %v1725
        %v1763 = vunpack.c.l.b16 %v1726
        %v1764 = vunpack.c.l.b16 %v1727
        %v1765 = vunpack.c.l.b16 %v1728
        %v1766 = vunpack.c.l.b16 %v1729
        %v1767 = vunpack.c.l.b16 %v1730
        %v1768 = vunpack.c.l.b16 %v1731
        %v1769 = vpack.c.b16 %v1754, %v1753
        %v1770 = vpack.c.b16 %v1756, %v1755
        %v1771 = vpack.c.b16 %v1758, %v1757
        %v1772 = vpack.c.b16 %v1760, %v1759
        %v1773 = vpack.c.b16 %v1762, %v1761
        %v1774 = vpack.c.b16 %v1764, %v1763
        %v1775 = vpack.c.b16 %v1766, %v1765
        %v1776 = vpack.c.b16 %v1768, %v1767
        %1785 = vmatpush.bf16.msra.mxu0 %v1776
        %1786 = vmatpush.bf16.msra.mxu0 %v1775
        %1787 = vmatpush.bf16.msra.mxu0 %v1774
        %1788 = vmatpush.bf16.msra.mxu0 %v1773
        %1789 = vmatpush.bf16.msra.mxu0 %v1772
        %1790 = vmatpush.bf16.msra.mxu0 %v1771
        %1791 = vmatpush.bf16.msra.mxu0 %v1770
        %1792 = vmatpush.bf16.msra.mxu0 %v1769
        %1793 = vmatmul.bf16.gmra.mxu0 %v1407
        %v1794 = vpop.f32.mrf.mxu0
        %v1795 = vadd.f32 %v1735, %v1794
        %v1796 = vpop.f32.mrf.mxu0
        %v1797 = vadd.f32 %v1735, %v1796
        %1798 = vdwg.mxu0
        %s1799 = scalar_lea.vmem %s31, 64
        %v1800 = vld [vmem:[%s1799] sm:$0xf]
        %v1801 = vld [vmem:[%s1799 + $0x4] sm:$0xf]
        %v1802 = vld [vmem:[%s1799 + $0x8] sm:$0xf]
        %v1803 = vld [vmem:[%s1799 + $0xc] sm:$0xf]
        %v1804 = vld [vmem:[%s1799 + $0x10] sm:$0xf]
        %v1805 = vld [vmem:[%s1799 + $0x14] sm:$0xf]
        %v1806 = vld [vmem:[%s1799 + $0x18] sm:$0xf]
        %v1807 = vld [vmem:[%s1799 + $0x1c] sm:$0xf]
        %v1808 = vld [vmem:[%s1799 + $0x20] sm:$0xf]
        %v1809 = vld [vmem:[%s1799 + $0x24] sm:$0xf]
        %v1810 = vld [vmem:[%s1799 + $0x28] sm:$0xf]
        %v1811 = vld [vmem:[%s1799 + $0x2c] sm:$0xf]
        %v1812 = vld [vmem:[%s1799 + $0x30] sm:$0xf]
        %v1813 = vld [vmem:[%s1799 + $0x34] sm:$0xf]
        %v1814 = vld [vmem:[%s1799 + $0x38] sm:$0xf]
        %v1815 = vld [vmem:[%s1799 + $0x3c] sm:$0xf]
        %s1816 = scalar_lea.vmem %s33, 1
        %v1817 = vld [vmem:[%s1816] sm:$0x1]
        %v1819 = vperm.slane %v1817, 0
        %v1837 = vunpack.c.l.b16 %v1800
        %v1838 = vunpack.c.l.b16 %v1801
        %v1839 = vunpack.c.l.b16 %v1802
        %v1840 = vunpack.c.l.b16 %v1803
        %v1841 = vunpack.c.l.b16 %v1804
        %v1842 = vunpack.c.l.b16 %v1805
        %v1843 = vunpack.c.l.b16 %v1806
        %v1844 = vunpack.c.l.b16 %v1807
        %v1845 = vunpack.c.l.b16 %v1808
        %v1846 = vunpack.c.l.b16 %v1809
        %v1847 = vunpack.c.l.b16 %v1810
        %v1848 = vunpack.c.l.b16 %v1811
        %v1849 = vunpack.c.l.b16 %v1812
        %v1850 = vunpack.c.l.b16 %v1813
        %v1851 = vunpack.c.l.b16 %v1814
        %v1852 = vunpack.c.l.b16 %v1815
        %v1853 = vpack.c.b16 %v1838, %v1837
        %v1854 = vpack.c.b16 %v1840, %v1839
        %v1855 = vpack.c.b16 %v1842, %v1841
        %v1856 = vpack.c.b16 %v1844, %v1843
        %v1857 = vpack.c.b16 %v1846, %v1845
        %v1858 = vpack.c.b16 %v1848, %v1847
        %v1859 = vpack.c.b16 %v1850, %v1849
        %v1860 = vpack.c.b16 %v1852, %v1851
        %1869 = vmatpush.bf16.msra.mxu0 %v1860
        %1870 = vmatpush.bf16.msra.mxu0 %v1859
        %1871 = vmatpush.bf16.msra.mxu0 %v1858
        %1872 = vmatpush.bf16.msra.mxu0 %v1857
        %1873 = vmatpush.bf16.msra.mxu0 %v1856
        %1874 = vmatpush.bf16.msra.mxu0 %v1855
        %1875 = vmatpush.bf16.msra.mxu0 %v1854
        %1876 = vmatpush.bf16.msra.mxu0 %v1853
        %1877 = vmatmul.bf16.gmra.mxu0 %v1407
        %v1878 = vpop.f32.mrf.mxu0
        %v1879 = vadd.f32 %v1819, %v1878
        %v1880 = vpop.f32.mrf.mxu0
        %v1881 = vadd.f32 %v1819, %v1880
        %1882 = vdwg.mxu0
        %s1883 = scalar_lea.vmem %s35, 64
        %v1884 = vld [vmem:[%s1883] sm:$0xf]
        %v1885 = vld [vmem:[%s1883 + $0x4] sm:$0xf]
        %v1886 = vld [vmem:[%s1883 + $0x8] sm:$0xf]
        %v1887 = vld [vmem:[%s1883 + $0xc] sm:$0xf]
        %v1888 = vld [vmem:[%s1883 + $0x10] sm:$0xf]
        %v1889 = vld [vmem:[%s1883 + $0x14] sm:$0xf]
        %v1890 = vld [vmem:[%s1883 + $0x18] sm:$0xf]
        %v1891 = vld [vmem:[%s1883 + $0x1c] sm:$0xf]
        %v1892 = vld [vmem:[%s1883 + $0x20] sm:$0xf]
        %v1893 = vld [vmem:[%s1883 + $0x24] sm:$0xf]
        %v1894 = vld [vmem:[%s1883 + $0x28] sm:$0xf]
        %v1895 = vld [vmem:[%s1883 + $0x2c] sm:$0xf]
        %v1896 = vld [vmem:[%s1883 + $0x30] sm:$0xf]
        %v1897 = vld [vmem:[%s1883 + $0x34] sm:$0xf]
        %v1898 = vld [vmem:[%s1883 + $0x38] sm:$0xf]
        %v1899 = vld [vmem:[%s1883 + $0x3c] sm:$0xf]
        %s1900 = scalar_lea.vmem %s37, 1
        %v1901 = vld [vmem:[%s1900] sm:$0x1]
        %v1903 = vperm.slane %v1901, 0
        %v1921 = vunpack.c.l.b16 %v1884
        %v1922 = vunpack.c.l.b16 %v1885
        %v1923 = vunpack.c.l.b16 %v1886
        %v1924 = vunpack.c.l.b16 %v1887
        %v1925 = vunpack.c.l.b16 %v1888
        %v1926 = vunpack.c.l.b16 %v1889
        %v1927 = vunpack.c.l.b16 %v1890
        %v1928 = vunpack.c.l.b16 %v1891
        %v1929 = vunpack.c.l.b16 %v1892
        %v1930 = vunpack.c.l.b16 %v1893
        %v1931 = vunpack.c.l.b16 %v1894
        %v1932 = vunpack.c.l.b16 %v1895
        %v1933 = vunpack.c.l.b16 %v1896
        %v1934 = vunpack.c.l.b16 %v1897
        %v1935 = vunpack.c.l.b16 %v1898
        %v1936 = vunpack.c.l.b16 %v1899
        %v1937 = vpack.c.b16 %v1922, %v1921
        %v1938 = vpack.c.b16 %v1924, %v1923
        %v1939 = vpack.c.b16 %v1926, %v1925
        %v1940 = vpack.c.b16 %v1928, %v1927
        %v1941 = vpack.c.b16 %v1930, %v1929
        %v1942 = vpack.c.b16 %v1932, %v1931
        %v1943 = vpack.c.b16 %v1934, %v1933
        %v1944 = vpack.c.b16 %v1936, %v1935
        %1953 = vmatpush.bf16.msra.mxu0 %v1944
        %1954 = vmatpush.bf16.msra.mxu0 %v1943
        %1955 = vmatpush.bf16.msra.mxu0 %v1942
        %1956 = vmatpush.bf16.msra.mxu0 %v1941
        %1957 = vmatpush.bf16.msra.mxu0 %v1940
        %1958 = vmatpush.bf16.msra.mxu0 %v1939
        %1959 = vmatpush.bf16.msra.mxu0 %v1938
        %1960 = vmatpush.bf16.msra.mxu0 %v1937
        %1961 = vmatmul.bf16.gmra.mxu0 %v1407
        %v1962 = vpop.f32.mrf.mxu0
        %v1963 = vadd.f32 %v1903, %v1962
        %v1964 = vpop.f32.mrf.mxu0
        %v1965 = vadd.f32 %v1903, %v1964
        %1966 = vdwg.mxu0
        %v1967 = vpack.c.bf16 %v1797, %v1795
        %v1968 = vpack.c.bf16 %v1881, %v1879
        %v1970 = vsel %vm1640, %v1967, 0
        %v1973 = vsel %vm1640, %v1968, 0
        %1975 = vmatpush.bf16.xpose.msra.mxu0 0
        %1976 = vmatpush.bf16.xpose.msra.mxu0 0
        %1977 = vmatpush.bf16.xpose.msra.mxu0 0
        %1978 = vmatpush.bf16.xpose.msra.mxu0 0
        %1979 = vmatpush.bf16.xpose.msra.mxu0 0
        %1980 = vmatpush.bf16.xpose.msra.mxu0 0
        %1981 = vmatpush.bf16.xpose.msra.mxu0 0
        %1982 = vmatpush.bf16.xpose.msra.mxu0 %v1973
        %1983 = vmatmul.bf16.gmra.mxu0 %v1970
        %v1984 = vpop.f32.mrf.mxu0
        %v1985 = vadd.f32 0.0, %v1984
        %v1986 = vpop.f32.mrf.mxu0
        %v1987 = vadd.f32 0.0, %v1986
        %1988 = vdwg.mxu0
        %v1989 = vmul.f32 %v1985, 0.17677669
        %v1990 = vmul.f32 %v1987, 0.17677669
        %v1991 = vsel %vm1663, %v1989, -inf
        %1992 = vmax.xlane.f32.xlu0 %v1991
        %v1993 = vpop.xlane.xlu0 %1992
        %v1994 = vsel %vm1667, %v1990, -inf
        %1995 = vmax.xlane.f32.xlu0 %v1994
        %v1996 = vpop.xlane.xlu0 %1995
        %v1997 = vsub.f32 %v1989, %v1993
        %v1998 = vsub.f32 %v1990, %v1996
        %v1999 = vmul.f32 %v1997, 1.442695
        %v2000 = vpow.pop %v1999
        %v2001 = vmul.f32 %v1998, 1.442695
        %v2002 = vpow.pop %v2001
        %v2003 = vsel %vm1663, %v2000, 0.0
        %2004 = vadd.xlane.f32.xlu0 %v2003
        %v2005 = vpop.xlane.xlu0 %2004
        %v2006 = vsel %vm1667, %v2002, 0.0
        %2007 = vadd.xlane.f32.xlu0 %v2006
        %v2008 = vpop.xlane.xlu0 %2007
        %v2009 = vrcp.pop %v2005
        %v2010 = vrcp.pop %v2008
        %v2011 = vmul.f32 %v2000, %v2009
        %v2012 = vmul.f32 %v2002, %v2010
        %v2013 = vpack.c.bf16 %v2012, %v2011
        %v2014 = vpack.c.bf16 %v1965, %v1963
        %v2016 = vsel %vm1663, %v2013, 0
        %v2019 = vsel %vm1692, %v2014, 0
        %2021 = vmatpush.bf16.msra.mxu0 0
        %2022 = vmatpush.bf16.msra.mxu0 0
        %2023 = vmatpush.bf16.msra.mxu0 0
        %2024 = vmatpush.bf16.msra.mxu0 0
        %2025 = vmatpush.bf16.msra.mxu0 0
        %2026 = vmatpush.bf16.msra.mxu0 0
        %2027 = vmatpush.bf16.msra.mxu0 0
        %2028 = vmatpush.bf16.msra.mxu0 %v2019
        %2029 = vmatmul.bf16.gmra.mxu0 %v2016
        %v2030 = vpop.f32.mrf.mxu0
        %v2031 = vadd.f32 0.0, %v2030
        %v2032 = vpop.f32.mrf.mxu0
        %v2033 = vadd.f32 0.0, %v2032
        %2034 = vdwg.mxu0
        %s2035 = scalar_lea.vmem %s39, 16
        %v2036 = vld [vmem:[%s2035] sm:$0xf]
        %v2037 = vld [vmem:[%s2035 + $0x4] sm:$0xf]
        %v2038 = vld [vmem:[%s2035 + $0x8] sm:$0xf]
        %v2039 = vld [vmem:[%s2035 + $0xc] sm:$0xf]
        %v2040 = vpack.c.bf16 %v2033, %v2031
        %v2045 = vunpack.c.l.b16 %v2036
        %v2046 = vunpack.c.l.b16 %v2037
        %v2047 = vunpack.c.l.b16 %v2038
        %v2048 = vunpack.c.l.b16 %v2039
        %v2049 = vpack.c.b16 %v2046, %v2045
        %v2050 = vpack.c.b16 %v2048, %v2047
        %v2054 = vsel %vm1640, %v2040, 0
        %2056 = vmatpush.bf16.msra.mxu0 0
        %2057 = vmatpush.bf16.msra.mxu0 0
        %2058 = vmatpush.bf16.msra.mxu0 0
        %2059 = vmatpush.bf16.msra.mxu0 0
        %2060 = vmatpush.bf16.msra.mxu0 0
        %2061 = vmatpush.bf16.msra.mxu0 0
        %2062 = vmatpush.bf16.msra.mxu0 %v2050
        %2063 = vmatpush.bf16.msra.mxu0 %v2049
        %2064 = vmatmul.bf16.gmra.mxu0 %v2054
        %v2065 = vpop.f32.mrf.mxu0
        %v2066 = vadd.f32 0.0, %v2065
        %v2067 = vpop.f32.mrf.mxu0
        %v2068 = vadd.f32 0.0, %v2067
        %2069 = vdwg.mxu0
        %v2074 = vunpack.c.l.b16 %v1710
        %v2075 = vunpack.c.l.b16 %v1711
        %v2076 = vunpack.c.l.b16 %v1712
        %v2077 = vunpack.c.l.b16 %v1713
        %v2078 = vpack.c.b16 %v2075, %v2074
        %v2079 = vpack.c.b16 %v2077, %v2076
        %v2083 = vsel %vm1640, %v1714, 0
        %2085 = vmatpush.bf16.msra.mxu0 0
        %2086 = vmatpush.bf16.msra.mxu0 0
        %2087 = vmatpush.bf16.msra.mxu0 0
        %2088 = vmatpush.bf16.msra.mxu0 0
        %2089 = vmatpush.bf16.msra.mxu0 0
        %2090 = vmatpush.bf16.msra.mxu0 0
        %2091 = vmatpush.bf16.msra.mxu0 %v2079
        %2092 = vmatpush.bf16.msra.mxu0 %v2078
        %2093 = vmatmul.bf16.gmra.mxu0 %v2083
        %v2094 = vpop.f32.mrf.mxu0
        %v2095 = vadd.f32 %v2066, %v2094
        %v2096 = vpop.f32.mrf.mxu0
        %v2097 = vadd.f32 %v2068, %v2096
        %2098 = vdwg.mxu0
        %s2099 = scalar_lea.vmem %s27, 128
        %v2100 = vld [vmem:[%s2099] sm:$0xf]
        %v2101 = vld [vmem:[%s2099 + $0x4] sm:$0xf]
        %v2102 = vld [vmem:[%s2099 + $0x8] sm:$0xf]
        %v2103 = vld [vmem:[%s2099 + $0xc] sm:$0xf]
        %v2104 = vld [vmem:[%s2099 + $0x10] sm:$0xf]
        %v2105 = vld [vmem:[%s2099 + $0x14] sm:$0xf]
        %v2106 = vld [vmem:[%s2099 + $0x18] sm:$0xf]
        %v2107 = vld [vmem:[%s2099 + $0x1c] sm:$0xf]
        %v2108 = vld [vmem:[%s2099 + $0x20] sm:$0xf]
        %v2109 = vld [vmem:[%s2099 + $0x24] sm:$0xf]
        %v2110 = vld [vmem:[%s2099 + $0x28] sm:$0xf]
        %v2111 = vld [vmem:[%s2099 + $0x2c] sm:$0xf]
        %v2112 = vld [vmem:[%s2099 + $0x30] sm:$0xf]
        %v2113 = vld [vmem:[%s2099 + $0x34] sm:$0xf]
        %v2114 = vld [vmem:[%s2099 + $0x38] sm:$0xf]
        %v2115 = vld [vmem:[%s2099 + $0x3c] sm:$0xf]
        %s2116 = scalar_lea.vmem %s29, 2
        %v2117 = vld [vmem:[%s2116] sm:$0x1]
        %v2119 = vperm.slane %v2117, 0
        %v2137 = vunpack.c.l.b16 %v2100
        %v2138 = vunpack.c.l.b16 %v2101
        %v2139 = vunpack.c.l.b16 %v2102
        %v2140 = vunpack.c.l.b16 %v2103
        %v2141 = vunpack.c.l.b16 %v2104
        %v2142 = vunpack.c.l.b16 %v2105
        %v2143 = vunpack.c.l.b16 %v2106
        %v2144 = vunpack.c.l.b16 %v2107
        %v2145 = vunpack.c.l.b16 %v2108
        %v2146 = vunpack.c.l.b16 %v2109
        %v2147 = vunpack.c.l.b16 %v2110
        %v2148 = vunpack.c.l.b16 %v2111
        %v2149 = vunpack.c.l.b16 %v2112
        %v2150 = vunpack.c.l.b16 %v2113
        %v2151 = vunpack.c.l.b16 %v2114
        %v2152 = vunpack.c.l.b16 %v2115
        %v2153 = vpack.c.b16 %v2138, %v2137
        %v2154 = vpack.c.b16 %v2140, %v2139
        %v2155 = vpack.c.b16 %v2142, %v2141
        %v2156 = vpack.c.b16 %v2144, %v2143
        %v2157 = vpack.c.b16 %v2146, %v2145
        %v2158 = vpack.c.b16 %v2148, %v2147
        %v2159 = vpack.c.b16 %v2150, %v2149
        %v2160 = vpack.c.b16 %v2152, %v2151
        %2169 = vmatpush.bf16.msra.mxu0 %v2160
        %2170 = vmatpush.bf16.msra.mxu0 %v2159
        %2171 = vmatpush.bf16.msra.mxu0 %v2158
        %2172 = vmatpush.bf16.msra.mxu0 %v2157
        %2173 = vmatpush.bf16.msra.mxu0 %v2156
        %2174 = vmatpush.bf16.msra.mxu0 %v2155
        %2175 = vmatpush.bf16.msra.mxu0 %v2154
        %2176 = vmatpush.bf16.msra.mxu0 %v2153
        %2177 = vmatmul.bf16.gmra.mxu0 %v1407
        %v2178 = vpop.f32.mrf.mxu0
        %v2179 = vadd.f32 %v2119, %v2178
        %v2180 = vpop.f32.mrf.mxu0
        %v2181 = vadd.f32 %v2119, %v2180
        %2182 = vdwg.mxu0
        %s2183 = scalar_lea.vmem %s31, 128
        %v2184 = vld [vmem:[%s2183] sm:$0xf]
        %v2185 = vld [vmem:[%s2183 + $0x4] sm:$0xf]
        %v2186 = vld [vmem:[%s2183 + $0x8] sm:$0xf]
        %v2187 = vld [vmem:[%s2183 + $0xc] sm:$0xf]
        %v2188 = vld [vmem:[%s2183 + $0x10] sm:$0xf]
        %v2189 = vld [vmem:[%s2183 + $0x14] sm:$0xf]
        %v2190 = vld [vmem:[%s2183 + $0x18] sm:$0xf]
        %v2191 = vld [vmem:[%s2183 + $0x1c] sm:$0xf]
        %v2192 = vld [vmem:[%s2183 + $0x20] sm:$0xf]
        %v2193 = vld [vmem:[%s2183 + $0x24] sm:$0xf]
        %v2194 = vld [vmem:[%s2183 + $0x28] sm:$0xf]
        %v2195 = vld [vmem:[%s2183 + $0x2c] sm:$0xf]
        %v2196 = vld [vmem:[%s2183 + $0x30] sm:$0xf]
        %v2197 = vld [vmem:[%s2183 + $0x34] sm:$0xf]
        %v2198 = vld [vmem:[%s2183 + $0x38] sm:$0xf]
        %v2199 = vld [vmem:[%s2183 + $0x3c] sm:$0xf]
        %s2200 = scalar_lea.vmem %s33, 2
        %v2201 = vld [vmem:[%s2200] sm:$0x1]
        %v2203 = vperm.slane %v2201, 0
        %v2221 = vunpack.c.l.b16 %v2184
        %v2222 = vunpack.c.l.b16 %v2185
        %v2223 = vunpack.c.l.b16 %v2186
        %v2224 = vunpack.c.l.b16 %v2187
        %v2225 = vunpack.c.l.b16 %v2188
        %v2226 = vunpack.c.l.b16 %v2189
        %v2227 = vunpack.c.l.b16 %v2190
        %v2228 = vunpack.c.l.b16 %v2191
        %v2229 = vunpack.c.l.b16 %v2192
        %v2230 = vunpack.c.l.b16 %v2193
        %v2231 = vunpack.c.l.b16 %v2194
        %v2232 = vunpack.c.l.b16 %v2195
        %v2233 = vunpack.c.l.b16 %v2196
        %v2234 = vunpack.c.l.b16 %v2197
        %v2235 = vunpack.c.l.b16 %v2198
        %v2236 = vunpack.c.l.b16 %v2199
        %v2237 = vpack.c.b16 %v2222, %v2221
        %v2238 = vpack.c.b16 %v2224, %v2223
        %v2239 = vpack.c.b16 %v2226, %v2225
        %v2240 = vpack.c.b16 %v2228, %v2227
        %v2241 = vpack.c.b16 %v2230, %v2229
        %v2242 = vpack.c.b16 %v2232, %v2231
        %v2243 = vpack.c.b16 %v2234, %v2233
        %v2244 = vpack.c.b16 %v2236, %v2235
        %2253 = vmatpush.bf16.msra.mxu0 %v2244
        %2254 = vmatpush.bf16.msra.mxu0 %v2243
        %2255 = vmatpush.bf16.msra.mxu0 %v2242
        %2256 = vmatpush.bf16.msra.mxu0 %v2241
        %2257 = vmatpush.bf16.msra.mxu0 %v2240
        %2258 = vmatpush.bf16.msra.mxu0 %v2239
        %2259 = vmatpush.bf16.msra.mxu0 %v2238
        %2260 = vmatpush.bf16.msra.mxu0 %v2237
        %2261 = vmatmul.bf16.gmra.mxu0 %v1407
        %v2262 = vpop.f32.mrf.mxu0
        %v2263 = vadd.f32 %v2203, %v2262
        %v2264 = vpop.f32.mrf.mxu0
        %v2265 = vadd.f32 %v2203, %v2264
        %2266 = vdwg.mxu0
        %s2267 = scalar_lea.vmem %s35, 128
        %v2268 = vld [vmem:[%s2267] sm:$0xf]
        %v2269 = vld [vmem:[%s2267 + $0x4] sm:$0xf]
        %v2270 = vld [vmem:[%s2267 + $0x8] sm:$0xf]
        %v2271 = vld [vmem:[%s2267 + $0xc] sm:$0xf]
        %v2272 = vld [vmem:[%s2267 + $0x10] sm:$0xf]
        %v2273 = vld [vmem:[%s2267 + $0x14] sm:$0xf]
        %v2274 = vld [vmem:[%s2267 + $0x18] sm:$0xf]
        %v2275 = vld [vmem:[%s2267 + $0x1c] sm:$0xf]
        %v2276 = vld [vmem:[%s2267 + $0x20] sm:$0xf]
        %v2277 = vld [vmem:[%s2267 + $0x24] sm:$0xf]
        %v2278 = vld [vmem:[%s2267 + $0x28] sm:$0xf]
        %v2279 = vld [vmem:[%s2267 + $0x2c] sm:$0xf]
        %v2280 = vld [vmem:[%s2267 + $0x30] sm:$0xf]
        %v2281 = vld [vmem:[%s2267 + $0x34] sm:$0xf]
        %v2282 = vld [vmem:[%s2267 + $0x38] sm:$0xf]
        %v2283 = vld [vmem:[%s2267 + $0x3c] sm:$0xf]
        %s2284 = scalar_lea.vmem %s37, 2
        %v2285 = vld [vmem:[%s2284] sm:$0x1]
        %v2287 = vperm.slane %v2285, 0
        %v2305 = vunpack.c.l.b16 %v2268
        %v2306 = vunpack.c.l.b16 %v2269
        %v2307 = vunpack.c.l.b16 %v2270
        %v2308 = vunpack.c.l.b16 %v2271
        %v2309 = vunpack.c.l.b16 %v2272
        %v2310 = vunpack.c.l.b16 %v2273
        %v2311 = vunpack.c.l.b16 %v2274
        %v2312 = vunpack.c.l.b16 %v2275
        %v2313 = vunpack.c.l.b16 %v2276
        %v2314 = vunpack.c.l.b16 %v2277
        %v2315 = vunpack.c.l.b16 %v2278
        %v2316 = vunpack.c.l.b16 %v2279
        %v2317 = vunpack.c.l.b16 %v2280
        %v2318 = vunpack.c.l.b16 %v2281
        %v2319 = vunpack.c.l.b16 %v2282
        %v2320 = vunpack.c.l.b16 %v2283
        %v2321 = vpack.c.b16 %v2306, %v2305
        %v2322 = vpack.c.b16 %v2308, %v2307
        %v2323 = vpack.c.b16 %v2310, %v2309
        %v2324 = vpack.c.b16 %v2312, %v2311
        %v2325 = vpack.c.b16 %v2314, %v2313
        %v2326 = vpack.c.b16 %v2316, %v2315
        %v2327 = vpack.c.b16 %v2318, %v2317
        %v2328 = vpack.c.b16 %v2320, %v2319
        %2337 = vmatpush.bf16.msra.mxu0 %v2328
        %2338 = vmatpush.bf16.msra.mxu0 %v2327
        %2339 = vmatpush.bf16.msra.mxu0 %v2326
        %2340 = vmatpush.bf16.msra.mxu0 %v2325
        %2341 = vmatpush.bf16.msra.mxu0 %v2324
        %2342 = vmatpush.bf16.msra.mxu0 %v2323
        %2343 = vmatpush.bf16.msra.mxu0 %v2322
        %2344 = vmatpush.bf16.msra.mxu0 %v2321
        %2345 = vmatmul.bf16.gmra.mxu0 %v1407
        %v2346 = vpop.f32.mrf.mxu0
        %v2347 = vadd.f32 %v2287, %v2346
        %v2348 = vpop.f32.mrf.mxu0
        %v2349 = vadd.f32 %v2287, %v2348
        %2350 = vdwg.mxu0
        %v2351 = vpack.c.bf16 %v2181, %v2179
        %v2352 = vpack.c.bf16 %v2265, %v2263
        %v2354 = vsel %vm1640, %v2351, 0
        %v2357 = vsel %vm1640, %v2352, 0
        %2359 = vmatpush.bf16.xpose.msra.mxu0 0
        %2360 = vmatpush.bf16.xpose.msra.mxu0 0
        %2361 = vmatpush.bf16.xpose.msra.mxu0 0
        %2362 = vmatpush.bf16.xpose.msra.mxu0 0
        %2363 = vmatpush.bf16.xpose.msra.mxu0 0
        %2364 = vmatpush.bf16.xpose.msra.mxu0 0
        %2365 = vmatpush.bf16.xpose.msra.mxu0 0
        %2366 = vmatpush.bf16.xpose.msra.mxu0 %v2357
        %2367 = vmatmul.bf16.gmra.mxu0 %v2354
        %v2368 = vpop.f32.mrf.mxu0
        %v2369 = vadd.f32 0.0, %v2368
        %v2370 = vpop.f32.mrf.mxu0
        %v2371 = vadd.f32 0.0, %v2370
        %2372 = vdwg.mxu0
        %v2373 = vmul.f32 %v2369, 0.17677669
        %v2374 = vmul.f32 %v2371, 0.17677669
        %v2375 = vsel %vm1663, %v2373, -inf
        %2376 = vmax.xlane.f32.xlu0 %v2375
        %v2377 = vpop.xlane.xlu0 %2376
        %v2378 = vsel %vm1667, %v2374, -inf
        %2379 = vmax.xlane.f32.xlu0 %v2378
        %v2380 = vpop.xlane.xlu0 %2379
        %v2381 = vsub.f32 %v2373, %v2377
        %v2382 = vsub.f32 %v2374, %v2380
        %v2383 = vmul.f32 %v2381, 1.442695
        %v2384 = vpow.pop %v2383
        %v2385 = vmul.f32 %v2382, 1.442695
        %v2386 = vpow.pop %v2385
        %v2387 = vsel %vm1663, %v2384, 0.0
        %2388 = vadd.xlane.f32.xlu0 %v2387
        %v2389 = vpop.xlane.xlu0 %2388
        %v2390 = vsel %vm1667, %v2386, 0.0
        %2391 = vadd.xlane.f32.xlu0 %v2390
        %v2392 = vpop.xlane.xlu0 %2391
        %v2393 = vrcp.pop %v2389
        %v2394 = vrcp.pop %v2392
        %v2395 = vmul.f32 %v2384, %v2393
        %v2396 = vmul.f32 %v2386, %v2394
        %v2397 = vpack.c.bf16 %v2396, %v2395
        %v2398 = vpack.c.bf16 %v2349, %v2347
        %v2400 = vsel %vm1663, %v2397, 0
        %v2403 = vsel %vm1692, %v2398, 0
        %2405 = vmatpush.bf16.msra.mxu0 0
        %2406 = vmatpush.bf16.msra.mxu0 0
        %2407 = vmatpush.bf16.msra.mxu0 0
        %2408 = vmatpush.bf16.msra.mxu0 0
        %2409 = vmatpush.bf16.msra.mxu0 0
        %2410 = vmatpush.bf16.msra.mxu0 0
        %2411 = vmatpush.bf16.msra.mxu0 0
        %2412 = vmatpush.bf16.msra.mxu0 %v2403
        %2413 = vmatmul.bf16.gmra.mxu0 %v2400
        %v2414 = vpop.f32.mrf.mxu0
        %v2415 = vadd.f32 0.0, %v2414
        %v2416 = vpop.f32.mrf.mxu0
        %v2417 = vadd.f32 0.0, %v2416
        %2418 = vdwg.mxu0
        %s2419 = scalar_lea.vmem %s39, 32
        %v2420 = vld [vmem:[%s2419] sm:$0xf]
        %v2421 = vld [vmem:[%s2419 + $0x4] sm:$0xf]
        %v2422 = vld [vmem:[%s2419 + $0x8] sm:$0xf]
        %v2423 = vld [vmem:[%s2419 + $0xc] sm:$0xf]
        %v2424 = vpack.c.bf16 %v2417, %v2415
        %v2429 = vunpack.c.l.b16 %v2420
        %v2430 = vunpack.c.l.b16 %v2421
        %v2431 = vunpack.c.l.b16 %v2422
        %v2432 = vunpack.c.l.b16 %v2423
        %v2433 = vpack.c.b16 %v2430, %v2429
        %v2434 = vpack.c.b16 %v2432, %v2431
        %v2438 = vsel %vm1640, %v2424, 0
        %2440 = vmatpush.bf16.msra.mxu0 0
        %2441 = vmatpush.bf16.msra.mxu0 0
        %2442 = vmatpush.bf16.msra.mxu0 0
        %2443 = vmatpush.bf16.msra.mxu0 0
        %2444 = vmatpush.bf16.msra.mxu0 0
        %2445 = vmatpush.bf16.msra.mxu0 0
        %2446 = vmatpush.bf16.msra.mxu0 %v2434
        %2447 = vmatpush.bf16.msra.mxu0 %v2433
        %2448 = vmatmul.bf16.gmra.mxu0 %v2438
        %v2449 = vpop.f32.mrf.mxu0
        %v2450 = vadd.f32 0.0, %v2449
        %v2451 = vpop.f32.mrf.mxu0
        %v2452 = vadd.f32 0.0, %v2451
        %2453 = vdwg.mxu0
        %v2454 = vadd.f32 %v2095, %v2450
        %v2455 = vadd.f32 %v2097, %v2452
        %s2456 = scalar_lea.vmem %s27, 192
        %v2457 = vld [vmem:[%s2456] sm:$0xf]
        %v2458 = vld [vmem:[%s2456 + $0x4] sm:$0xf]
        %v2459 = vld [vmem:[%s2456 + $0x8] sm:$0xf]
        %v2460 = vld [vmem:[%s2456 + $0xc] sm:$0xf]
        %v2461 = vld [vmem:[%s2456 + $0x10] sm:$0xf]
        %v2462 = vld [vmem:[%s2456 + $0x14] sm:$0xf]
        %v2463 = vld [vmem:[%s2456 + $0x18] sm:$0xf]
        %v2464 = vld [vmem:[%s2456 + $0x1c] sm:$0xf]
        %v2465 = vld [vmem:[%s2456 + $0x20] sm:$0xf]
        %v2466 = vld [vmem:[%s2456 + $0x24] sm:$0xf]
        %v2467 = vld [vmem:[%s2456 + $0x28] sm:$0xf]
        %v2468 = vld [vmem:[%s2456 + $0x2c] sm:$0xf]
        %v2469 = vld [vmem:[%s2456 + $0x30] sm:$0xf]
        %v2470 = vld [vmem:[%s2456 + $0x34] sm:$0xf]
        %v2471 = vld [vmem:[%s2456 + $0x38] sm:$0xf]
        %v2472 = vld [vmem:[%s2456 + $0x3c] sm:$0xf]
        %s2473 = scalar_lea.vmem %s29, 3
        %v2474 = vld [vmem:[%s2473] sm:$0x1]
        %v2476 = vperm.slane %v2474, 0
        %v2494 = vunpack.c.l.b16 %v2457
        %v2495 = vunpack.c.l.b16 %v2458
        %v2496 = vunpack.c.l.b16 %v2459
        %v2497 = vunpack.c.l.b16 %v2460
        %v2498 = vunpack.c.l.b16 %v2461
        %v2499 = vunpack.c.l.b16 %v2462
        %v2500 = vunpack.c.l.b16 %v2463
        %v2501 = vunpack.c.l.b16 %v2464
        %v2502 = vunpack.c.l.b16 %v2465
        %v2503 = vunpack.c.l.b16 %v2466
        %v2504 = vunpack.c.l.b16 %v2467
        %v2505 = vunpack.c.l.b16 %v2468
        %v2506 = vunpack.c.l.b16 %v2469
        %v2507 = vunpack.c.l.b16 %v2470
        %v2508 = vunpack.c.l.b16 %v2471
        %v2509 = vunpack.c.l.b16 %v2472
        %v2510 = vpack.c.b16 %v2495, %v2494
        %v2511 = vpack.c.b16 %v2497, %v2496
        %v2512 = vpack.c.b16 %v2499, %v2498
        %v2513 = vpack.c.b16 %v2501, %v2500
        %v2514 = vpack.c.b16 %v2503, %v2502
        %v2515 = vpack.c.b16 %v2505, %v2504
        %v2516 = vpack.c.b16 %v2507, %v2506
        %v2517 = vpack.c.b16 %v2509, %v2508
        %2526 = vmatpush.bf16.msra.mxu0 %v2517
        %2527 = vmatpush.bf16.msra.mxu0 %v2516
        %2528 = vmatpush.bf16.msra.mxu0 %v2515
        %2529 = vmatpush.bf16.msra.mxu0 %v2514
        %2530 = vmatpush.bf16.msra.mxu0 %v2513
        %2531 = vmatpush.bf16.msra.mxu0 %v2512
        %2532 = vmatpush.bf16.msra.mxu0 %v2511
        %2533 = vmatpush.bf16.msra.mxu0 %v2510
        %2534 = vmatmul.bf16.gmra.mxu0 %v1407
        %v2535 = vpop.f32.mrf.mxu0
        %v2536 = vadd.f32 %v2476, %v2535
        %v2537 = vpop.f32.mrf.mxu0
        %v2538 = vadd.f32 %v2476, %v2537
        %2539 = vdwg.mxu0
        %s2540 = scalar_lea.vmem %s31, 192
        %v2541 = vld [vmem:[%s2540] sm:$0xf]
        %v2542 = vld [vmem:[%s2540 + $0x4] sm:$0xf]
        %v2543 = vld [vmem:[%s2540 + $0x8] sm:$0xf]
        %v2544 = vld [vmem:[%s2540 + $0xc] sm:$0xf]
        %v2545 = vld [vmem:[%s2540 + $0x10] sm:$0xf]
        %v2546 = vld [vmem:[%s2540 + $0x14] sm:$0xf]
        %v2547 = vld [vmem:[%s2540 + $0x18] sm:$0xf]
        %v2548 = vld [vmem:[%s2540 + $0x1c] sm:$0xf]
        %v2549 = vld [vmem:[%s2540 + $0x20] sm:$0xf]
        %v2550 = vld [vmem:[%s2540 + $0x24] sm:$0xf]
        %v2551 = vld [vmem:[%s2540 + $0x28] sm:$0xf]
        %v2552 = vld [vmem:[%s2540 + $0x2c] sm:$0xf]
        %v2553 = vld [vmem:[%s2540 + $0x30] sm:$0xf]
        %v2554 = vld [vmem:[%s2540 + $0x34] sm:$0xf]
        %v2555 = vld [vmem:[%s2540 + $0x38] sm:$0xf]
        %v2556 = vld [vmem:[%s2540 + $0x3c] sm:$0xf]
        %s2557 = scalar_lea.vmem %s33, 3
        %v2558 = vld [vmem:[%s2557] sm:$0x1]
        %v2560 = vperm.slane %v2558, 0
        %v2578 = vunpack.c.l.b16 %v2541
        %v2579 = vunpack.c.l.b16 %v2542
        %v2580 = vunpack.c.l.b16 %v2543
        %v2581 = vunpack.c.l.b16 %v2544
        %v2582 = vunpack.c.l.b16 %v2545
        %v2583 = vunpack.c.l.b16 %v2546
        %v2584 = vunpack.c.l.b16 %v2547
        %v2585 = vunpack.c.l.b16 %v2548
        %v2586 = vunpack.c.l.b16 %v2549
        %v2587 = vunpack.c.l.b16 %v2550
        %v2588 = vunpack.c.l.b16 %v2551
        %v2589 = vunpack.c.l.b16 %v2552
        %v2590 = vunpack.c.l.b16 %v2553
        %v2591 = vunpack.c.l.b16 %v2554
        %v2592 = vunpack.c.l.b16 %v2555
        %v2593 = vunpack.c.l.b16 %v2556
        %v2594 = vpack.c.b16 %v2579, %v2578
        %v2595 = vpack.c.b16 %v2581, %v2580
        %v2596 = vpack.c.b16 %v2583, %v2582
        %v2597 = vpack.c.b16 %v2585, %v2584
        %v2598 = vpack.c.b16 %v2587, %v2586
        %v2599 = vpack.c.b16 %v2589, %v2588
        %v2600 = vpack.c.b16 %v2591, %v2590
        %v2601 = vpack.c.b16 %v2593, %v2592
        %2610 = vmatpush.bf16.msra.mxu0 %v2601
        %2611 = vmatpush.bf16.msra.mxu0 %v2600
        %2612 = vmatpush.bf16.msra.mxu0 %v2599
        %2613 = vmatpush.bf16.msra.mxu0 %v2598
        %2614 = vmatpush.bf16.msra.mxu0 %v2597
        %2615 = vmatpush.bf16.msra.mxu0 %v2596
        %2616 = vmatpush.bf16.msra.mxu0 %v2595
        %2617 = vmatpush.bf16.msra.mxu0 %v2594
        %2618 = vmatmul.bf16.gmra.mxu0 %v1407
        %v2619 = vpop.f32.mrf.mxu0
        %v2620 = vadd.f32 %v2560, %v2619
        %v2621 = vpop.f32.mrf.mxu0
        %v2622 = vadd.f32 %v2560, %v2621
        %2623 = vdwg.mxu0
        %s2624 = scalar_lea.vmem %s35, 192
        %v2625 = vld [vmem:[%s2624] sm:$0xf]
        %v2626 = vld [vmem:[%s2624 + $0x4] sm:$0xf]
        %v2627 = vld [vmem:[%s2624 + $0x8] sm:$0xf]
        %v2628 = vld [vmem:[%s2624 + $0xc] sm:$0xf]
        %v2629 = vld [vmem:[%s2624 + $0x10] sm:$0xf]
        %v2630 = vld [vmem:[%s2624 + $0x14] sm:$0xf]
        %v2631 = vld [vmem:[%s2624 + $0x18] sm:$0xf]
        %v2632 = vld [vmem:[%s2624 + $0x1c] sm:$0xf]
        %v2633 = vld [vmem:[%s2624 + $0x20] sm:$0xf]
        %v2634 = vld [vmem:[%s2624 + $0x24] sm:$0xf]
        %v2635 = vld [vmem:[%s2624 + $0x28] sm:$0xf]
        %v2636 = vld [vmem:[%s2624 + $0x2c] sm:$0xf]
        %v2637 = vld [vmem:[%s2624 + $0x30] sm:$0xf]
        %v2638 = vld [vmem:[%s2624 + $0x34] sm:$0xf]
        %v2639 = vld [vmem:[%s2624 + $0x38] sm:$0xf]
        %v2640 = vld [vmem:[%s2624 + $0x3c] sm:$0xf]
        %s2641 = scalar_lea.vmem %s37, 3
        %v2642 = vld [vmem:[%s2641] sm:$0x1]
        %v2644 = vperm.slane %v2642, 0
        %v2662 = vunpack.c.l.b16 %v2625
        %v2663 = vunpack.c.l.b16 %v2626
        %v2664 = vunpack.c.l.b16 %v2627
        %v2665 = vunpack.c.l.b16 %v2628
        %v2666 = vunpack.c.l.b16 %v2629
        %v2667 = vunpack.c.l.b16 %v2630
        %v2668 = vunpack.c.l.b16 %v2631
        %v2669 = vunpack.c.l.b16 %v2632
        %v2670 = vunpack.c.l.b16 %v2633
        %v2671 = vunpack.c.l.b16 %v2634
        %v2672 = vunpack.c.l.b16 %v2635
        %v2673 = vunpack.c.l.b16 %v2636
        %v2674 = vunpack.c.l.b16 %v2637
        %v2675 = vunpack.c.l.b16 %v2638
        %v2676 = vunpack.c.l.b16 %v2639
        %v2677 = vunpack.c.l.b16 %v2640
        %v2678 = vpack.c.b16 %v2663, %v2662
        %v2679 = vpack.c.b16 %v2665, %v2664
        %v2680 = vpack.c.b16 %v2667, %v2666
        %v2681 = vpack.c.b16 %v2669, %v2668
        %v2682 = vpack.c.b16 %v2671, %v2670
        %v2683 = vpack.c.b16 %v2673, %v2672
        %v2684 = vpack.c.b16 %v2675, %v2674
        %v2685 = vpack.c.b16 %v2677, %v2676
        %2694 = vmatpush.bf16.msra.mxu0 %v2685
        %2695 = vmatpush.bf16.msra.mxu0 %v2684
        %2696 = vmatpush.bf16.msra.mxu0 %v2683
        %2697 = vmatpush.bf16.msra.mxu0 %v2682
        %2698 = vmatpush.bf16.msra.mxu0 %v2681
        %2699 = vmatpush.bf16.msra.mxu0 %v2680
        %2700 = vmatpush.bf16.msra.mxu0 %v2679
        %2701 = vmatpush.bf16.msra.mxu0 %v2678
        %2702 = vmatmul.bf16.gmra.mxu0 %v1407
        %v2703 = vpop.f32.mrf.mxu0
        %v2704 = vadd.f32 %v2644, %v2703
        %v2705 = vpop.f32.mrf.mxu0
        %v2706 = vadd.f32 %v2644, %v2705
        %2707 = vdwg.mxu0
        %v2708 = vpack.c.bf16 %v2538, %v2536
        %v2709 = vpack.c.bf16 %v2622, %v2620
        %v2711 = vsel %vm1640, %v2708, 0
        %v2714 = vsel %vm1640, %v2709, 0
        %2716 = vmatpush.bf16.xpose.msra.mxu0 0
        %2717 = vmatpush.bf16.xpose.msra.mxu0 0
        %2718 = vmatpush.bf16.xpose.msra.mxu0 0
        %2719 = vmatpush.bf16.xpose.msra.mxu0 0
        %2720 = vmatpush.bf16.xpose.msra.mxu0 0
        %2721 = vmatpush.bf16.xpose.msra.mxu0 0
        %2722 = vmatpush.bf16.xpose.msra.mxu0 0
        %2723 = vmatpush.bf16.xpose.msra.mxu0 %v2714
        %2724 = vmatmul.bf16.gmra.mxu0 %v2711
        %v2725 = vpop.f32.mrf.mxu0
        %v2726 = vadd.f32 0.0, %v2725
        %v2727 = vpop.f32.mrf.mxu0
        %v2728 = vadd.f32 0.0, %v2727
        %2729 = vdwg.mxu0
        %v2730 = vmul.f32 %v2726, 0.17677669
        %v2731 = vmul.f32 %v2728, 0.17677669
        %v2732 = vsel %vm1663, %v2730, -inf
        %2733 = vmax.xlane.f32.xlu0 %v2732
        %v2734 = vpop.xlane.xlu0 %2733
        %v2735 = vsel %vm1667, %v2731, -inf
        %2736 = vmax.xlane.f32.xlu0 %v2735
        %v2737 = vpop.xlane.xlu0 %2736
        %v2738 = vsub.f32 %v2730, %v2734
        %v2739 = vsub.f32 %v2731, %v2737
        %v2740 = vmul.f32 %v2738, 1.442695
        %v2741 = vpow.pop %v2740
        %v2742 = vmul.f32 %v2739, 1.442695
        %v2743 = vpow.pop %v2742
        %v2744 = vsel %vm1663, %v2741, 0.0
        %2745 = vadd.xlane.f32.xlu0 %v2744
        %v2746 = vpop.xlane.xlu0 %2745
        %v2747 = vsel %vm1667, %v2743, 0.0
        %2748 = vadd.xlane.f32.xlu0 %v2747
        %v2749 = vpop.xlane.xlu0 %2748
        %v2750 = vrcp.pop %v2746
        %v2751 = vrcp.pop %v2749
        %v2752 = vmul.f32 %v2741, %v2750
        %v2753 = vmul.f32 %v2743, %v2751
        %v2754 = vpack.c.bf16 %v2753, %v2752
        %v2755 = vpack.c.bf16 %v2706, %v2704
        %v2757 = vsel %vm1663, %v2754, 0
        %v2760 = vsel %vm1692, %v2755, 0
        %2762 = vmatpush.bf16.msra.mxu0 0
        %2763 = vmatpush.bf16.msra.mxu0 0
        %2764 = vmatpush.bf16.msra.mxu0 0
        %2765 = vmatpush.bf16.msra.mxu0 0
        %2766 = vmatpush.bf16.msra.mxu0 0
        %2767 = vmatpush.bf16.msra.mxu0 0
        %2768 = vmatpush.bf16.msra.mxu0 0
        %2769 = vmatpush.bf16.msra.mxu0 %v2760
        %2770 = vmatmul.bf16.gmra.mxu0 %v2757
        %v2771 = vpop.f32.mrf.mxu0
        %v2772 = vadd.f32 0.0, %v2771
        %v2773 = vpop.f32.mrf.mxu0
        %v2774 = vadd.f32 0.0, %v2773
        %2775 = vdwg.mxu0
        %s2776 = scalar_lea.vmem %s39, 48
        %v2777 = vld [vmem:[%s2776] sm:$0xf]
        %v2778 = vld [vmem:[%s2776 + $0x4] sm:$0xf]
        %v2779 = vld [vmem:[%s2776 + $0x8] sm:$0xf]
        %v2780 = vld [vmem:[%s2776 + $0xc] sm:$0xf]
        %v2781 = vpack.c.bf16 %v2774, %v2772
        %v2786 = vunpack.c.l.b16 %v2777
        %v2787 = vunpack.c.l.b16 %v2778
        %v2788 = vunpack.c.l.b16 %v2779
        %v2789 = vunpack.c.l.b16 %v2780
        %v2790 = vpack.c.b16 %v2787, %v2786
        %v2791 = vpack.c.b16 %v2789, %v2788
        %v2795 = vsel %vm1640, %v2781, 0
        %2797 = vmatpush.bf16.msra.mxu0 0
        %2798 = vmatpush.bf16.msra.mxu0 0
        %2799 = vmatpush.bf16.msra.mxu0 0
        %2800 = vmatpush.bf16.msra.mxu0 0
        %2801 = vmatpush.bf16.msra.mxu0 0
        %2802 = vmatpush.bf16.msra.mxu0 0
        %2803 = vmatpush.bf16.msra.mxu0 %v2791
        %2804 = vmatpush.bf16.msra.mxu0 %v2790
        %2805 = vmatmul.bf16.gmra.mxu0 %v2795
        %v2806 = vpop.f32.mrf.mxu0
        %v2807 = vadd.f32 0.0, %v2806
        %v2808 = vpop.f32.mrf.mxu0
        %v2809 = vadd.f32 0.0, %v2808
        %2810 = vdwg.mxu0
        %v2811 = vadd.f32 %v2454, %v2807
        %v2812 = vadd.f32 %v2455, %v2809
        %v2813 = vld [vmem:[%s41] sm:$0x1]
        %v2815 = vperm.slane %v2813, 0
        %v2817 = vadd.f32 %v2811, %v2815
        %v2818 = vadd.f32 %v2812, %v2815
        %v2819 = vadd.f32 %v1389, %v2817
        %v2820 = vadd.f32 %v1390, %v2818
        %v2821 = vld [vmem:[%s43] sm:$0x1]
        %v2822 = vld [vmem:[%s45] sm:$0x1]
        %2823 = vadd.xlane.f32.xlu0 %v2819
        %v2824 = vpop.xlane.xlu0 %2823
        %v2825 = vsel %vm1356, %v2820, 0.0
        %2826 = vadd.xlane.f32.xlu0 %v2825
        %v2827 = vpop.xlane.xlu0 %2826
        %v2828 = vmul.f32 %v2824, %v1242
        %v2829 = vmul.f32 %v2827, %v1242
        %v2830 = vsub.f32 %v2819, %v2828
        %v2831 = vsub.f32 %v2820, %v2829
        %v2832 = vmul.f32 %v2830, %v2830
        %v2833 = vmul.f32 %v2831, %v2831
        %2834 = vadd.xlane.f32.xlu0 %v2832
        %v2835 = vpop.xlane.xlu0 %2834
        %v2836 = vsel %vm1356, %v2833, 0.0
        %2837 = vadd.xlane.f32.xlu0 %v2836
        %v2838 = vpop.xlane.xlu0 %2837
        %v2839 = vmul.f32 %v2835, %v1242
        %v2840 = vmul.f32 %v2838, %v1242
        %v2841 = vadd.f32 %v2839, 1e-05
        %v2842 = vadd.f32 %v2840, 1e-05
        %v2843 = vrsqrt.pop %v2841
        %v2844 = vmul.f32 %v2843, %v2841
        %v2845 = vmul.f32 %v2844, %v2843
        %v2846 = vmul.f32 0.5, %v2845
        %v2847 = vsub.f32 1.5, %v2846
        %v2848 = vmul.f32 %v2843, %v2847
        %vm2849 = vweird.f32 %v2841
        %vm2850 = vweird.f32 %v2843
        %vm2851 = vmor %vm2849, %vm2850
        %v2852 = vsel %vm2851, %v2843, %v2848
        %v2853 = vrsqrt.pop %v2842
        %v2854 = vmul.f32 %v2853, %v2842
        %v2855 = vmul.f32 %v2854, %v2853
        %v2856 = vmul.f32 0.5, %v2855
        %v2857 = vsub.f32 1.5, %v2856
        %v2858 = vmul.f32 %v2853, %v2857
        %vm2859 = vweird.f32 %v2842
        %vm2860 = vweird.f32 %v2853
        %vm2861 = vmor %vm2859, %vm2860
        %v2862 = vsel %vm2861, %v2853, %v2858
        %v2863 = vmul.f32 %v2830, %v2852
        %v2864 = vmul.f32 %v2831, %v2862
        %v2866 = vperm.slane %v2821, 0
        %v2868 = vmul.f32 %v2863, %v2866
        %v2869 = vmul.f32 %v2864, %v2866
        %v2871 = vperm.slane %v2822, 0
        %v2873 = vadd.f32 %v2868, %v2871
        %v2874 = vadd.f32 %v2869, %v2871
        %v2875 = vld [vmem:[%s47] sm:$0xff]
        %v2876 = vld [vmem:[%s47 + $0x8] sm:$0xff]
        %v2877 = vld [vmem:[%s47 + $0x10] sm:$0xff]
        %v2878 = vld [vmem:[%s47 + $0x18] sm:$0xff]
        %v2879 = vld [vmem:[%s47 + $0x20] sm:$0xff]
        %v2880 = vld [vmem:[%s47 + $0x28] sm:$0xff]
        %v2881 = vld [vmem:[%s47 + $0x30] sm:$0xff]
        %v2882 = vld [vmem:[%s47 + $0x38] sm:$0xff]
        %v2883 = vld [vmem:[%s47 + $0x40] sm:$0xff]
        %v2884 = vld [vmem:[%s47 + $0x48] sm:$0xff]
        %v2885 = vld [vmem:[%s47 + $0x50] sm:$0xff]
        %v2886 = vld [vmem:[%s47 + $0x58] sm:$0xff]
        %v2887 = vld [vmem:[%s47 + $0x60] sm:$0xff]
        %v2888 = vld [vmem:[%s47 + $0x68] sm:$0xff]
        %v2889 = vld [vmem:[%s47 + $0x70] sm:$0xff]
        %v2890 = vld [vmem:[%s47 + $0x78] sm:$0xff]
        %v2891 = vpack.c.bf16 %v2874, %v2873
        %v2892 = vld [vmem:[%s49] sm:$0x3]
        %v2894 = vperm.slane %v2892, 0
        %v2895 = vperm.slane %v2892, 1
        %v2914 = vunpack.c.l.b16 %v2875
        %v2915 = vunpack.c.h.b16 %v2875
        %v2916 = vunpack.c.l.b16 %v2876
        %v2917 = vunpack.c.h.b16 %v2876
        %v2918 = vunpack.c.l.b16 %v2877
        %v2919 = vunpack.c.h.b16 %v2877
        %v2920 = vunpack.c.l.b16 %v2878
        %v2921 = vunpack.c.h.b16 %v2878
        %v2922 = vunpack.c.l.b16 %v2879
        %v2923 = vunpack.c.h.b16 %v2879
        %v2924 = vunpack.c.l.b16 %v2880
        %v2925 = vunpack.c.h.b16 %v2880
        %v2926 = vunpack.c.l.b16 %v2881
        %v2927 = vunpack.c.h.b16 %v2881
        %v2928 = vunpack.c.l.b16 %v2882
        %v2929 = vunpack.c.h.b16 %v2882
        %v2930 = vunpack.c.l.b16 %v2883
        %v2931 = vunpack.c.h.b16 %v2883
        %v2932 = vunpack.c.l.b16 %v2884
        %v2933 = vunpack.c.h.b16 %v2884
        %v2934 = vunpack.c.l.b16 %v2885
        %v2935 = vunpack.c.h.b16 %v2885
        %v2936 = vunpack.c.l.b16 %v2886
        %v2937 = vunpack.c.h.b16 %v2886
        %v2938 = vunpack.c.l.b16 %v2887
        %v2939 = vunpack.c.h.b16 %v2887
        %v2940 = vunpack.c.l.b16 %v2888
        %v2941 = vunpack.c.h.b16 %v2888
        %v2942 = vunpack.c.l.b16 %v2889
        %v2943 = vunpack.c.h.b16 %v2889
        %v2944 = vunpack.c.l.b16 %v2890
        %v2945 = vunpack.c.h.b16 %v2890
        %v2946 = vpack.c.b16 %v2916, %v2914
        %v2947 = vpack.c.b16 %v2917, %v2915
        %v2948 = vpack.c.b16 %v2920, %v2918
        %v2949 = vpack.c.b16 %v2921, %v2919
        %v2950 = vpack.c.b16 %v2924, %v2922
        %v2951 = vpack.c.b16 %v2925, %v2923
        %v2952 = vpack.c.b16 %v2928, %v2926
        %v2953 = vpack.c.b16 %v2929, %v2927
        %v2954 = vpack.c.b16 %v2932, %v2930
        %v2955 = vpack.c.b16 %v2933, %v2931
        %v2956 = vpack.c.b16 %v2936, %v2934
        %v2957 = vpack.c.b16 %v2937, %v2935
        %v2958 = vpack.c.b16 %v2940, %v2938
        %v2959 = vpack.c.b16 %v2941, %v2939
        %v2960 = vpack.c.b16 %v2944, %v2942
        %v2961 = vpack.c.b16 %v2945, %v2943
        %2978 = vmatpush.bf16.msra.mxu0 %v2960
        %2979 = vmatpush.bf16.msra.mxu0 %v2958
        %2980 = vmatpush.bf16.msra.mxu0 %v2956
        %2981 = vmatpush.bf16.msra.mxu0 %v2954
        %2982 = vmatpush.bf16.msra.mxu0 %v2952
        %2983 = vmatpush.bf16.msra.mxu0 %v2950
        %2984 = vmatpush.bf16.msra.mxu0 %v2948
        %2985 = vmatpush.bf16.msra.mxu0 %v2946
        %2986 = vmatmul.bf16.gmra.mxu0 %v2891
        %v2987 = vpop.f32.mrf.mxu0
        %v2988 = vadd.f32 %v2894, %v2987
        %v2989 = vpop.f32.mrf.mxu0
        %v2990 = vadd.f32 %v2894, %v2989
        %2991 = vdwg.mxu0
        %2992 = vmatpush.bf16.msra.mxu0 %v2961
        %2993 = vmatpush.bf16.msra.mxu0 %v2959
        %2994 = vmatpush.bf16.msra.mxu0 %v2957
        %2995 = vmatpush.bf16.msra.mxu0 %v2955
        %2996 = vmatpush.bf16.msra.mxu0 %v2953
        %2997 = vmatpush.bf16.msra.mxu0 %v2951
        %2998 = vmatpush.bf16.msra.mxu0 %v2949
        %2999 = vmatpush.bf16.msra.mxu0 %v2947
        %3000 = vmatmul.bf16.gmra.mxu0 %v2891
        %v3001 = vpop.f32.mrf.mxu0
        %v3002 = vadd.f32 %v2895, %v3001
        %v3003 = vpop.f32.mrf.mxu0
        %v3004 = vadd.f32 %v2895, %v3003
        %3005 = vdwg.mxu0
        %v3006 = vmax.f32 %v2988, 0.0
        %v3007 = vmax.f32 %v3002, 0.0
        %v3008 = vmax.f32 %v2990, 0.0
        %v3009 = vmax.f32 %v3004, 0.0
        %v3010 = vld [vmem:[%s51] sm:$0xf]
        %v3011 = vld [vmem:[%s51 + $0x4] sm:$0xf]
        %v3012 = vld [vmem:[%s51 + $0x8] sm:$0xf]
        %v3013 = vld [vmem:[%s51 + $0xc] sm:$0xf]
        %v3014 = vld [vmem:[%s51 + $0x10] sm:$0xf]
        %v3015 = vld [vmem:[%s51 + $0x14] sm:$0xf]
        %v3016 = vld [vmem:[%s51 + $0x18] sm:$0xf]
        %v3017 = vld [vmem:[%s51 + $0x1c] sm:$0xf]
        %v3018 = vld [vmem:[%s51 + $0x20] sm:$0xf]
        %v3019 = vld [vmem:[%s51 + $0x24] sm:$0xf]
        %v3020 = vld [vmem:[%s51 + $0x28] sm:$0xf]
        %v3021 = vld [vmem:[%s51 + $0x2c] sm:$0xf]
        %v3022 = vld [vmem:[%s51 + $0x30] sm:$0xf]
        %v3023 = vld [vmem:[%s51 + $0x34] sm:$0xf]
        %v3024 = vld [vmem:[%s51 + $0x38] sm:$0xf]
        %v3025 = vld [vmem:[%s51 + $0x3c] sm:$0xf]
        %v3026 = vld [vmem:[%s51 + $0x40] sm:$0xf]
        %v3027 = vld [vmem:[%s51 + $0x44] sm:$0xf]
        %v3028 = vld [vmem:[%s51 + $0x48] sm:$0xf]
        %v3029 = vld [vmem:[%s51 + $0x4c] sm:$0xf]
        %v3030 = vld [vmem:[%s51 + $0x50] sm:$0xf]
        %v3031 = vld [vmem:[%s51 + $0x54] sm:$0xf]
        %v3032 = vld [vmem:[%s51 + $0x58] sm:$0xf]
        %v3033 = vld [vmem:[%s51 + $0x5c] sm:$0xf]
        %v3034 = vld [vmem:[%s51 + $0x60] sm:$0xf]
        %v3035 = vld [vmem:[%s51 + $0x64] sm:$0xf]
        %v3036 = vld [vmem:[%s51 + $0x68] sm:$0xf]
        %v3037 = vld [vmem:[%s51 + $0x6c] sm:$0xf]
        %v3038 = vld [vmem:[%s51 + $0x70] sm:$0xf]
        %v3039 = vld [vmem:[%s51 + $0x74] sm:$0xf]
        %v3040 = vld [vmem:[%s51 + $0x78] sm:$0xf]
        %v3041 = vld [vmem:[%s51 + $0x7c] sm:$0xf]
        %v3042 = vpack.c.bf16 %v3008, %v3006
        %v3043 = vpack.c.bf16 %v3009, %v3007
        %v3044 = vld [vmem:[%s53] sm:$0x1]
        %v3046 = vperm.slane %v3044, 0
        %v3080 = vunpack.c.l.b16 %v3010
        %v3081 = vunpack.c.l.b16 %v3011
        %v3082 = vunpack.c.l.b16 %v3012
        %v3083 = vunpack.c.l.b16 %v3013
        %v3084 = vunpack.c.l.b16 %v3014
        %v3085 = vunpack.c.l.b16 %v3015
        %v3086 = vunpack.c.l.b16 %v3016
        %v3087 = vunpack.c.l.b16 %v3017
        %v3088 = vunpack.c.l.b16 %v3018
        %v3089 = vunpack.c.l.b16 %v3019
        %v3090 = vunpack.c.l.b16 %v3020
        %v3091 = vunpack.c.l.b16 %v3021
        %v3092 = vunpack.c.l.b16 %v3022
        %v3093 = vunpack.c.l.b16 %v3023
        %v3094 = vunpack.c.l.b16 %v3024
        %v3095 = vunpack.c.l.b16 %v3025
        %v3096 = vunpack.c.l.b16 %v3026
        %v3097 = vunpack.c.l.b16 %v3027
        %v3098 = vunpack.c.l.b16 %v3028
        %v3099 = vunpack.c.l.b16 %v3029
        %v3100 = vunpack.c.l.b16 %v3030
        %v3101 = vunpack.c.l.b16 %v3031
        %v3102 = vunpack.c.l.b16 %v3032
        %v3103 = vunpack.c.l.b16 %v3033
        %v3104 = vunpack.c.l.b16 %v3034
        %v3105 = vunpack.c.l.b16 %v3035
        %v3106 = vunpack.c.l.b16 %v3036
        %v3107 = vunpack.c.l.b16 %v3037
        %v3108 = vunpack.c.l.b16 %v3038
        %v3109 = vunpack.c.l.b16 %v3039
        %v3110 = vunpack.c.l.b16 %v3040
        %v3111 = vunpack.c.l.b16 %v3041
        %v3112 = vpack.c.b16 %v3081, %v3080
        %v3113 = vpack.c.b16 %v3083, %v3082
        %v3114 = vpack.c.b16 %v3085, %v3084
        %v3115 = vpack.c.b16 %v3087, %v3086
        %v3116 = vpack.c.b16 %v3089, %v3088
        %v3117 = vpack.c.b16 %v3091, %v3090
        %v3118 = vpack.c.b16 %v3093, %v3092
        %v3119 = vpack.c.b16 %v3095, %v3094
        %v3120 = vpack.c.b16 %v3097, %v3096
        %v3121 = vpack.c.b16 %v3099, %v3098
        %v3122 = vpack.c.b16 %v3101, %v3100
        %v3123 = vpack.c.b16 %v3103, %v3102
        %v3124 = vpack.c.b16 %v3105, %v3104
        %v3125 = vpack.c.b16 %v3107, %v3106
        %v3126 = vpack.c.b16 %v3109, %v3108
        %v3127 = vpack.c.b16 %v3111, %v3110
        %3144 = vmatpush.bf16.msra.mxu0 %v3119
        %3145 = vmatpush.bf16.msra.mxu0 %v3118
        %3146 = vmatpush.bf16.msra.mxu0 %v3117
        %3147 = vmatpush.bf16.msra.mxu0 %v3116
        %3148 = vmatpush.bf16.msra.mxu0 %v3115
        %3149 = vmatpush.bf16.msra.mxu0 %v3114
        %3150 = vmatpush.bf16.msra.mxu0 %v3113
        %3151 = vmatpush.bf16.msra.mxu0 %v3112
        %3152 = vmatmul.bf16.gmra.mxu0 %v3042
        %v3153 = vpop.f32.mrf.mxu0
        %v3154 = vadd.f32 %v3046, %v3153
        %v3155 = vpop.f32.mrf.mxu0
        %v3156 = vadd.f32 %v3046, %v3155
        %3157 = vdwg.mxu0
        %3158 = vmatpush.bf16.msra.mxu0 %v3127
        %3159 = vmatpush.bf16.msra.mxu0 %v3126
        %3160 = vmatpush.bf16.msra.mxu0 %v3125
        %3161 = vmatpush.bf16.msra.mxu0 %v3124
        %3162 = vmatpush.bf16.msra.mxu0 %v3123
        %3163 = vmatpush.bf16.msra.mxu0 %v3122
        %3164 = vmatpush.bf16.msra.mxu0 %v3121
        %3165 = vmatpush.bf16.msra.mxu0 %v3120
        %3166 = vmatmul.bf16.gmra.mxu0 %v3043
        %v3167 = vpop.f32.mrf.mxu0
        %v3168 = vadd.f32 %v3154, %v3167
        %v3169 = vpop.f32.mrf.mxu0
        %v3170 = vadd.f32 %v3156, %v3169
        %3171 = vdwg.mxu0
        %v3172 = vadd.f32 %v2873, %v3168
        %v3173 = vadd.f32 %v2874, %v3170
        %v3174 = vld [vmem:[%s55] sm:$0x1]
        %v3175 = vld [vmem:[%s57] sm:$0x1]
        %3176 = vadd.xlane.f32.xlu0 %v3172
        %v3177 = vpop.xlane.xlu0 %3176
        %v3178 = vsel %vm1356, %v3173, 0.0
        %3179 = vadd.xlane.f32.xlu0 %v3178
        %v3180 = vpop.xlane.xlu0 %3179
        %v3181 = vmul.f32 %v3177, %v1242
        %v3182 = vmul.f32 %v3180, %v1242
        %v3183 = vsub.f32 %v3172, %v3181
        %v3184 = vsub.f32 %v3173, %v3182
        %v3185 = vmul.f32 %v3183, %v3183
        %v3186 = vmul.f32 %v3184, %v3184
        %3187 = vadd.xlane.f32.xlu0 %v3185
        %v3188 = vpop.xlane.xlu0 %3187
        %v3189 = vsel %vm1356, %v3186, 0.0
        %3190 = vadd.xlane.f32.xlu0 %v3189
        %v3191 = vpop.xlane.xlu0 %3190
        %v3192 = vmul.f32 %v3188, %v1242
        %v3193 = vmul.f32 %v3191, %v1242
        %v3194 = vadd.f32 %v3192, 1e-05
        %v3195 = vadd.f32 %v3193, 1e-05
        %v3196 = vrsqrt.pop %v3194
        %v3197 = vmul.f32 %v3196, %v3194
        %v3198 = vmul.f32 %v3197, %v3196
        %v3199 = vmul.f32 0.5, %v3198
        %v3200 = vsub.f32 1.5, %v3199
        %v3201 = vmul.f32 %v3196, %v3200
        %vm3202 = vweird.f32 %v3194
        %vm3203 = vweird.f32 %v3196
        %vm3204 = vmor %vm3202, %vm3203
        %v3205 = vsel %vm3204, %v3196, %v3201
        %v3206 = vrsqrt.pop %v3195
        %v3207 = vmul.f32 %v3206, %v3195
        %v3208 = vmul.f32 %v3207, %v3206
        %v3209 = vmul.f32 0.5, %v3208
        %v3210 = vsub.f32 1.5, %v3209
        %v3211 = vmul.f32 %v3206, %v3210
        %vm3212 = vweird.f32 %v3195
        %vm3213 = vweird.f32 %v3206
        %vm3214 = vmor %vm3212, %vm3213
        %v3215 = vsel %vm3214, %v3206, %v3211
        %v3216 = vmul.f32 %v3183, %v3205
        %v3217 = vmul.f32 %v3184, %v3215
        %v3219 = vperm.slane %v3174, 0
        %v3221 = vmul.f32 %v3216, %v3219
        %v3222 = vmul.f32 %v3217, %v3219
        %v3224 = vperm.slane %v3175, 0
        %v3226 = vadd.f32 %v3221, %v3224
        %v3227 = vadd.f32 %v3222, %v3224
        %s3228 = scalar_lea.vmem %s27, 256
        %v3229 = vld [vmem:[%s3228] sm:$0xf]
        %v3230 = vld [vmem:[%s3228 + $0x4] sm:$0xf]
        %v3231 = vld [vmem:[%s3228 + $0x8] sm:$0xf]
        %v3232 = vld [vmem:[%s3228 + $0xc] sm:$0xf]
        %v3233 = vld [vmem:[%s3228 + $0x10] sm:$0xf]
        %v3234 = vld [vmem:[%s3228 + $0x14] sm:$0xf]
        %v3235 = vld [vmem:[%s3228 + $0x18] sm:$0xf]
        %v3236 = vld [vmem:[%s3228 + $0x1c] sm:$0xf]
        %v3237 = vld [vmem:[%s3228 + $0x20] sm:$0xf]
        %v3238 = vld [vmem:[%s3228 + $0x24] sm:$0xf]
        %v3239 = vld [vmem:[%s3228 + $0x28] sm:$0xf]
        %v3240 = vld [vmem:[%s3228 + $0x2c] sm:$0xf]
        %v3241 = vld [vmem:[%s3228 + $0x30] sm:$0xf]
        %v3242 = vld [vmem:[%s3228 + $0x34] sm:$0xf]
        %v3243 = vld [vmem:[%s3228 + $0x38] sm:$0xf]
        %v3244 = vld [vmem:[%s3228 + $0x3c] sm:$0xf]
        %v3245 = vpack.c.bf16 %v3227, %v3226
        %s3246 = scalar_lea.vmem %s29, 4
        %v3247 = vld [vmem:[%s3246] sm:$0x1]
        %v3249 = vperm.slane %v3247, 0
        %v3267 = vunpack.c.l.b16 %v3229
        %v3268 = vunpack.c.l.b16 %v3230
        %v3269 = vunpack.c.l.b16 %v3231
        %v3270 = vunpack.c.l.b16 %v3232
        %v3271 = vunpack.c.l.b16 %v3233
        %v3272 = vunpack.c.l.b16 %v3234
        %v3273 = vunpack.c.l.b16 %v3235
        %v3274 = vunpack.c.l.b16 %v3236
        %v3275 = vunpack.c.l.b16 %v3237
        %v3276 = vunpack.c.l.b16 %v3238
        %v3277 = vunpack.c.l.b16 %v3239
        %v3278 = vunpack.c.l.b16 %v3240
        %v3279 = vunpack.c.l.b16 %v3241
        %v3280 = vunpack.c.l.b16 %v3242
        %v3281 = vunpack.c.l.b16 %v3243
        %v3282 = vunpack.c.l.b16 %v3244
        %v3283 = vpack.c.b16 %v3268, %v3267
        %v3284 = vpack.c.b16 %v3270, %v3269
        %v3285 = vpack.c.b16 %v3272, %v3271
        %v3286 = vpack.c.b16 %v3274, %v3273
        %v3287 = vpack.c.b16 %v3276, %v3275
        %v3288 = vpack.c.b16 %v3278, %v3277
        %v3289 = vpack.c.b16 %v3280, %v3279
        %v3290 = vpack.c.b16 %v3282, %v3281
        %3299 = vmatpush.bf16.msra.mxu0 %v3290
        %3300 = vmatpush.bf16.msra.mxu0 %v3289
        %3301 = vmatpush.bf16.msra.mxu0 %v3288
        %3302 = vmatpush.bf16.msra.mxu0 %v3287
        %3303 = vmatpush.bf16.msra.mxu0 %v3286
        %3304 = vmatpush.bf16.msra.mxu0 %v3285
        %3305 = vmatpush.bf16.msra.mxu0 %v3284
        %3306 = vmatpush.bf16.msra.mxu0 %v3283
        %3307 = vmatmul.bf16.gmra.mxu0 %v3245
        %v3308 = vpop.f32.mrf.mxu0
        %v3309 = vadd.f32 %v3249, %v3308
        %v3310 = vpop.f32.mrf.mxu0
        %v3311 = vadd.f32 %v3249, %v3310
        %3312 = vdwg.mxu0
        %s3313 = scalar_lea.vmem %s31, 256
        %v3314 = vld [vmem:[%s3313] sm:$0xf]
        %v3315 = vld [vmem:[%s3313 + $0x4] sm:$0xf]
        %v3316 = vld [vmem:[%s3313 + $0x8] sm:$0xf]
        %v3317 = vld [vmem:[%s3313 + $0xc] sm:$0xf]
        %v3318 = vld [vmem:[%s3313 + $0x10] sm:$0xf]
        %v3319 = vld [vmem:[%s3313 + $0x14] sm:$0xf]
        %v3320 = vld [vmem:[%s3313 + $0x18] sm:$0xf]
        %v3321 = vld [vmem:[%s3313 + $0x1c] sm:$0xf]
        %v3322 = vld [vmem:[%s3313 + $0x20] sm:$0xf]
        %v3323 = vld [vmem:[%s3313 + $0x24] sm:$0xf]
        %v3324 = vld [vmem:[%s3313 + $0x28] sm:$0xf]
        %v3325 = vld [vmem:[%s3313 + $0x2c] sm:$0xf]
        %v3326 = vld [vmem:[%s3313 + $0x30] sm:$0xf]
        %v3327 = vld [vmem:[%s3313 + $0x34] sm:$0xf]
        %v3328 = vld [vmem:[%s3313 + $0x38] sm:$0xf]
        %v3329 = vld [vmem:[%s3313 + $0x3c] sm:$0xf]
        %s3330 = scalar_lea.vmem %s33, 4
        %v3331 = vld [vmem:[%s3330] sm:$0x1]
        %v3333 = vperm.slane %v3331, 0
        %v3351 = vunpack.c.l.b16 %v3314
        %v3352 = vunpack.c.l.b16 %v3315
        %v3353 = vunpack.c.l.b16 %v3316
        %v3354 = vunpack.c.l.b16 %v3317
        %v3355 = vunpack.c.l.b16 %v3318
        %v3356 = vunpack.c.l.b16 %v3319
        %v3357 = vunpack.c.l.b16 %v3320
        %v3358 = vunpack.c.l.b16 %v3321
        %v3359 = vunpack.c.l.b16 %v3322
        %v3360 = vunpack.c.l.b16 %v3323
        %v3361 = vunpack.c.l.b16 %v3324
        %v3362 = vunpack.c.l.b16 %v3325
        %v3363 = vunpack.c.l.b16 %v3326
        %v3364 = vunpack.c.l.b16 %v3327
        %v3365 = vunpack.c.l.b16 %v3328
        %v3366 = vunpack.c.l.b16 %v3329
        %v3367 = vpack.c.b16 %v3352, %v3351
        %v3368 = vpack.c.b16 %v3354, %v3353
        %v3369 = vpack.c.b16 %v3356, %v3355
        %v3370 = vpack.c.b16 %v3358, %v3357
        %v3371 = vpack.c.b16 %v3360, %v3359
        %v3372 = vpack.c.b16 %v3362, %v3361
        %v3373 = vpack.c.b16 %v3364, %v3363
        %v3374 = vpack.c.b16 %v3366, %v3365
        %3383 = vmatpush.bf16.msra.mxu0 %v3374
        %3384 = vmatpush.bf16.msra.mxu0 %v3373
        %3385 = vmatpush.bf16.msra.mxu0 %v3372
        %3386 = vmatpush.bf16.msra.mxu0 %v3371
        %3387 = vmatpush.bf16.msra.mxu0 %v3370
        %3388 = vmatpush.bf16.msra.mxu0 %v3369
        %3389 = vmatpush.bf16.msra.mxu0 %v3368
        %3390 = vmatpush.bf16.msra.mxu0 %v3367
        %3391 = vmatmul.bf16.gmra.mxu0 %v3245
        %v3392 = vpop.f32.mrf.mxu0
        %v3393 = vadd.f32 %v3333, %v3392
        %v3394 = vpop.f32.mrf.mxu0
        %v3395 = vadd.f32 %v3333, %v3394
        %3396 = vdwg.mxu0
        %s3397 = scalar_lea.vmem %s35, 256
        %v3398 = vld [vmem:[%s3397] sm:$0xf]
        %v3399 = vld [vmem:[%s3397 + $0x4] sm:$0xf]
        %v3400 = vld [vmem:[%s3397 + $0x8] sm:$0xf]
        %v3401 = vld [vmem:[%s3397 + $0xc] sm:$0xf]
        %v3402 = vld [vmem:[%s3397 + $0x10] sm:$0xf]
        %v3403 = vld [vmem:[%s3397 + $0x14] sm:$0xf]
        %v3404 = vld [vmem:[%s3397 + $0x18] sm:$0xf]
        %v3405 = vld [vmem:[%s3397 + $0x1c] sm:$0xf]
        %v3406 = vld [vmem:[%s3397 + $0x20] sm:$0xf]
        %v3407 = vld [vmem:[%s3397 + $0x24] sm:$0xf]
        %v3408 = vld [vmem:[%s3397 + $0x28] sm:$0xf]
        %v3409 = vld [vmem:[%s3397 + $0x2c] sm:$0xf]
        %v3410 = vld [vmem:[%s3397 + $0x30] sm:$0xf]
        %v3411 = vld [vmem:[%s3397 + $0x34] sm:$0xf]
        %v3412 = vld [vmem:[%s3397 + $0x38] sm:$0xf]
        %v3413 = vld [vmem:[%s3397 + $0x3c] sm:$0xf]
        %s3414 = scalar_lea.vmem %s37, 4
        %v3415 = vld [vmem:[%s3414] sm:$0x1]
        %v3417 = vperm.slane %v3415, 0
        %v3435 = vunpack.c.l.b16 %v3398
        %v3436 = vunpack.c.l.b16 %v3399
        %v3437 = vunpack.c.l.b16 %v3400
        %v3438 = vunpack.c.l.b16 %v3401
        %v3439 = vunpack.c.l.b16 %v3402
        %v3440 = vunpack.c.l.b16 %v3403
        %v3441 = vunpack.c.l.b16 %v3404
        %v3442 = vunpack.c.l.b16 %v3405
        %v3443 = vunpack.c.l.b16 %v3406
        %v3444 = vunpack.c.l.b16 %v3407
        %v3445 = vunpack.c.l.b16 %v3408
        %v3446 = vunpack.c.l.b16 %v3409
        %v3447 = vunpack.c.l.b16 %v3410
        %v3448 = vunpack.c.l.b16 %v3411
        %v3449 = vunpack.c.l.b16 %v3412
        %v3450 = vunpack.c.l.b16 %v3413
        %v3451 = vpack.c.b16 %v3436, %v3435
        %v3452 = vpack.c.b16 %v3438, %v3437
        %v3453 = vpack.c.b16 %v3440, %v3439
        %v3454 = vpack.c.b16 %v3442, %v3441
        %v3455 = vpack.c.b16 %v3444, %v3443
        %v3456 = vpack.c.b16 %v3446, %v3445
        %v3457 = vpack.c.b16 %v3448, %v3447
        %v3458 = vpack.c.b16 %v3450, %v3449
        %3467 = vmatpush.bf16.msra.mxu0 %v3458
        %3468 = vmatpush.bf16.msra.mxu0 %v3457
        %3469 = vmatpush.bf16.msra.mxu0 %v3456
        %3470 = vmatpush.bf16.msra.mxu0 %v3455
        %3471 = vmatpush.bf16.msra.mxu0 %v3454
        %3472 = vmatpush.bf16.msra.mxu0 %v3453
        %3473 = vmatpush.bf16.msra.mxu0 %v3452
        %3474 = vmatpush.bf16.msra.mxu0 %v3451
        %3475 = vmatmul.bf16.gmra.mxu0 %v3245
        %v3476 = vpop.f32.mrf.mxu0
        %v3477 = vadd.f32 %v3417, %v3476
        %v3478 = vpop.f32.mrf.mxu0
        %v3479 = vadd.f32 %v3417, %v3478
        %3480 = vdwg.mxu0
        %v3481 = vpack.c.bf16 %v3311, %v3309
        %v3482 = vpack.c.bf16 %v3395, %v3393
        %v3484 = vsel %vm1640, %v3481, 0
        %v3487 = vsel %vm1640, %v3482, 0
        %3489 = vmatpush.bf16.xpose.msra.mxu0 0
        %3490 = vmatpush.bf16.xpose.msra.mxu0 0
        %3491 = vmatpush.bf16.xpose.msra.mxu0 0
        %3492 = vmatpush.bf16.xpose.msra.mxu0 0
        %3493 = vmatpush.bf16.xpose.msra.mxu0 0
        %3494 = vmatpush.bf16.xpose.msra.mxu0 0
        %3495 = vmatpush.bf16.xpose.msra.mxu0 0
        %3496 = vmatpush.bf16.xpose.msra.mxu0 %v3487
        %3497 = vmatmul.bf16.gmra.mxu0 %v3484
        %v3498 = vpop.f32.mrf.mxu0
        %v3499 = vadd.f32 0.0, %v3498
        %v3500 = vpop.f32.mrf.mxu0
        %v3501 = vadd.f32 0.0, %v3500
        %3502 = vdwg.mxu0
        %v3503 = vmul.f32 %v3499, 0.17677669
        %v3504 = vmul.f32 %v3501, 0.17677669
        %v3505 = vsel %vm1663, %v3503, -inf
        %3506 = vmax.xlane.f32.xlu0 %v3505
        %v3507 = vpop.xlane.xlu0 %3506
        %v3508 = vsel %vm1667, %v3504, -inf
        %3509 = vmax.xlane.f32.xlu0 %v3508
        %v3510 = vpop.xlane.xlu0 %3509
        %v3511 = vsub.f32 %v3503, %v3507
        %v3512 = vsub.f32 %v3504, %v3510
        %v3513 = vmul.f32 %v3511, 1.442695
        %v3514 = vpow.pop %v3513
        %v3515 = vmul.f32 %v3512, 1.442695
        %v3516 = vpow.pop %v3515
        %v3517 = vsel %vm1663, %v3514, 0.0
        %3518 = vadd.xlane.f32.xlu0 %v3517
        %v3519 = vpop.xlane.xlu0 %3518
        %v3520 = vsel %vm1667, %v3516, 0.0
        %3521 = vadd.xlane.f32.xlu0 %v3520
        %v3522 = vpop.xlane.xlu0 %3521
        %v3523 = vrcp.pop %v3519
        %v3524 = vrcp.pop %v3522
        %v3525 = vmul.f32 %v3514, %v3523
        %v3526 = vmul.f32 %v3516, %v3524
        %v3527 = vpack.c.bf16 %v3526, %v3525
        %v3528 = vpack.c.bf16 %v3479, %v3477
        %v3530 = vsel %vm1663, %v3527, 0
        %v3533 = vsel %vm1692, %v3528, 0
        %3535 = vmatpush.bf16.msra.mxu0 0
        %3536 = vmatpush.bf16.msra.mxu0 0
        %3537 = vmatpush.bf16.msra.mxu0 0
        %3538 = vmatpush.bf16.msra.mxu0 0
        %3539 = vmatpush.bf16.msra.mxu0 0
        %3540 = vmatpush.bf16.msra.mxu0 0
        %3541 = vmatpush.bf16.msra.mxu0 0
        %3542 = vmatpush.bf16.msra.mxu0 %v3533
        %3543 = vmatmul.bf16.gmra.mxu0 %v3530
        %v3544 = vpop.f32.mrf.mxu0
        %v3545 = vadd.f32 0.0, %v3544
        %v3546 = vpop.f32.mrf.mxu0
        %v3547 = vadd.f32 0.0, %v3546
        %3548 = vdwg.mxu0
        %s3549 = scalar_lea.vmem %s39, 64
        %v3550 = vld [vmem:[%s3549] sm:$0xf]
        %v3551 = vld [vmem:[%s3549 + $0x4] sm:$0xf]
        %v3552 = vld [vmem:[%s3549 + $0x8] sm:$0xf]
        %v3553 = vld [vmem:[%s3549 + $0xc] sm:$0xf]
        %v3554 = vpack.c.bf16 %v3547, %v3545
        %s3555 = scalar_lea.vmem %s27, 320
        %v3556 = vld [vmem:[%s3555] sm:$0xf]
        %v3557 = vld [vmem:[%s3555 + $0x4] sm:$0xf]
        %v3558 = vld [vmem:[%s3555 + $0x8] sm:$0xf]
        %v3559 = vld [vmem:[%s3555 + $0xc] sm:$0xf]
        %v3560 = vld [vmem:[%s3555 + $0x10] sm:$0xf]
        %v3561 = vld [vmem:[%s3555 + $0x14] sm:$0xf]
        %v3562 = vld [vmem:[%s3555 + $0x18] sm:$0xf]
        %v3563 = vld [vmem:[%s3555 + $0x1c] sm:$0xf]
        %v3564 = vld [vmem:[%s3555 + $0x20] sm:$0xf]
        %v3565 = vld [vmem:[%s3555 + $0x24] sm:$0xf]
        %v3566 = vld [vmem:[%s3555 + $0x28] sm:$0xf]
        %v3567 = vld [vmem:[%s3555 + $0x2c] sm:$0xf]
        %v3568 = vld [vmem:[%s3555 + $0x30] sm:$0xf]
        %v3569 = vld [vmem:[%s3555 + $0x34] sm:$0xf]
        %v3570 = vld [vmem:[%s3555 + $0x38] sm:$0xf]
        %v3571 = vld [vmem:[%s3555 + $0x3c] sm:$0xf]
        %s3572 = scalar_lea.vmem %s29, 5
        %v3573 = vld [vmem:[%s3572] sm:$0x1]
        %v3575 = vperm.slane %v3573, 0
        %v3593 = vunpack.c.l.b16 %v3556
        %v3594 = vunpack.c.l.b16 %v3557
        %v3595 = vunpack.c.l.b16 %v3558
        %v3596 = vunpack.c.l.b16 %v3559
        %v3597 = vunpack.c.l.b16 %v3560
        %v3598 = vunpack.c.l.b16 %v3561
        %v3599 = vunpack.c.l.b16 %v3562
        %v3600 = vunpack.c.l.b16 %v3563
        %v3601 = vunpack.c.l.b16 %v3564
        %v3602 = vunpack.c.l.b16 %v3565
        %v3603 = vunpack.c.l.b16 %v3566
        %v3604 = vunpack.c.l.b16 %v3567
        %v3605 = vunpack.c.l.b16 %v3568
        %v3606 = vunpack.c.l.b16 %v3569
        %v3607 = vunpack.c.l.b16 %v3570
        %v3608 = vunpack.c.l.b16 %v3571
        %v3609 = vpack.c.b16 %v3594, %v3593
        %v3610 = vpack.c.b16 %v3596, %v3595
        %v3611 = vpack.c.b16 %v3598, %v3597
        %v3612 = vpack.c.b16 %v3600, %v3599
        %v3613 = vpack.c.b16 %v3602, %v3601
        %v3614 = vpack.c.b16 %v3604, %v3603
        %v3615 = vpack.c.b16 %v3606, %v3605
        %v3616 = vpack.c.b16 %v3608, %v3607
        %3625 = vmatpush.bf16.msra.mxu0 %v3616
        %3626 = vmatpush.bf16.msra.mxu0 %v3615
        %3627 = vmatpush.bf16.msra.mxu0 %v3614
        %3628 = vmatpush.bf16.msra.mxu0 %v3613
        %3629 = vmatpush.bf16.msra.mxu0 %v3612
        %3630 = vmatpush.bf16.msra.mxu0 %v3611
        %3631 = vmatpush.bf16.msra.mxu0 %v3610
        %3632 = vmatpush.bf16.msra.mxu0 %v3609
        %3633 = vmatmul.bf16.gmra.mxu0 %v3245
        %v3634 = vpop.f32.mrf.mxu0
        %v3635 = vadd.f32 %v3575, %v3634
        %v3636 = vpop.f32.mrf.mxu0
        %v3637 = vadd.f32 %v3575, %v3636
        %3638 = vdwg.mxu0
        %s3639 = scalar_lea.vmem %s31, 320
        %v3640 = vld [vmem:[%s3639] sm:$0xf]
        %v3641 = vld [vmem:[%s3639 + $0x4] sm:$0xf]
        %v3642 = vld [vmem:[%s3639 + $0x8] sm:$0xf]
        %v3643 = vld [vmem:[%s3639 + $0xc] sm:$0xf]
        %v3644 = vld [vmem:[%s3639 + $0x10] sm:$0xf]
        %v3645 = vld [vmem:[%s3639 + $0x14] sm:$0xf]
        %v3646 = vld [vmem:[%s3639 + $0x18] sm:$0xf]
        %v3647 = vld [vmem:[%s3639 + $0x1c] sm:$0xf]
        %v3648 = vld [vmem:[%s3639 + $0x20] sm:$0xf]
        %v3649 = vld [vmem:[%s3639 + $0x24] sm:$0xf]
        %v3650 = vld [vmem:[%s3639 + $0x28] sm:$0xf]
        %v3651 = vld [vmem:[%s3639 + $0x2c] sm:$0xf]
        %v3652 = vld [vmem:[%s3639 + $0x30] sm:$0xf]
        %v3653 = vld [vmem:[%s3639 + $0x34] sm:$0xf]
        %v3654 = vld [vmem:[%s3639 + $0x38] sm:$0xf]
        %v3655 = vld [vmem:[%s3639 + $0x3c] sm:$0xf]
        %s3656 = scalar_lea.vmem %s33, 5
        %v3657 = vld [vmem:[%s3656] sm:$0x1]
        %v3659 = vperm.slane %v3657, 0
        %v3677 = vunpack.c.l.b16 %v3640
        %v3678 = vunpack.c.l.b16 %v3641
        %v3679 = vunpack.c.l.b16 %v3642
        %v3680 = vunpack.c.l.b16 %v3643
        %v3681 = vunpack.c.l.b16 %v3644
        %v3682 = vunpack.c.l.b16 %v3645
        %v3683 = vunpack.c.l.b16 %v3646
        %v3684 = vunpack.c.l.b16 %v3647
        %v3685 = vunpack.c.l.b16 %v3648
        %v3686 = vunpack.c.l.b16 %v3649
        %v3687 = vunpack.c.l.b16 %v3650
        %v3688 = vunpack.c.l.b16 %v3651
        %v3689 = vunpack.c.l.b16 %v3652
        %v3690 = vunpack.c.l.b16 %v3653
        %v3691 = vunpack.c.l.b16 %v3654
        %v3692 = vunpack.c.l.b16 %v3655
        %v3693 = vpack.c.b16 %v3678, %v3677
        %v3694 = vpack.c.b16 %v3680, %v3679
        %v3695 = vpack.c.b16 %v3682, %v3681
        %v3696 = vpack.c.b16 %v3684, %v3683
        %v3697 = vpack.c.b16 %v3686, %v3685
        %v3698 = vpack.c.b16 %v3688, %v3687
        %v3699 = vpack.c.b16 %v3690, %v3689
        %v3700 = vpack.c.b16 %v3692, %v3691
        %3709 = vmatpush.bf16.msra.mxu0 %v3700
        %3710 = vmatpush.bf16.msra.mxu0 %v3699
        %3711 = vmatpush.bf16.msra.mxu0 %v3698
        %3712 = vmatpush.bf16.msra.mxu0 %v3697
        %3713 = vmatpush.bf16.msra.mxu0 %v3696
        %3714 = vmatpush.bf16.msra.mxu0 %v3695
        %3715 = vmatpush.bf16.msra.mxu0 %v3694
        %3716 = vmatpush.bf16.msra.mxu0 %v3693
        %3717 = vmatmul.bf16.gmra.mxu0 %v3245
        %v3718 = vpop.f32.mrf.mxu0
        %v3719 = vadd.f32 %v3659, %v3718
        %v3720 = vpop.f32.mrf.mxu0
        %v3721 = vadd.f32 %v3659, %v3720
        %3722 = vdwg.mxu0
        %s3723 = scalar_lea.vmem %s35, 320
        %v3724 = vld [vmem:[%s3723] sm:$0xf]
        %v3725 = vld [vmem:[%s3723 + $0x4] sm:$0xf]
        %v3726 = vld [vmem:[%s3723 + $0x8] sm:$0xf]
        %v3727 = vld [vmem:[%s3723 + $0xc] sm:$0xf]
        %v3728 = vld [vmem:[%s3723 + $0x10] sm:$0xf]
        %v3729 = vld [vmem:[%s3723 + $0x14] sm:$0xf]
        %v3730 = vld [vmem:[%s3723 + $0x18] sm:$0xf]
        %v3731 = vld [vmem:[%s3723 + $0x1c] sm:$0xf]
        %v3732 = vld [vmem:[%s3723 + $0x20] sm:$0xf]
        %v3733 = vld [vmem:[%s3723 + $0x24] sm:$0xf]
        %v3734 = vld [vmem:[%s3723 + $0x28] sm:$0xf]
        %v3735 = vld [vmem:[%s3723 + $0x2c] sm:$0xf]
        %v3736 = vld [vmem:[%s3723 + $0x30] sm:$0xf]
        %v3737 = vld [vmem:[%s3723 + $0x34] sm:$0xf]
        %v3738 = vld [vmem:[%s3723 + $0x38] sm:$0xf]
        %v3739 = vld [vmem:[%s3723 + $0x3c] sm:$0xf]
        %s3740 = scalar_lea.vmem %s37, 5
        %v3741 = vld [vmem:[%s3740] sm:$0x1]
        %v3743 = vperm.slane %v3741, 0
        %v3761 = vunpack.c.l.b16 %v3724
        %v3762 = vunpack.c.l.b16 %v3725
        %v3763 = vunpack.c.l.b16 %v3726
        %v3764 = vunpack.c.l.b16 %v3727
        %v3765 = vunpack.c.l.b16 %v3728
        %v3766 = vunpack.c.l.b16 %v3729
        %v3767 = vunpack.c.l.b16 %v3730
        %v3768 = vunpack.c.l.b16 %v3731
        %v3769 = vunpack.c.l.b16 %v3732
        %v3770 = vunpack.c.l.b16 %v3733
        %v3771 = vunpack.c.l.b16 %v3734
        %v3772 = vunpack.c.l.b16 %v3735
        %v3773 = vunpack.c.l.b16 %v3736
        %v3774 = vunpack.c.l.b16 %v3737
        %v3775 = vunpack.c.l.b16 %v3738
        %v3776 = vunpack.c.l.b16 %v3739
        %v3777 = vpack.c.b16 %v3762, %v3761
        %v3778 = vpack.c.b16 %v3764, %v3763
        %v3779 = vpack.c.b16 %v3766, %v3765
        %v3780 = vpack.c.b16 %v3768, %v3767
        %v3781 = vpack.c.b16 %v3770, %v3769
        %v3782 = vpack.c.b16 %v3772, %v3771
        %v3783 = vpack.c.b16 %v3774, %v3773
        %v3784 = vpack.c.b16 %v3776, %v3775
        %3793 = vmatpush.bf16.msra.mxu0 %v3784
        %3794 = vmatpush.bf16.msra.mxu0 %v3783
        %3795 = vmatpush.bf16.msra.mxu0 %v3782
        %3796 = vmatpush.bf16.msra.mxu0 %v3781
        %3797 = vmatpush.bf16.msra.mxu0 %v3780
        %3798 = vmatpush.bf16.msra.mxu0 %v3779
        %3799 = vmatpush.bf16.msra.mxu0 %v3778
        %3800 = vmatpush.bf16.msra.mxu0 %v3777
        %3801 = vmatmul.bf16.gmra.mxu0 %v3245
        %v3802 = vpop.f32.mrf.mxu0
        %v3803 = vadd.f32 %v3743, %v3802
        %v3804 = vpop.f32.mrf.mxu0
        %v3805 = vadd.f32 %v3743, %v3804
        %3806 = vdwg.mxu0
        %v3807 = vpack.c.bf16 %v3637, %v3635
        %v3808 = vpack.c.bf16 %v3721, %v3719
        %v3810 = vsel %vm1640, %v3807, 0
        %v3813 = vsel %vm1640, %v3808, 0
        %3815 = vmatpush.bf16.xpose.msra.mxu0 0
        %3816 = vmatpush.bf16.xpose.msra.mxu0 0
        %3817 = vmatpush.bf16.xpose.msra.mxu0 0
        %3818 = vmatpush.bf16.xpose.msra.mxu0 0
        %3819 = vmatpush.bf16.xpose.msra.mxu0 0
        %3820 = vmatpush.bf16.xpose.msra.mxu0 0
        %3821 = vmatpush.bf16.xpose.msra.mxu0 0
        %3822 = vmatpush.bf16.xpose.msra.mxu0 %v3813
        %3823 = vmatmul.bf16.gmra.mxu0 %v3810
        %v3824 = vpop.f32.mrf.mxu0
        %v3825 = vadd.f32 0.0, %v3824
        %v3826 = vpop.f32.mrf.mxu0
        %v3827 = vadd.f32 0.0, %v3826
        %3828 = vdwg.mxu0
        %v3829 = vmul.f32 %v3825, 0.17677669
        %v3830 = vmul.f32 %v3827, 0.17677669
        %v3831 = vsel %vm1663, %v3829, -inf
        %3832 = vmax.xlane.f32.xlu0 %v3831
        %v3833 = vpop.xlane.xlu0 %3832
        %v3834 = vsel %vm1667, %v3830, -inf
        %3835 = vmax.xlane.f32.xlu0 %v3834
        %v3836 = vpop.xlane.xlu0 %3835
        %v3837 = vsub.f32 %v3829, %v3833
        %v3838 = vsub.f32 %v3830, %v3836
        %v3839 = vmul.f32 %v3837, 1.442695
        %v3840 = vpow.pop %v3839
        %v3841 = vmul.f32 %v3838, 1.442695
        %v3842 = vpow.pop %v3841
        %v3843 = vsel %vm1663, %v3840, 0.0
        %3844 = vadd.xlane.f32.xlu0 %v3843
        %v3845 = vpop.xlane.xlu0 %3844
        %v3846 = vsel %vm1667, %v3842, 0.0
        %3847 = vadd.xlane.f32.xlu0 %v3846
        %v3848 = vpop.xlane.xlu0 %3847
        %v3849 = vrcp.pop %v3845
        %v3850 = vrcp.pop %v3848
        %v3851 = vmul.f32 %v3840, %v3849
        %v3852 = vmul.f32 %v3842, %v3850
        %v3853 = vpack.c.bf16 %v3852, %v3851
        %v3854 = vpack.c.bf16 %v3805, %v3803
        %v3856 = vsel %vm1663, %v3853, 0
        %v3859 = vsel %vm1692, %v3854, 0
        %3861 = vmatpush.bf16.msra.mxu0 0
        %3862 = vmatpush.bf16.msra.mxu0 0
        %3863 = vmatpush.bf16.msra.mxu0 0
        %3864 = vmatpush.bf16.msra.mxu0 0
        %3865 = vmatpush.bf16.msra.mxu0 0
        %3866 = vmatpush.bf16.msra.mxu0 0
        %3867 = vmatpush.bf16.msra.mxu0 0
        %3868 = vmatpush.bf16.msra.mxu0 %v3859
        %3869 = vmatmul.bf16.gmra.mxu0 %v3856
        %v3870 = vpop.f32.mrf.mxu0
        %v3871 = vadd.f32 0.0, %v3870
        %v3872 = vpop.f32.mrf.mxu0
        %v3873 = vadd.f32 0.0, %v3872
        %3874 = vdwg.mxu0
        %s3875 = scalar_lea.vmem %s39, 80
        %v3876 = vld [vmem:[%s3875] sm:$0xf]
        %v3877 = vld [vmem:[%s3875 + $0x4] sm:$0xf]
        %v3878 = vld [vmem:[%s3875 + $0x8] sm:$0xf]
        %v3879 = vld [vmem:[%s3875 + $0xc] sm:$0xf]
        %v3880 = vpack.c.bf16 %v3873, %v3871
        %v3885 = vunpack.c.l.b16 %v3876
        %v3886 = vunpack.c.l.b16 %v3877
        %v3887 = vunpack.c.l.b16 %v3878
        %v3888 = vunpack.c.l.b16 %v3879
        %v3889 = vpack.c.b16 %v3886, %v3885
        %v3890 = vpack.c.b16 %v3888, %v3887
        %v3894 = vsel %vm1640, %v3880, 0
        %3896 = vmatpush.bf16.msra.mxu0 0
        %3897 = vmatpush.bf16.msra.mxu0 0
        %3898 = vmatpush.bf16.msra.mxu0 0
        %3899 = vmatpush.bf16.msra.mxu0 0
        %3900 = vmatpush.bf16.msra.mxu0 0
        %3901 = vmatpush.bf16.msra.mxu0 0
        %3902 = vmatpush.bf16.msra.mxu0 %v3890
        %3903 = vmatpush.bf16.msra.mxu0 %v3889
        %3904 = vmatmul.bf16.gmra.mxu0 %v3894
        %v3905 = vpop.f32.mrf.mxu0
        %v3906 = vadd.f32 0.0, %v3905
        %v3907 = vpop.f32.mrf.mxu0
        %v3908 = vadd.f32 0.0, %v3907
        %3909 = vdwg.mxu0
        %v3914 = vunpack.c.l.b16 %v3550
        %v3915 = vunpack.c.l.b16 %v3551
        %v3916 = vunpack.c.l.b16 %v3552
        %v3917 = vunpack.c.l.b16 %v3553
        %v3918 = vpack.c.b16 %v3915, %v3914
        %v3919 = vpack.c.b16 %v3917, %v3916
        %v3923 = vsel %vm1640, %v3554, 0
        %3925 = vmatpush.bf16.msra.mxu0 0
        %3926 = vmatpush.bf16.msra.mxu0 0
        %3927 = vmatpush.bf16.msra.mxu0 0
        %3928 = vmatpush.bf16.msra.mxu0 0
        %3929 = vmatpush.bf16.msra.mxu0 0
        %3930 = vmatpush.bf16.msra.mxu0 0
        %3931 = vmatpush.bf16.msra.mxu0 %v3919
        %3932 = vmatpush.bf16.msra.mxu0 %v3918
        %3933 = vmatmul.bf16.gmra.mxu0 %v3923
        %v3934 = vpop.f32.mrf.mxu0
        %v3935 = vadd.f32 %v3906, %v3934
        %v3936 = vpop.f32.mrf.mxu0
        %v3937 = vadd.f32 %v3908, %v3936
        %3938 = vdwg.mxu0
        %s3939 = scalar_lea.vmem %s27, 384
        %v3940 = vld [vmem:[%s3939] sm:$0xf]
        %v3941 = vld [vmem:[%s3939 + $0x4] sm:$0xf]
        %v3942 = vld [vmem:[%s3939 + $0x8] sm:$0xf]
        %v3943 = vld [vmem:[%s3939 + $0xc] sm:$0xf]
        %v3944 = vld [vmem:[%s3939 + $0x10] sm:$0xf]
        %v3945 = vld [vmem:[%s3939 + $0x14] sm:$0xf]
        %v3946 = vld [vmem:[%s3939 + $0x18] sm:$0xf]
        %v3947 = vld [vmem:[%s3939 + $0x1c] sm:$0xf]
        %v3948 = vld [vmem:[%s3939 + $0x20] sm:$0xf]
        %v3949 = vld [vmem:[%s3939 + $0x24] sm:$0xf]
        %v3950 = vld [vmem:[%s3939 + $0x28] sm:$0xf]
        %v3951 = vld [vmem:[%s3939 + $0x2c] sm:$0xf]
        %v3952 = vld [vmem:[%s3939 + $0x30] sm:$0xf]
        %v3953 = vld [vmem:[%s3939 + $0x34] sm:$0xf]
        %v3954 = vld [vmem:[%s3939 + $0x38] sm:$0xf]
        %v3955 = vld [vmem:[%s3939 + $0x3c] sm:$0xf]
        %s3956 = scalar_lea.vmem %s29, 6
        %v3957 = vld [vmem:[%s3956] sm:$0x1]
        %v3959 = vperm.slane %v3957, 0
        %v3977 = vunpack.c.l.b16 %v3940
        %v3978 = vunpack.c.l.b16 %v3941
        %v3979 = vunpack.c.l.b16 %v3942
        %v3980 = vunpack.c.l.b16 %v3943
        %v3981 = vunpack.c.l.b16 %v3944
        %v3982 = vunpack.c.l.b16 %v3945
        %v3983 = vunpack.c.l.b16 %v3946
        %v3984 = vunpack.c.l.b16 %v3947
        %v3985 = vunpack.c.l.b16 %v3948
        %v3986 = vunpack.c.l.b16 %v3949
        %v3987 = vunpack.c.l.b16 %v3950
        %v3988 = vunpack.c.l.b16 %v3951
        %v3989 = vunpack.c.l.b16 %v3952
        %v3990 = vunpack.c.l.b16 %v3953
        %v3991 = vunpack.c.l.b16 %v3954
        %v3992 = vunpack.c.l.b16 %v3955
        %v3993 = vpack.c.b16 %v3978, %v3977
        %v3994 = vpack.c.b16 %v3980, %v3979
        %v3995 = vpack.c.b16 %v3982, %v3981
        %v3996 = vpack.c.b16 %v3984, %v3983
        %v3997 = vpack.c.b16 %v3986, %v3985
        %v3998 = vpack.c.b16 %v3988, %v3987
        %v3999 = vpack.c.b16 %v3990, %v3989
        %v4000 = vpack.c.b16 %v3992, %v3991
        %4009 = vmatpush.bf16.msra.mxu0 %v4000
        %4010 = vmatpush.bf16.msra.mxu0 %v3999
        %4011 = vmatpush.bf16.msra.mxu0 %v3998
        %4012 = vmatpush.bf16.msra.mxu0 %v3997
        %4013 = vmatpush.bf16.msra.mxu0 %v3996
        %4014 = vmatpush.bf16.msra.mxu0 %v3995
        %4015 = vmatpush.bf16.msra.mxu0 %v3994
        %4016 = vmatpush.bf16.msra.mxu0 %v3993
        %4017 = vmatmul.bf16.gmra.mxu0 %v3245
        %v4018 = vpop.f32.mrf.mxu0
        %v4019 = vadd.f32 %v3959, %v4018
        %v4020 = vpop.f32.mrf.mxu0
        %v4021 = vadd.f32 %v3959, %v4020
        %4022 = vdwg.mxu0
        %s4023 = scalar_lea.vmem %s31, 384
        %v4024 = vld [vmem:[%s4023] sm:$0xf]
        %v4025 = vld [vmem:[%s4023 + $0x4] sm:$0xf]
        %v4026 = vld [vmem:[%s4023 + $0x8] sm:$0xf]
        %v4027 = vld [vmem:[%s4023 + $0xc] sm:$0xf]
        %v4028 = vld [vmem:[%s4023 + $0x10] sm:$0xf]
        %v4029 = vld [vmem:[%s4023 + $0x14] sm:$0xf]
        %v4030 = vld [vmem:[%s4023 + $0x18] sm:$0xf]
        %v4031 = vld [vmem:[%s4023 + $0x1c] sm:$0xf]
        %v4032 = vld [vmem:[%s4023 + $0x20] sm:$0xf]
        %v4033 = vld [vmem:[%s4023 + $0x24] sm:$0xf]
        %v4034 = vld [vmem:[%s4023 + $0x28] sm:$0xf]
        %v4035 = vld [vmem:[%s4023 + $0x2c] sm:$0xf]
        %v4036 = vld [vmem:[%s4023 + $0x30] sm:$0xf]
        %v4037 = vld [vmem:[%s4023 + $0x34] sm:$0xf]
        %v4038 = vld [vmem:[%s4023 + $0x38] sm:$0xf]
        %v4039 = vld [vmem:[%s4023 + $0x3c] sm:$0xf]
        %s4040 = scalar_lea.vmem %s33, 6
        %v4041 = vld [vmem:[%s4040] sm:$0x1]
        %v4043 = vperm.slane %v4041, 0
        %v4061 = vunpack.c.l.b16 %v4024
        %v4062 = vunpack.c.l.b16 %v4025
        %v4063 = vunpack.c.l.b16 %v4026
        %v4064 = vunpack.c.l.b16 %v4027
        %v4065 = vunpack.c.l.b16 %v4028
        %v4066 = vunpack.c.l.b16 %v4029
        %v4067 = vunpack.c.l.b16 %v4030
        %v4068 = vunpack.c.l.b16 %v4031
        %v4069 = vunpack.c.l.b16 %v4032
        %v4070 = vunpack.c.l.b16 %v4033
        %v4071 = vunpack.c.l.b16 %v4034
        %v4072 = vunpack.c.l.b16 %v4035
        %v4073 = vunpack.c.l.b16 %v4036
        %v4074 = vunpack.c.l.b16 %v4037
        %v4075 = vunpack.c.l.b16 %v4038
        %v4076 = vunpack.c.l.b16 %v4039
        %v4077 = vpack.c.b16 %v4062, %v4061
        %v4078 = vpack.c.b16 %v4064, %v4063
        %v4079 = vpack.c.b16 %v4066, %v4065
        %v4080 = vpack.c.b16 %v4068, %v4067
        %v4081 = vpack.c.b16 %v4070, %v4069
        %v4082 = vpack.c.b16 %v4072, %v4071
        %v4083 = vpack.c.b16 %v4074, %v4073
        %v4084 = vpack.c.b16 %v4076, %v4075
        %4093 = vmatpush.bf16.msra.mxu0 %v4084
        %4094 = vmatpush.bf16.msra.mxu0 %v4083
        %4095 = vmatpush.bf16.msra.mxu0 %v4082
        %4096 = vmatpush.bf16.msra.mxu0 %v4081
        %4097 = vmatpush.bf16.msra.mxu0 %v4080
        %4098 = vmatpush.bf16.msra.mxu0 %v4079
        %4099 = vmatpush.bf16.msra.mxu0 %v4078
        %4100 = vmatpush.bf16.msra.mxu0 %v4077
        %4101 = vmatmul.bf16.gmra.mxu0 %v3245
        %v4102 = vpop.f32.mrf.mxu0
        %v4103 = vadd.f32 %v4043, %v4102
        %v4104 = vpop.f32.mrf.mxu0
        %v4105 = vadd.f32 %v4043, %v4104
        %4106 = vdwg.mxu0
        %s4107 = scalar_lea.vmem %s35, 384
        %v4108 = vld [vmem:[%s4107] sm:$0xf]
        %v4109 = vld [vmem:[%s4107 + $0x4] sm:$0xf]
        %v4110 = vld [vmem:[%s4107 + $0x8] sm:$0xf]
        %v4111 = vld [vmem:[%s4107 + $0xc] sm:$0xf]
        %v4112 = vld [vmem:[%s4107 + $0x10] sm:$0xf]
        %v4113 = vld [vmem:[%s4107 + $0x14] sm:$0xf]
        %v4114 = vld [vmem:[%s4107 + $0x18] sm:$0xf]
        %v4115 = vld [vmem:[%s4107 + $0x1c] sm:$0xf]
        %v4116 = vld [vmem:[%s4107 + $0x20] sm:$0xf]
        %v4117 = vld [vmem:[%s4107 + $0x24] sm:$0xf]
        %v4118 = vld [vmem:[%s4107 + $0x28] sm:$0xf]
        %v4119 = vld [vmem:[%s4107 + $0x2c] sm:$0xf]
        %v4120 = vld [vmem:[%s4107 + $0x30] sm:$0xf]
        %v4121 = vld [vmem:[%s4107 + $0x34] sm:$0xf]
        %v4122 = vld [vmem:[%s4107 + $0x38] sm:$0xf]
        %v4123 = vld [vmem:[%s4107 + $0x3c] sm:$0xf]
        %s4124 = scalar_lea.vmem %s37, 6
        %v4125 = vld [vmem:[%s4124] sm:$0x1]
        %v4127 = vperm.slane %v4125, 0
        %v4145 = vunpack.c.l.b16 %v4108
        %v4146 = vunpack.c.l.b16 %v4109
        %v4147 = vunpack.c.l.b16 %v4110
        %v4148 = vunpack.c.l.b16 %v4111
        %v4149 = vunpack.c.l.b16 %v4112
        %v4150 = vunpack.c.l.b16 %v4113
        %v4151 = vunpack.c.l.b16 %v4114
        %v4152 = vunpack.c.l.b16 %v4115
        %v4153 = vunpack.c.l.b16 %v4116
        %v4154 = vunpack.c.l.b16 %v4117
        %v4155 = vunpack.c.l.b16 %v4118
        %v4156 = vunpack.c.l.b16 %v4119
        %v4157 = vunpack.c.l.b16 %v4120
        %v4158 = vunpack.c.l.b16 %v4121
        %v4159 = vunpack.c.l.b16 %v4122
        %v4160 = vunpack.c.l.b16 %v4123
        %v4161 = vpack.c.b16 %v4146, %v4145
        %v4162 = vpack.c.b16 %v4148, %v4147
        %v4163 = vpack.c.b16 %v4150, %v4149
        %v4164 = vpack.c.b16 %v4152, %v4151
        %v4165 = vpack.c.b16 %v4154, %v4153
        %v4166 = vpack.c.b16 %v4156, %v4155
        %v4167 = vpack.c.b16 %v4158, %v4157
        %v4168 = vpack.c.b16 %v4160, %v4159
        %4177 = vmatpush.bf16.msra.mxu0 %v4168
        %4178 = vmatpush.bf16.msra.mxu0 %v4167
        %4179 = vmatpush.bf16.msra.mxu0 %v4166
        %4180 = vmatpush.bf16.msra.mxu0 %v4165
        %4181 = vmatpush.bf16.msra.mxu0 %v4164
        %4182 = vmatpush.bf16.msra.mxu0 %v4163
        %4183 = vmatpush.bf16.msra.mxu0 %v4162
        %4184 = vmatpush.bf16.msra.mxu0 %v4161
        %4185 = vmatmul.bf16.gmra.mxu0 %v3245
        %v4186 = vpop.f32.mrf.mxu0
        %v4187 = vadd.f32 %v4127, %v4186
        %v4188 = vpop.f32.mrf.mxu0
        %v4189 = vadd.f32 %v4127, %v4188
        %4190 = vdwg.mxu0
        %v4191 = vpack.c.bf16 %v4021, %v4019
        %v4192 = vpack.c.bf16 %v4105, %v4103
        %v4194 = vsel %vm1640, %v4191, 0
        %v4197 = vsel %vm1640, %v4192, 0
        %4199 = vmatpush.bf16.xpose.msra.mxu0 0
        %4200 = vmatpush.bf16.xpose.msra.mxu0 0
        %4201 = vmatpush.bf16.xpose.msra.mxu0 0
        %4202 = vmatpush.bf16.xpose.msra.mxu0 0
        %4203 = vmatpush.bf16.xpose.msra.mxu0 0
        %4204 = vmatpush.bf16.xpose.msra.mxu0 0
        %4205 = vmatpush.bf16.xpose.msra.mxu0 0
        %4206 = vmatpush.bf16.xpose.msra.mxu0 %v4197
        %4207 = vmatmul.bf16.gmra.mxu0 %v4194
        %v4208 = vpop.f32.mrf.mxu0
        %v4209 = vadd.f32 0.0, %v4208
        %v4210 = vpop.f32.mrf.mxu0
        %v4211 = vadd.f32 0.0, %v4210
        %4212 = vdwg.mxu0
        %v4213 = vmul.f32 %v4209, 0.17677669
        %v4214 = vmul.f32 %v4211, 0.17677669
        %v4215 = vsel %vm1663, %v4213, -inf
        %4216 = vmax.xlane.f32.xlu0 %v4215
        %v4217 = vpop.xlane.xlu0 %4216
        %v4218 = vsel %vm1667, %v4214, -inf
        %4219 = vmax.xlane.f32.xlu0 %v4218
        %v4220 = vpop.xlane.xlu0 %4219
        %v4221 = vsub.f32 %v4213, %v4217
        %v4222 = vsub.f32 %v4214, %v4220
        %v4223 = vmul.f32 %v4221, 1.442695
        %v4224 = vpow.pop %v4223
        %v4225 = vmul.f32 %v4222, 1.442695
        %v4226 = vpow.pop %v4225
        %v4227 = vsel %vm1663, %v4224, 0.0
        %4228 = vadd.xlane.f32.xlu0 %v4227
        %v4229 = vpop.xlane.xlu0 %4228
        %v4230 = vsel %vm1667, %v4226, 0.0
        %4231 = vadd.xlane.f32.xlu0 %v4230
        %v4232 = vpop.xlane.xlu0 %4231
        %v4233 = vrcp.pop %v4229
        %v4234 = vrcp.pop %v4232
        %v4235 = vmul.f32 %v4224, %v4233
        %v4236 = vmul.f32 %v4226, %v4234
        %v4237 = vpack.c.bf16 %v4236, %v4235
        %v4238 = vpack.c.bf16 %v4189, %v4187
        %v4240 = vsel %vm1663, %v4237, 0
        %v4243 = vsel %vm1692, %v4238, 0
        %4245 = vmatpush.bf16.msra.mxu0 0
        %4246 = vmatpush.bf16.msra.mxu0 0
        %4247 = vmatpush.bf16.msra.mxu0 0
        %4248 = vmatpush.bf16.msra.mxu0 0
        %4249 = vmatpush.bf16.msra.mxu0 0
        %4250 = vmatpush.bf16.msra.mxu0 0
        %4251 = vmatpush.bf16.msra.mxu0 0
        %4252 = vmatpush.bf16.msra.mxu0 %v4243
        %4253 = vmatmul.bf16.gmra.mxu0 %v4240
        %v4254 = vpop.f32.mrf.mxu0
        %v4255 = vadd.f32 0.0, %v4254
        %v4256 = vpop.f32.mrf.mxu0
        %v4257 = vadd.f32 0.0, %v4256
        %4258 = vdwg.mxu0
        %s4259 = scalar_lea.vmem %s39, 96
        %v4260 = vld [vmem:[%s4259] sm:$0xf]
        %v4261 = vld [vmem:[%s4259 + $0x4] sm:$0xf]
        %v4262 = vld [vmem:[%s4259 + $0x8] sm:$0xf]
        %v4263 = vld [vmem:[%s4259 + $0xc] sm:$0xf]
        %v4264 = vpack.c.bf16 %v4257, %v4255
        %v4269 = vunpack.c.l.b16 %v4260
        %v4270 = vunpack.c.l.b16 %v4261
        %v4271 = vunpack.c.l.b16 %v4262
        %v4272 = vunpack.c.l.b16 %v4263
        %v4273 = vpack.c.b16 %v4270, %v4269
        %v4274 = vpack.c.b16 %v4272, %v4271
        %v4278 = vsel %vm1640, %v4264, 0
        %4280 = vmatpush.bf16.msra.mxu0 0
        %4281 = vmatpush.bf16.msra.mxu0 0
        %4282 = vmatpush.bf16.msra.mxu0 0
        %4283 = vmatpush.bf16.msra.mxu0 0
        %4284 = vmatpush.bf16.msra.mxu0 0
        %4285 = vmatpush.bf16.msra.mxu0 0
        %4286 = vmatpush.bf16.msra.mxu0 %v4274
        %4287 = vmatpush.bf16.msra.mxu0 %v4273
        %4288 = vmatmul.bf16.gmra.mxu0 %v4278
        %v4289 = vpop.f32.mrf.mxu0
        %v4290 = vadd.f32 0.0, %v4289
        %v4291 = vpop.f32.mrf.mxu0
        %v4292 = vadd.f32 0.0, %v4291
        %4293 = vdwg.mxu0
        %v4294 = vadd.f32 %v3935, %v4290
        %v4295 = vadd.f32 %v3937, %v4292
        %s4296 = scalar_lea.vmem %s27, 448
        %v4297 = vld [vmem:[%s4296] sm:$0xf]
        %v4298 = vld [vmem:[%s4296 + $0x4] sm:$0xf]
        %v4299 = vld [vmem:[%s4296 + $0x8] sm:$0xf]
        %v4300 = vld [vmem:[%s4296 + $0xc] sm:$0xf]
        %v4301 = vld [vmem:[%s4296 + $0x10] sm:$0xf]
        %v4302 = vld [vmem:[%s4296 + $0x14] sm:$0xf]
        %v4303 = vld [vmem:[%s4296 + $0x18] sm:$0xf]
        %v4304 = vld [vmem:[%s4296 + $0x1c] sm:$0xf]
        %v4305 = vld [vmem:[%s4296 + $0x20] sm:$0xf]
        %v4306 = vld [vmem:[%s4296 + $0x24] sm:$0xf]
        %v4307 = vld [vmem:[%s4296 + $0x28] sm:$0xf]
        %v4308 = vld [vmem:[%s4296 + $0x2c] sm:$0xf]
        %v4309 = vld [vmem:[%s4296 + $0x30] sm:$0xf]
        %v4310 = vld [vmem:[%s4296 + $0x34] sm:$0xf]
        %v4311 = vld [vmem:[%s4296 + $0x38] sm:$0xf]
        %v4312 = vld [vmem:[%s4296 + $0x3c] sm:$0xf]
        %s4313 = scalar_lea.vmem %s29, 7
        %v4314 = vld [vmem:[%s4313] sm:$0x1]
        %v4316 = vperm.slane %v4314, 0
        %v4334 = vunpack.c.l.b16 %v4297
        %v4335 = vunpack.c.l.b16 %v4298
        %v4336 = vunpack.c.l.b16 %v4299
        %v4337 = vunpack.c.l.b16 %v4300
        %v4338 = vunpack.c.l.b16 %v4301
        %v4339 = vunpack.c.l.b16 %v4302
        %v4340 = vunpack.c.l.b16 %v4303
        %v4341 = vunpack.c.l.b16 %v4304
        %v4342 = vunpack.c.l.b16 %v4305
        %v4343 = vunpack.c.l.b16 %v4306
        %v4344 = vunpack.c.l.b16 %v4307
        %v4345 = vunpack.c.l.b16 %v4308
        %v4346 = vunpack.c.l.b16 %v4309
        %v4347 = vunpack.c.l.b16 %v4310
        %v4348 = vunpack.c.l.b16 %v4311
        %v4349 = vunpack.c.l.b16 %v4312
        %v4350 = vpack.c.b16 %v4335, %v4334
        %v4351 = vpack.c.b16 %v4337, %v4336
        %v4352 = vpack.c.b16 %v4339, %v4338
        %v4353 = vpack.c.b16 %v4341, %v4340
        %v4354 = vpack.c.b16 %v4343, %v4342
        %v4355 = vpack.c.b16 %v4345, %v4344
        %v4356 = vpack.c.b16 %v4347, %v4346
        %v4357 = vpack.c.b16 %v4349, %v4348
        %4366 = vmatpush.bf16.msra.mxu0 %v4357
        %4367 = vmatpush.bf16.msra.mxu0 %v4356
        %4368 = vmatpush.bf16.msra.mxu0 %v4355
        %4369 = vmatpush.bf16.msra.mxu0 %v4354
        %4370 = vmatpush.bf16.msra.mxu0 %v4353
        %4371 = vmatpush.bf16.msra.mxu0 %v4352
        %4372 = vmatpush.bf16.msra.mxu0 %v4351
        %4373 = vmatpush.bf16.msra.mxu0 %v4350
        %4374 = vmatmul.bf16.gmra.mxu0 %v3245
        %v4375 = vpop.f32.mrf.mxu0
        %v4376 = vadd.f32 %v4316, %v4375
        %v4377 = vpop.f32.mrf.mxu0
        %v4378 = vadd.f32 %v4316, %v4377
        %4379 = vdwg.mxu0
        %s4380 = scalar_lea.vmem %s31, 448
        %v4381 = vld [vmem:[%s4380] sm:$0xf]
        %v4382 = vld [vmem:[%s4380 + $0x4] sm:$0xf]
        %v4383 = vld [vmem:[%s4380 + $0x8] sm:$0xf]
        %v4384 = vld [vmem:[%s4380 + $0xc] sm:$0xf]
        %v4385 = vld [vmem:[%s4380 + $0x10] sm:$0xf]
        %v4386 = vld [vmem:[%s4380 + $0x14] sm:$0xf]
        %v4387 = vld [vmem:[%s4380 + $0x18] sm:$0xf]
        %v4388 = vld [vmem:[%s4380 + $0x1c] sm:$0xf]
        %v4389 = vld [vmem:[%s4380 + $0x20] sm:$0xf]
        %v4390 = vld [vmem:[%s4380 + $0x24] sm:$0xf]
        %v4391 = vld [vmem:[%s4380 + $0x28] sm:$0xf]
        %v4392 = vld [vmem:[%s4380 + $0x2c] sm:$0xf]
        %v4393 = vld [vmem:[%s4380 + $0x30] sm:$0xf]
        %v4394 = vld [vmem:[%s4380 + $0x34] sm:$0xf]
        %v4395 = vld [vmem:[%s4380 + $0x38] sm:$0xf]
        %v4396 = vld [vmem:[%s4380 + $0x3c] sm:$0xf]
        %s4397 = scalar_lea.vmem %s33, 7
        %v4398 = vld [vmem:[%s4397] sm:$0x1]
        %v4400 = vperm.slane %v4398, 0
        %v4418 = vunpack.c.l.b16 %v4381
        %v4419 = vunpack.c.l.b16 %v4382
        %v4420 = vunpack.c.l.b16 %v4383
        %v4421 = vunpack.c.l.b16 %v4384
        %v4422 = vunpack.c.l.b16 %v4385
        %v4423 = vunpack.c.l.b16 %v4386
        %v4424 = vunpack.c.l.b16 %v4387
        %v4425 = vunpack.c.l.b16 %v4388
        %v4426 = vunpack.c.l.b16 %v4389
        %v4427 = vunpack.c.l.b16 %v4390
        %v4428 = vunpack.c.l.b16 %v4391
        %v4429 = vunpack.c.l.b16 %v4392
        %v4430 = vunpack.c.l.b16 %v4393
        %v4431 = vunpack.c.l.b16 %v4394
        %v4432 = vunpack.c.l.b16 %v4395
        %v4433 = vunpack.c.l.b16 %v4396
        %v4434 = vpack.c.b16 %v4419, %v4418
        %v4435 = vpack.c.b16 %v4421, %v4420
        %v4436 = vpack.c.b16 %v4423, %v4422
        %v4437 = vpack.c.b16 %v4425, %v4424
        %v4438 = vpack.c.b16 %v4427, %v4426
        %v4439 = vpack.c.b16 %v4429, %v4428
        %v4440 = vpack.c.b16 %v4431, %v4430
        %v4441 = vpack.c.b16 %v4433, %v4432
        %4450 = vmatpush.bf16.msra.mxu0 %v4441
        %4451 = vmatpush.bf16.msra.mxu0 %v4440
        %4452 = vmatpush.bf16.msra.mxu0 %v4439
        %4453 = vmatpush.bf16.msra.mxu0 %v4438
        %4454 = vmatpush.bf16.msra.mxu0 %v4437
        %4455 = vmatpush.bf16.msra.mxu0 %v4436
        %4456 = vmatpush.bf16.msra.mxu0 %v4435
        %4457 = vmatpush.bf16.msra.mxu0 %v4434
        %4458 = vmatmul.bf16.gmra.mxu0 %v3245
        %v4459 = vpop.f32.mrf.mxu0
        %v4460 = vadd.f32 %v4400, %v4459
        %v4461 = vpop.f32.mrf.mxu0
        %v4462 = vadd.f32 %v4400, %v4461
        %4463 = vdwg.mxu0
        %s4464 = scalar_lea.vmem %s35, 448
        %v4465 = vld [vmem:[%s4464] sm:$0xf]
        %v4466 = vld [vmem:[%s4464 + $0x4] sm:$0xf]
        %v4467 = vld [vmem:[%s4464 + $0x8] sm:$0xf]
        %v4468 = vld [vmem:[%s4464 + $0xc] sm:$0xf]
        %v4469 = vld [vmem:[%s4464 + $0x10] sm:$0xf]
        %v4470 = vld [vmem:[%s4464 + $0x14] sm:$0xf]
        %v4471 = vld [vmem:[%s4464 + $0x18] sm:$0xf]
        %v4472 = vld [vmem:[%s4464 + $0x1c] sm:$0xf]
        %v4473 = vld [vmem:[%s4464 + $0x20] sm:$0xf]
        %v4474 = vld [vmem:[%s4464 + $0x24] sm:$0xf]
        %v4475 = vld [vmem:[%s4464 + $0x28] sm:$0xf]
        %v4476 = vld [vmem:[%s4464 + $0x2c] sm:$0xf]
        %v4477 = vld [vmem:[%s4464 + $0x30] sm:$0xf]
        %v4478 = vld [vmem:[%s4464 + $0x34] sm:$0xf]
        %v4479 = vld [vmem:[%s4464 + $0x38] sm:$0xf]
        %v4480 = vld [vmem:[%s4464 + $0x3c] sm:$0xf]
        %s4481 = scalar_lea.vmem %s37, 7
        %v4482 = vld [vmem:[%s4481] sm:$0x1]
        %v4484 = vperm.slane %v4482, 0
        %v4502 = vunpack.c.l.b16 %v4465
        %v4503 = vunpack.c.l.b16 %v4466
        %v4504 = vunpack.c.l.b16 %v4467
        %v4505 = vunpack.c.l.b16 %v4468
        %v4506 = vunpack.c.l.b16 %v4469
        %v4507 = vunpack.c.l.b16 %v4470
        %v4508 = vunpack.c.l.b16 %v4471
        %v4509 = vunpack.c.l.b16 %v4472
        %v4510 = vunpack.c.l.b16 %v4473
        %v4511 = vunpack.c.l.b16 %v4474
        %v4512 = vunpack.c.l.b16 %v4475
        %v4513 = vunpack.c.l.b16 %v4476
        %v4514 = vunpack.c.l.b16 %v4477
        %v4515 = vunpack.c.l.b16 %v4478
        %v4516 = vunpack.c.l.b16 %v4479
        %v4517 = vunpack.c.l.b16 %v4480
        %v4518 = vpack.c.b16 %v4503, %v4502
        %v4519 = vpack.c.b16 %v4505, %v4504
        %v4520 = vpack.c.b16 %v4507, %v4506
        %v4521 = vpack.c.b16 %v4509, %v4508
        %v4522 = vpack.c.b16 %v4511, %v4510
        %v4523 = vpack.c.b16 %v4513, %v4512
        %v4524 = vpack.c.b16 %v4515, %v4514
        %v4525 = vpack.c.b16 %v4517, %v4516
        %4534 = vmatpush.bf16.msra.mxu0 %v4525
        %4535 = vmatpush.bf16.msra.mxu0 %v4524
        %4536 = vmatpush.bf16.msra.mxu0 %v4523
        %4537 = vmatpush.bf16.msra.mxu0 %v4522
        %4538 = vmatpush.bf16.msra.mxu0 %v4521
        %4539 = vmatpush.bf16.msra.mxu0 %v4520
        %4540 = vmatpush.bf16.msra.mxu0 %v4519
        %4541 = vmatpush.bf16.msra.mxu0 %v4518
        %4542 = vmatmul.bf16.gmra.mxu0 %v3245
        %v4543 = vpop.f32.mrf.mxu0
        %v4544 = vadd.f32 %v4484, %v4543
        %v4545 = vpop.f32.mrf.mxu0
        %v4546 = vadd.f32 %v4484, %v4545
        %4547 = vdwg.mxu0
        %v4548 = vpack.c.bf16 %v4378, %v4376
        %v4549 = vpack.c.bf16 %v4462, %v4460
        %v4551 = vsel %vm1640, %v4548, 0
        %v4554 = vsel %vm1640, %v4549, 0
        %4556 = vmatpush.bf16.xpose.msra.mxu0 0
        %4557 = vmatpush.bf16.xpose.msra.mxu0 0
        %4558 = vmatpush.bf16.xpose.msra.mxu0 0
        %4559 = vmatpush.bf16.xpose.msra.mxu0 0
        %4560 = vmatpush.bf16.xpose.msra.mxu0 0
        %4561 = vmatpush.bf16.xpose.msra.mxu0 0
        %4562 = vmatpush.bf16.xpose.msra.mxu0 0
        %4563 = vmatpush.bf16.xpose.msra.mxu0 %v4554
        %4564 = vmatmul.bf16.gmra.mxu0 %v4551
        %v4565 = vpop.f32.mrf.mxu0
        %v4566 = vadd.f32 0.0, %v4565
        %v4567 = vpop.f32.mrf.mxu0
        %v4568 = vadd.f32 0.0, %v4567
        %4569 = vdwg.mxu0
        %v4570 = vmul.f32 %v4566, 0.17677669
        %v4571 = vmul.f32 %v4568, 0.17677669
        %v4572 = vsel %vm1663, %v4570, -inf
        %4573 = vmax.xlane.f32.xlu0 %v4572
        %v4574 = vpop.xlane.xlu0 %4573
        %v4575 = vsel %vm1667, %v4571, -inf
        %4576 = vmax.xlane.f32.xlu0 %v4575
        %v4577 = vpop.xlane.xlu0 %4576
        %v4578 = vsub.f32 %v4570, %v4574
        %v4579 = vsub.f32 %v4571, %v4577
        %v4580 = vmul.f32 %v4578, 1.442695
        %v4581 = vpow.pop %v4580
        %v4582 = vmul.f32 %v4579, 1.442695
        %v4583 = vpow.pop %v4582
        %v4584 = vsel %vm1663, %v4581, 0.0
        %4585 = vadd.xlane.f32.xlu0 %v4584
        %v4586 = vpop.xlane.xlu0 %4585
        %v4587 = vsel %vm1667, %v4583, 0.0
        %4588 = vadd.xlane.f32.xlu0 %v4587
        %v4589 = vpop.xlane.xlu0 %4588
        %v4590 = vrcp.pop %v4586
        %v4591 = vrcp.pop %v4589
        %v4592 = vmul.f32 %v4581, %v4590
        %v4593 = vmul.f32 %v4583, %v4591
        %v4594 = vpack.c.bf16 %v4593, %v4592
        %v4595 = vpack.c.bf16 %v4546, %v4544
        %v4597 = vsel %vm1663, %v4594, 0
        %v4600 = vsel %vm1692, %v4595, 0
        %4602 = vmatpush.bf16.msra.mxu0 0
        %4603 = vmatpush.bf16.msra.mxu0 0
        %4604 = vmatpush.bf16.msra.mxu0 0
        %4605 = vmatpush.bf16.msra.mxu0 0
        %4606 = vmatpush.bf16.msra.mxu0 0
        %4607 = vmatpush.bf16.msra.mxu0 0
        %4608 = vmatpush.bf16.msra.mxu0 0
        %4609 = vmatpush.bf16.msra.mxu0 %v4600
        %4610 = vmatmul.bf16.gmra.mxu0 %v4597
        %v4611 = vpop.f32.mrf.mxu0
        %v4612 = vadd.f32 0.0, %v4611
        %v4613 = vpop.f32.mrf.mxu0
        %v4614 = vadd.f32 0.0, %v4613
        %4615 = vdwg.mxu0
        %s4616 = scalar_lea.vmem %s39, 112
        %v4617 = vld [vmem:[%s4616] sm:$0xf]
        %v4618 = vld [vmem:[%s4616 + $0x4] sm:$0xf]
        %v4619 = vld [vmem:[%s4616 + $0x8] sm:$0xf]
        %v4620 = vld [vmem:[%s4616 + $0xc] sm:$0xf]
        %v4621 = vpack.c.bf16 %v4614, %v4612
        %v4626 = vunpack.c.l.b16 %v4617
        %v4627 = vunpack.c.l.b16 %v4618
        %v4628 = vunpack.c.l.b16 %v4619
        %v4629 = vunpack.c.l.b16 %v4620
        %v4630 = vpack.c.b16 %v4627, %v4626
        %v4631 = vpack.c.b16 %v4629, %v4628
        %v4635 = vsel %vm1640, %v4621, 0
        %4637 = vmatpush.bf16.msra.mxu0 0
        %4638 = vmatpush.bf16.msra.mxu0 0
        %4639 = vmatpush.bf16.msra.mxu0 0
        %4640 = vmatpush.bf16.msra.mxu0 0
        %4641 = vmatpush.bf16.msra.mxu0 0
        %4642 = vmatpush.bf16.msra.mxu0 0
        %4643 = vmatpush.bf16.msra.mxu0 %v4631
        %4644 = vmatpush.bf16.msra.mxu0 %v4630
        %4645 = vmatmul.bf16.gmra.mxu0 %v4635
        %v4646 = vpop.f32.mrf.mxu0
        %v4647 = vadd.f32 0.0, %v4646
        %v4648 = vpop.f32.mrf.mxu0
        %v4649 = vadd.f32 0.0, %v4648
        %4650 = vdwg.mxu0
        %v4651 = vadd.f32 %v4294, %v4647
        %v4652 = vadd.f32 %v4295, %v4649
        %s4653 = scalar_lea.vmem %s41, 1
        %v4654 = vld [vmem:[%s4653] sm:$0x1]
        %v4656 = vperm.slane %v4654, 0
        %v4658 = vadd.f32 %v4651, %v4656
        %v4659 = vadd.f32 %v4652, %v4656
        %v4660 = vadd.f32 %v3226, %v4658
        %v4661 = vadd.f32 %v3227, %v4659
        %s4662 = scalar_lea.vmem %s43, 1
        %v4663 = vld [vmem:[%s4662] sm:$0x1]
        %s4664 = scalar_lea.vmem %s45, 1
        %v4665 = vld [vmem:[%s4664] sm:$0x1]
        %4666 = vadd.xlane.f32.xlu0 %v4660
        %v4667 = vpop.xlane.xlu0 %4666
        %v4668 = vsel %vm1356, %v4661, 0.0
        %4669 = vadd.xlane.f32.xlu0 %v4668
        %v4670 = vpop.xlane.xlu0 %4669
        %v4671 = vmul.f32 %v4667, %v1242
        %v4672 = vmul.f32 %v4670, %v1242
        %v4673 = vsub.f32 %v4660, %v4671
        %v4674 = vsub.f32 %v4661, %v4672
        %v4675 = vmul.f32 %v4673, %v4673
        %v4676 = vmul.f32 %v4674, %v4674
        %4677 = vadd.xlane.f32.xlu0 %v4675
        %v4678 = vpop.xlane.xlu0 %4677
        %v4679 = vsel %vm1356, %v4676, 0.0
        %4680 = vadd.xlane.f32.xlu0 %v4679
        %v4681 = vpop.xlane.xlu0 %4680
        %v4682 = vmul.f32 %v4678, %v1242
        %v4683 = vmul.f32 %v4681, %v1242
        %v4684 = vadd.f32 %v4682, 1e-05
        %v4685 = vadd.f32 %v4683, 1e-05
        %v4686 = vrsqrt.pop %v4684
        %v4687 = vmul.f32 %v4686, %v4684
        %v4688 = vmul.f32 %v4687, %v4686
        %v4689 = vmul.f32 0.5, %v4688
        %v4690 = vsub.f32 1.5, %v4689
        %v4691 = vmul.f32 %v4686, %v4690
        %vm4692 = vweird.f32 %v4684
        %vm4693 = vweird.f32 %v4686
        %vm4694 = vmor %vm4692, %vm4693
        %v4695 = vsel %vm4694, %v4686, %v4691
        %v4696 = vrsqrt.pop %v4685
        %v4697 = vmul.f32 %v4696, %v4685
        %v4698 = vmul.f32 %v4697, %v4696
        %v4699 = vmul.f32 0.5, %v4698
        %v4700 = vsub.f32 1.5, %v4699
        %v4701 = vmul.f32 %v4696, %v4700
        %vm4702 = vweird.f32 %v4685
        %vm4703 = vweird.f32 %v4696
        %vm4704 = vmor %vm4702, %vm4703
        %v4705 = vsel %vm4704, %v4696, %v4701
        %v4706 = vmul.f32 %v4673, %v4695
        %v4707 = vmul.f32 %v4674, %v4705
        %v4709 = vperm.slane %v4663, 0
        %v4711 = vmul.f32 %v4706, %v4709
        %v4712 = vmul.f32 %v4707, %v4709
        %v4714 = vperm.slane %v4665, 0
        %v4716 = vadd.f32 %v4711, %v4714
        %v4717 = vadd.f32 %v4712, %v4714
        %s4718 = scalar_lea.vmem %s47, 128
        %v4719 = vld [vmem:[%s4718] sm:$0xff]
        %v4720 = vld [vmem:[%s4718 + $0x8] sm:$0xff]
        %v4721 = vld [vmem:[%s4718 + $0x10] sm:$0xff]
        %v4722 = vld [vmem:[%s4718 + $0x18] sm:$0xff]
        %v4723 = vld [vmem:[%s4718 + $0x20] sm:$0xff]
        %v4724 = vld [vmem:[%s4718 + $0x28] sm:$0xff]
        %v4725 = vld [vmem:[%s4718 + $0x30] sm:$0xff]
        %v4726 = vld [vmem:[%s4718 + $0x38] sm:$0xff]
        %v4727 = vld [vmem:[%s4718 + $0x40] sm:$0xff]
        %v4728 = vld [vmem:[%s4718 + $0x48] sm:$0xff]
        %v4729 = vld [vmem:[%s4718 + $0x50] sm:$0xff]
        %v4730 = vld [vmem:[%s4718 + $0x58] sm:$0xff]
        %v4731 = vld [vmem:[%s4718 + $0x60] sm:$0xff]
        %v4732 = vld [vmem:[%s4718 + $0x68] sm:$0xff]
        %v4733 = vld [vmem:[%s4718 + $0x70] sm:$0xff]
        %v4734 = vld [vmem:[%s4718 + $0x78] sm:$0xff]
        %v4735 = vpack.c.bf16 %v4717, %v4716
        %s4736 = scalar_lea.vmem %s49, 2
        %v4737 = vld [vmem:[%s4736] sm:$0x3]
        %v4739 = vperm.slane %v4737, 0
        %v4740 = vperm.slane %v4737, 1
        %v4759 = vunpack.c.l.b16 %v4719
        %v4760 = vunpack.c.h.b16 %v4719
        %v4761 = vunpack.c.l.b16 %v4720
        %v4762 = vunpack.c.h.b16 %v4720
        %v4763 = vunpack.c.l.b16 %v4721
        %v4764 = vunpack.c.h.b16 %v4721
        %v4765 = vunpack.c.l.b16 %v4722
        %v4766 = vunpack.c.h.b16 %v4722
        %v4767 = vunpack.c.l.b16 %v4723
        %v4768 = vunpack.c.h.b16 %v4723
        %v4769 = vunpack.c.l.b16 %v4724
        %v4770 = vunpack.c.h.b16 %v4724
        %v4771 = vunpack.c.l.b16 %v4725
        %v4772 = vunpack.c.h.b16 %v4725
        %v4773 = vunpack.c.l.b16 %v4726
        %v4774 = vunpack.c.h.b16 %v4726
        %v4775 = vunpack.c.l.b16 %v4727
        %v4776 = vunpack.c.h.b16 %v4727
        %v4777 = vunpack.c.l.b16 %v4728
        %v4778 = vunpack.c.h.b16 %v4728
        %v4779 = vunpack.c.l.b16 %v4729
        %v4780 = vunpack.c.h.b16 %v4729
        %v4781 = vunpack.c.l.b16 %v4730
        %v4782 = vunpack.c.h.b16 %v4730
        %v4783 = vunpack.c.l.b16 %v4731
        %v4784 = vunpack.c.h.b16 %v4731
        %v4785 = vunpack.c.l.b16 %v4732
        %v4786 = vunpack.c.h.b16 %v4732
        %v4787 = vunpack.c.l.b16 %v4733
        %v4788 = vunpack.c.h.b16 %v4733
        %v4789 = vunpack.c.l.b16 %v4734
        %v4790 = vunpack.c.h.b16 %v4734
        %v4791 = vpack.c.b16 %v4761, %v4759
        %v4792 = vpack.c.b16 %v4762, %v4760
        %v4793 = vpack.c.b16 %v4765, %v4763
        %v4794 = vpack.c.b16 %v4766, %v4764
        %v4795 = vpack.c.b16 %v4769, %v4767
        %v4796 = vpack.c.b16 %v4770, %v4768
        %v4797 = vpack.c.b16 %v4773, %v4771
        %v4798 = vpack.c.b16 %v4774, %v4772
        %v4799 = vpack.c.b16 %v4777, %v4775
        %v4800 = vpack.c.b16 %v4778, %v4776
        %v4801 = vpack.c.b16 %v4781, %v4779
        %v4802 = vpack.c.b16 %v4782, %v4780
        %v4803 = vpack.c.b16 %v4785, %v4783
        %v4804 = vpack.c.b16 %v4786, %v4784
        %v4805 = vpack.c.b16 %v4789, %v4787
        %v4806 = vpack.c.b16 %v4790, %v4788
        %4823 = vmatpush.bf16.msra.mxu0 %v4805
        %4824 = vmatpush.bf16.msra.mxu0 %v4803
        %4825 = vmatpush.bf16.msra.mxu0 %v4801
        %4826 = vmatpush.bf16.msra.mxu0 %v4799
        %4827 = vmatpush.bf16.msra.mxu0 %v4797
        %4828 = vmatpush.bf16.msra.mxu0 %v4795
        %4829 = vmatpush.bf16.msra.mxu0 %v4793
        %4830 = vmatpush.bf16.msra.mxu0 %v4791
        %4831 = vmatmul.bf16.gmra.mxu0 %v4735
        %v4832 = vpop.f32.mrf.mxu0
        %v4833 = vadd.f32 %v4739, %v4832
        %v4834 = vpop.f32.mrf.mxu0
        %v4835 = vadd.f32 %v4739, %v4834
        %4836 = vdwg.mxu0
        %4837 = vmatpush.bf16.msra.mxu0 %v4806
        %4838 = vmatpush.bf16.msra.mxu0 %v4804
        %4839 = vmatpush.bf16.msra.mxu0 %v4802
        %4840 = vmatpush.bf16.msra.mxu0 %v4800
        %4841 = vmatpush.bf16.msra.mxu0 %v4798
        %4842 = vmatpush.bf16.msra.mxu0 %v4796
        %4843 = vmatpush.bf16.msra.mxu0 %v4794
        %4844 = vmatpush.bf16.msra.mxu0 %v4792
        %4845 = vmatmul.bf16.gmra.mxu0 %v4735
        %v4846 = vpop.f32.mrf.mxu0
        %v4847 = vadd.f32 %v4740, %v4846
        %v4848 = vpop.f32.mrf.mxu0
        %v4849 = vadd.f32 %v4740, %v4848
        %4850 = vdwg.mxu0
        %v4851 = vmax.f32 %v4833, 0.0
        %v4852 = vmax.f32 %v4847, 0.0
        %v4853 = vmax.f32 %v4835, 0.0
        %v4854 = vmax.f32 %v4849, 0.0
        %s4855 = scalar_lea.vmem %s51, 128
        %v4856 = vld [vmem:[%s4855] sm:$0xf]
        %v4857 = vld [vmem:[%s4855 + $0x4] sm:$0xf]
        %v4858 = vld [vmem:[%s4855 + $0x8] sm:$0xf]
        %v4859 = vld [vmem:[%s4855 + $0xc] sm:$0xf]
        %v4860 = vld [vmem:[%s4855 + $0x10] sm:$0xf]
        %v4861 = vld [vmem:[%s4855 + $0x14] sm:$0xf]
        %v4862 = vld [vmem:[%s4855 + $0x18] sm:$0xf]
        %v4863 = vld [vmem:[%s4855 + $0x1c] sm:$0xf]
        %v4864 = vld [vmem:[%s4855 + $0x20] sm:$0xf]
        %v4865 = vld [vmem:[%s4855 + $0x24] sm:$0xf]
        %v4866 = vld [vmem:[%s4855 + $0x28] sm:$0xf]
        %v4867 = vld [vmem:[%s4855 + $0x2c] sm:$0xf]
        %v4868 = vld [vmem:[%s4855 + $0x30] sm:$0xf]
        %v4869 = vld [vmem:[%s4855 + $0x34] sm:$0xf]
        %v4870 = vld [vmem:[%s4855 + $0x38] sm:$0xf]
        %v4871 = vld [vmem:[%s4855 + $0x3c] sm:$0xf]
        %v4872 = vld [vmem:[%s4855 + $0x40] sm:$0xf]
        %v4873 = vld [vmem:[%s4855 + $0x44] sm:$0xf]
        %v4874 = vld [vmem:[%s4855 + $0x48] sm:$0xf]
        %v4875 = vld [vmem:[%s4855 + $0x4c] sm:$0xf]
        %v4876 = vld [vmem:[%s4855 + $0x50] sm:$0xf]
        %v4877 = vld [vmem:[%s4855 + $0x54] sm:$0xf]
        %v4878 = vld [vmem:[%s4855 + $0x58] sm:$0xf]
        %v4879 = vld [vmem:[%s4855 + $0x5c] sm:$0xf]
        %v4880 = vld [vmem:[%s4855 + $0x60] sm:$0xf]
        %v4881 = vld [vmem:[%s4855 + $0x64] sm:$0xf]
        %v4882 = vld [vmem:[%s4855 + $0x68] sm:$0xf]
        %v4883 = vld [vmem:[%s4855 + $0x6c] sm:$0xf]
        %v4884 = vld [vmem:[%s4855 + $0x70] sm:$0xf]
        %v4885 = vld [vmem:[%s4855 + $0x74] sm:$0xf]
        %v4886 = vld [vmem:[%s4855 + $0x78] sm:$0xf]
        %v4887 = vld [vmem:[%s4855 + $0x7c] sm:$0xf]
        %v4888 = vpack.c.bf16 %v4853, %v4851
        %v4889 = vpack.c.bf16 %v4854, %v4852
        %s4890 = scalar_lea.vmem %s53, 1
        %v4891 = vld [vmem:[%s4890] sm:$0x1]
        %v4893 = vperm.slane %v4891, 0
        %v4927 = vunpack.c.l.b16 %v4856
        %v4928 = vunpack.c.l.b16 %v4857
        %v4929 = vunpack.c.l.b16 %v4858
        %v4930 = vunpack.c.l.b16 %v4859
        %v4931 = vunpack.c.l.b16 %v4860
        %v4932 = vunpack.c.l.b16 %v4861
        %v4933 = vunpack.c.l.b16 %v4862
        %v4934 = vunpack.c.l.b16 %v4863
        %v4935 = vunpack.c.l.b16 %v4864
        %v4936 = vunpack.c.l.b16 %v4865
        %v4937 = vunpack.c.l.b16 %v4866
        %v4938 = vunpack.c.l.b16 %v4867
        %v4939 = vunpack.c.l.b16 %v4868
        %v4940 = vunpack.c.l.b16 %v4869
        %v4941 = vunpack.c.l.b16 %v4870
        %v4942 = vunpack.c.l.b16 %v4871
        %v4943 = vunpack.c.l.b16 %v4872
        %v4944 = vunpack.c.l.b16 %v4873
        %v4945 = vunpack.c.l.b16 %v4874
        %v4946 = vunpack.c.l.b16 %v4875
        %v4947 = vunpack.c.l.b16 %v4876
        %v4948 = vunpack.c.l.b16 %v4877
        %v4949 = vunpack.c.l.b16 %v4878
        %v4950 = vunpack.c.l.b16 %v4879
        %v4951 = vunpack.c.l.b16 %v4880
        %v4952 = vunpack.c.l.b16 %v4881
        %v4953 = vunpack.c.l.b16 %v4882
        %v4954 = vunpack.c.l.b16 %v4883
        %v4955 = vunpack.c.l.b16 %v4884
        %v4956 = vunpack.c.l.b16 %v4885
        %v4957 = vunpack.c.l.b16 %v4886
        %v4958 = vunpack.c.l.b16 %v4887
        %v4959 = vpack.c.b16 %v4928, %v4927
        %v4960 = vpack.c.b16 %v4930, %v4929
        %v4961 = vpack.c.b16 %v4932, %v4931
        %v4962 = vpack.c.b16 %v4934, %v4933
        %v4963 = vpack.c.b16 %v4936, %v4935
        %v4964 = vpack.c.b16 %v4938, %v4937
        %v4965 = vpack.c.b16 %v4940, %v4939
        %v4966 = vpack.c.b16 %v4942, %v4941
        %v4967 = vpack.c.b16 %v4944, %v4943
        %v4968 = vpack.c.b16 %v4946, %v4945
        %v4969 = vpack.c.b16 %v4948, %v4947
        %v4970 = vpack.c.b16 %v4950, %v4949
        %v4971 = vpack.c.b16 %v4952, %v4951
        %v4972 = vpack.c.b16 %v4954, %v4953
        %v4973 = vpack.c.b16 %v4956, %v4955
        %v4974 = vpack.c.b16 %v4958, %v4957
        %4991 = vmatpush.bf16.msra.mxu0 %v4966
        %4992 = vmatpush.bf16.msra.mxu0 %v4965
        %4993 = vmatpush.bf16.msra.mxu0 %v4964
        %4994 = vmatpush.bf16.msra.mxu0 %v4963
        %4995 = vmatpush.bf16.msra.mxu0 %v4962
        %4996 = vmatpush.bf16.msra.mxu0 %v4961
        %4997 = vmatpush.bf16.msra.mxu0 %v4960
        %4998 = vmatpush.bf16.msra.mxu0 %v4959
        %4999 = vmatmul.bf16.gmra.mxu0 %v4888
        %v5000 = vpop.f32.mrf.mxu0
        %v5001 = vpop.f32.mrf.mxu0
        %v5002 = vadd.f32 %v4893, %v5001
        %5003 = vdwg.mxu0
        %5004 = vmatpush.bf16.msra.mxu0 %v4974
        %5005 = vmatpush.bf16.msra.mxu0 %v4973
        %5006 = vmatpush.bf16.msra.mxu0 %v4972
        %5007 = vmatpush.bf16.msra.mxu0 %v4971
        %5008 = vmatpush.bf16.msra.mxu0 %v4970
        %5009 = vmatpush.bf16.msra.mxu0 %v4969
        %5010 = vmatpush.bf16.msra.mxu0 %v4968
        %5011 = vmatpush.bf16.msra.mxu0 %v4967
        %5012 = vmatmul.bf16.gmra.mxu0 %v4889
        %v5013 = vpop.f32.mrf.mxu0
        %v5014 = vpop.f32.mrf.mxu0
        %v5015 = vadd.f32 %v5002, %v5014
        %5016 = vdwg.mxu0
        %v5017 = vadd.f32 %v4717, %v5015
        %s5018 = scalar_lea.vmem %s55, 1
        %v5019 = vld [vmem:[%s5018] sm:$0x1]
        %s5020 = scalar_lea.vmem %s57, 1
        %v5021 = vld [vmem:[%s5020] sm:$0x1]
        %v5022 = vsel %vm1356, %v5017, 0.0
        %5023 = vadd.xlane.f32.xlu0 %v5022
        %v5024 = vpop.xlane.xlu0 %5023
        %v5025 = vmul.f32 %v5024, %v1242
        %v5026 = vsub.f32 %v5017, %v5025
        %v5027 = vmul.f32 %v5026, %v5026
        %v5028 = vsel %vm1356, %v5027, 0.0
        %5029 = vadd.xlane.f32.xlu0 %v5028
        %v5030 = vpop.xlane.xlu0 %5029
        %v5031 = vmul.f32 %v5030, %v1242
        %v5032 = vadd.f32 %v5031, 1e-05
        %v5033 = vrsqrt.pop %v5032
        %v5034 = vmul.f32 %v5033, %v5032
        %v5035 = vmul.f32 %v5034, %v5033
        %v5036 = vmul.f32 0.5, %v5035
        %v5037 = vsub.f32 1.5, %v5036
        %v5038 = vmul.f32 %v5033, %v5037
        %vm5039 = vweird.f32 %v5032
        %vm5040 = vweird.f32 %v5033
        %vm5041 = vmor %vm5039, %vm5040
        %v5042 = vsel %vm5041, %v5033, %v5038
        %v5043 = vmul.f32 %v5026, %v5042
        %v5045 = vperm.slane %v5019, 0
        %v5047 = vmul.f32 %v5043, %v5045
        %v5049 = vperm.slane %v5021, 0
        %v5051 = vadd.f32 %v5047, %v5049
        %v5052 = vld [vmem:[%s59] sm:$0x1]
        %v5053 = vmul.f32 %v5051, %v5051
        %v5054 = vsel %vm1356, %v5053, 0.0
        %5055 = vadd.xlane.f32.xlu0 %v5054
        %v5056 = vpop.xlane.xlu0 %5055
        %v5057 = vmul.f32 %v5056, %v1242
        %v5058 = vadd.f32 %v5057, 1.1920929e-07
        %v5059 = vrsqrt.pop %v5058
        %v5060 = vmul.f32 %v5059, %v5058
        %v5061 = vmul.f32 %v5060, %v5059
        %v5062 = vmul.f32 0.5, %v5061
        %v5063 = vsub.f32 1.5, %v5062
        %v5064 = vmul.f32 %v5059, %v5063
        %vm5065 = vweird.f32 %v5058
        %vm5066 = vweird.f32 %v5059
        %vm5067 = vmor %vm5065, %vm5066
        %v5068 = vsel %vm5067, %v5059, %v5064
        %v5069 = vmul.f32 %v5051, %v5068
        %v5071 = vperm.slane %v5052, 0
        %v5073 = vmul.f32 %v5069, %v5071
        %v5074 = vld [vmem:[%s61] sm:$0xf]
        %v5075 = vld [vmem:[%s61 + $0x4] sm:$0xf]
        %v5076 = vld [vmem:[%s61 + $0x8] sm:$0xf]
        %v5077 = vld [vmem:[%s61 + $0xc] sm:$0xf]
        %v5078 = vld [vmem:[%s61 + $0x10] sm:$0xf]
        %v5079 = vld [vmem:[%s61 + $0x14] sm:$0xf]
        %v5080 = vld [vmem:[%s61 + $0x18] sm:$0xf]
        %v5081 = vld [vmem:[%s61 + $0x1c] sm:$0xf]
        %v5082 = vld [vmem:[%s61 + $0x20] sm:$0xf]
        %v5083 = vld [vmem:[%s61 + $0x24] sm:$0xf]
        %v5084 = vld [vmem:[%s61 + $0x28] sm:$0xf]
        %v5085 = vld [vmem:[%s61 + $0x2c] sm:$0xf]
        %v5086 = vld [vmem:[%s61 + $0x30] sm:$0xf]
        %v5087 = vld [vmem:[%s61 + $0x34] sm:$0xf]
        %v5088 = vld [vmem:[%s61 + $0x38] sm:$0xf]
        %v5089 = vld [vmem:[%s61 + $0x3c] sm:$0xf]
        %v5090 = vpack.c.bf16 %v5073, %v5073
        %v5091 = vld [vmem:[%s63] sm:$0x1]
        %v5093 = vperm.slane %v5091, 0
        %v5111 = vunpack.c.l.b16 %v5074
        %v5112 = vunpack.c.l.b16 %v5075
        %v5113 = vunpack.c.l.b16 %v5076
        %v5114 = vunpack.c.l.b16 %v5077
        %v5115 = vunpack.c.l.b16 %v5078
        %v5116 = vunpack.c.l.b16 %v5079
        %v5117 = vunpack.c.l.b16 %v5080
        %v5118 = vunpack.c.l.b16 %v5081
        %v5119 = vunpack.c.l.b16 %v5082
        %v5120 = vunpack.c.l.b16 %v5083
        %v5121 = vunpack.c.l.b16 %v5084
        %v5122 = vunpack.c.l.b16 %v5085
        %v5123 = vunpack.c.l.b16 %v5086
        %v5124 = vunpack.c.l.b16 %v5087
        %v5125 = vunpack.c.l.b16 %v5088
        %v5126 = vunpack.c.l.b16 %v5089
        %v5127 = vpack.c.b16 %v5112, %v5111
        %v5128 = vpack.c.b16 %v5114, %v5113
        %v5129 = vpack.c.b16 %v5116, %v5115
        %v5130 = vpack.c.b16 %v5118, %v5117
        %v5131 = vpack.c.b16 %v5120, %v5119
        %v5132 = vpack.c.b16 %v5122, %v5121
        %v5133 = vpack.c.b16 %v5124, %v5123
        %v5134 = vpack.c.b16 %v5126, %v5125
        %5143 = vmatpush.bf16.msra.mxu0 %v5134
        %5144 = vmatpush.bf16.msra.mxu0 %v5133
        %5145 = vmatpush.bf16.msra.mxu0 %v5132
        %5146 = vmatpush.bf16.msra.mxu0 %v5131
        %5147 = vmatpush.bf16.msra.mxu0 %v5130
        %5148 = vmatpush.bf16.msra.mxu0 %v5129
        %5149 = vmatpush.bf16.msra.mxu0 %v5128
        %5150 = vmatpush.bf16.msra.mxu0 %v5127
        %5151 = vmatmul.bf16.gmra.mxu0 %v5090
        %v5152 = vpop.f32.mrf.mxu0
        %v5153 = vadd.f32 %v5093, %v5152
        %v5154 = vpop.f32.mrf.mxu0
        %5155 = vdwg.mxu0
        %5156 = vst [vmem:[%s1005] sm:$0x3] %v5153
        %s5157 = sand.u32 %s774, 1
        %s5158 = scalar_lea.sflag [#allocation4], %s5157
        %s5159 = sand.u32 %s774, 1
        %s5160 = smul.addr %s5159, 2
        %s5161 = scalar_lea.vmem [#allocation3], %s5160
        // Predicated region
        $region149: #{verti_encoder_forward.1} parent=147 // pred_check
          %p5162 = pneg %p784
        $region150: #{verti_encoder_forward.1} parent=147 // pred_check_branch
          %5164 = sbr.rel (%p5162) target = $region152
        $region151: #{verti_encoder_forward.1} parent=147 // pred_region
          %5166 = vsyncadd %s5158, 0
          %s5167 = smul.addr %s79, 2
          %s5168 = scalar_lea.hbm %s65, %s5167
          %s5170 = sshll.u32 %s5161, 4
          %s5171 = int_to_ptr.vmem [resolvable:$true] %s5170
          %s5172 = sshll.u32 %s5168, 4
          %s5173 = int_to_ptr.hbm [resolvable:$true] %s5172
          %5175 = dma.vmem_to_hbm [thread:$0]  %s5171, 32, %s5173, %s5158
        $region152: #{verti_encoder_forward.1} parent=147 // pred_fallthru
          _
      $region148: #{verti_encoder_forward.1} parent=5 // pred_fallthru
        _
      %p5176 = scmp.le.s32.totalorder 2, %s74
      // Predicated region
      $region153: #{verti_encoder_forward.1} parent=5 // pred_check
        %p5177 = pneg %p5176
      $region154: #{verti_encoder_forward.1} parent=5 // pred_check_branch
        %5179 = sbr.rel (%p5177) target = $region156
      $region155: #{verti_encoder_forward.1} parent=5 // pred_region
        %s5180 = ssub.s32 %s74, 2
        // Predicated region
        $region157: #{verti_encoder_forward.1} parent=155 // pred_check
          %p5181 = pneg %p790
        $region158: #{verti_encoder_forward.1} parent=155 // pred_check_branch
          %5183 = sbr.rel (%p5181) target = $region160
        $region159: #{verti_encoder_forward.1} parent=155 // pred_region
          %s5184 = sand.u32 %s775, 1
          %s5185 = scalar_lea.sflag [#allocation4], %s5184
          %s5186 = sand.u32 %s775, 1
          %s5187 = smul.addr %s5186, 2
          %s5188 = scalar_lea.vmem [#allocation3], %s5187
          %5190 = dma.done %s5185, 32
        $region160: #{verti_encoder_forward.1} parent=155 // pred_fallthru
          _
      $region156: #{verti_encoder_forward.1} parent=5 // pred_fallthru
        _
    $region6: #{verti_encoder_forward.1} parent=1 // loop_footer
      %s78 = sadd.s32 1, %s74
    $region7: #{verti_encoder_forward.1} parent=1 // loop_footer_branch
      %73 = sbr.rel target = $region3
    $region8: #{verti_encoder_forward.1} parent=1 // loop_exit
      _
    %5191 = vsyncpa [#allocation4], 1
    %s5192 = scalar_lea.sflag [#allocation4], 1
    %5193 = vsyncpa %s5192, 1

</llo_original>
